<compile_context>
chip_gen: v7x
topology: tpu7x:2x2x1
jax: 0.10.0
libtpu: 0.0.40
codegen_flags: <defaults>
</compile_context>

<pallas_src>
import functools

import jax
import jax.numpy as jnp
import numpy as np
from jax.experimental import pallas as pl
from jax.experimental.pallas import tpu as pltpu


# ----------------------------- Pallas kernel ---------------------------------

def _decoder_lstm_kernel(x_ref, w_ih_ref, w_hh_ref, b_ref, w_fc_ref, b_fc_ref,
                         out_ref, gx_ref, hs_ref, *, batch, seq_len, hidden):
    """Whole Embedding->LSTM->Linear forward in a single invocation.

    All sizes below are already padded (B multiple of 8; E/H/V multiples of 128).

    x_ref   : (T*B, E)   bf16, time-major-flattened LSTM input (row = t*B + b)
    w_ih_ref: (E, 4H)    bf16, input->gates weight, gate cols permuted to (i,f,o,g)
    w_hh_ref: (H, 4H)    f32,  hidden->gates weight, same gate-col order
    b_ref   : (1, 4H)    f32,  combined LSTM bias (b_ih + b_hh), same gate-col order
    w_fc_ref: (H, V)     bf16, fc weight (pre-transposed)
    b_fc_ref: (1, V)     f32,  fc bias
    out_ref : (T*B, V)   f32,  logits, TIME-major row order (row = t*B + b)
    gx_ref  : (T*B, 4H)  f32 VMEM scratch, batched input projection
    hs_ref  : (T*B, H)   f32 VMEM scratch, per-step hidden states
    """
    B, T, H = batch, seq_len, hidden

    # ---- (1) Non-recurrent input projection, batched over all T*B rows, bf16 on the
    #      MXU with f32 accumulation; bias folded in once.  Parked in VMEM scratch so
    #      its live range does not span the serial loop.
    gx_ref[...] = (jnp.dot(x_ref[...], w_ih_ref[...],
                           preferred_element_type=jnp.float32)
                   + b_ref[...])                                   # (T*B, 4H)

    # ---- (2) Serial recurrence: only (B,H)@(H,4H) f32 + elementwise gate math per
    #      step.  T is small and static -> fully unrolled (== fori_loop(unroll=True)).
    #      Each step stores h to scratch immediately, bounding vreg live ranges.
    h = jnp.zeros((B, H), jnp.float32)
    c = jnp.zeros((B, H), jnp.float32)
    for t in range(T):
        # Aligned (8-sublane) slice of the precomputed input projection.
        gates = (gx_ref[t * B:(t + 1) * B, :]
                 + jnp.dot(h, w_hh_ref[...],
                           preferred_element_type=jnp.float32))    # (B, 4H)
        # Gate columns were permuted host-side to (i, f, o, g): one sigmoid slab of
        # width 3H and one tanh slab of width H -> 2 EUP pushes per step.
        ifo = jax.nn.sigmoid(gates[:, :3 * H])
        g_g = jnp.tanh(gates[:, 3 * H:])
        i_g = ifo[:, 0 * H:1 * H]
        f_g = ifo[:, 1 * H:2 * H]
        o_g = ifo[:, 2 * H:3 * H]
        c = f_g * c + i_g * g_g
        h = o_g * jnp.tanh(c)
        hs_ref[t * B:(t + 1) * B, :] = h                           # full-tile store

    # ---- (3) One batched bf16 fc over all T*B hidden states, emitted TIME-major
    #      (no in-kernel reorder; the wrapper does a single XLA transpose).  V is
    #      padded to a multiple of 128 so this is a lane-dense, unmasked store.
    logits = (jnp.dot(hs_ref[...].astype(jnp.bfloat16), w_fc_ref[...],
                      preferred_element_type=jnp.float32)
              + b_fc_ref[...])                                     # (T*B, V)
    out_ref[...] = logits.astype(out_ref.dtype)


# ----------------------------- host-side prep ---------------------------------

def _round_up(x, m):
    return (x + m - 1) // m * m


def _prepare_params(params, E, H, V, E_pad, H_pad, V_pad):
    """Gate-column permutation (i,f,g,o)->(i,f,o,g), zero padding, bf16 casts."""

    def gate_cols(w):
        # w: (..., 4H) in PyTorch order (i, f, g, o); returns (..., 4*H_pad) in
        # (i, f, o, g) order with each gate block zero-padded H -> H_pad.
        i, f, g, o = (w[..., k * H:(k + 1) * H] for k in range(4))
        pad = [(0, 0)] * (w.ndim - 1) + [(0, H_pad - H)]
        return jnp.concatenate([jnp.pad(blk, pad) for blk in (i, f, o, g)], axis=-1)

    w_ih = jnp.pad(gate_cols(params["w_ih"]),
                   ((0, E_pad - E), (0, 0))).astype(jnp.bfloat16)   # (E_pad, 4H_pad)
    w_hh = jnp.pad(gate_cols(params["w_hh"]),
                   ((0, H_pad - H), (0, 0)))                        # (H_pad, 4H_pad) f32
    b_lstm = gate_cols(params["b_lstm"])                            # (1, 4H_pad) f32
    w_fc = jnp.pad(params["w_fc"],
                   ((0, H_pad - H), (0, V_pad - V))).astype(jnp.bfloat16)
    b_fc = jnp.pad(params["b_fc"], ((0, 0), (0, V_pad - V)))        # (1, V_pad) f32
    return w_ih, w_hh, b_lstm, w_fc, b_fc


def decoder_rnn_forward(features, captions, params):
    """Forward pass of DecoderRNN.

    features: (B, E) float32 image features
    captions: (B, S) int32 token ids
    returns : (B, S, V) float32 logits
    """
    emb = params["embedding"]           # (V, E)
    B, E = features.shape
    H = params["w_hh"].shape[0]
    V = params["w_fc"].shape[1]

    # Tile-friendly padded sizes: batch -> sublanes (8), feature dims -> lanes (128).
    B_pad = _round_up(B, 8)
    E_pad = _round_up(E, 128)
    H_pad = _round_up(H, 128)
    V_pad = _round_up(V, 128)

    # Glue in plain JAX: embedding gather + prepend of the image features.
    # (At production B*T*E this gather/transpose could be fused into the kernel via
    #  PrefetchScalarGridSpec row-gather on the embedding table.)
    captions_trunc = captions[:, :-1]                       # (B, S-1)
    embeddings = jnp.take(emb, captions_trunc, axis=0)      # (B, S-1, E)
    lstm_input = jnp.concatenate(
        [features[:, None, :], embeddings], axis=1)         # (B, T, E), T = S
    T = lstm_input.shape[1]

    # Pad, go time-major, cast to bf16 for the MXU input projection.
    x = jnp.pad(lstm_input, ((0, B_pad - B), (0, 0), (0, E_pad - E)))
    x_tm = jnp.transpose(x, (1, 0, 2)).reshape(T * B_pad, E_pad).astype(jnp.bfloat16)

    w_ih, w_hh, b_lstm, w_fc, b_fc = _prepare_params(params, E, H, V,
                                                     E_pad, H_pad, V_pad)

    kernel = functools.partial(_decoder_lstm_kernel,
                               batch=B_pad, seq_len=T, hidden=H_pad)

    # Single invocation, everything VMEM-resident (tiny at these shapes).  At
    # production vocab the fc stage would be split into a pallas_call tiled over V
    # with a "parallel" grid axis instead of whole-array residency.
    out_tm = pl.pallas_call(
        kernel,
        out_shape=jax.ShapeDtypeStruct((T * B_pad, V_pad), jnp.float32),
        scratch_shapes=[
            pltpu.VMEM((T * B_pad, 4 * H_pad), jnp.float32),   # batched input projection
            pltpu.VMEM((T * B_pad, H_pad), jnp.float32),       # per-step hidden states
        ],
        compiler_params=pltpu.CompilerParams(vmem_limit_bytes=32 * 1024 * 1024),
    )(x_tm, w_ih, w_hh, b_lstm, w_fc, b_fc)

    # Kernel emits time-major rows (t*B_pad + b); one XLA transpose + un-pad slice.
    out = out_tm.reshape(T, B_pad, V_pad)[:, :B, :V]
    return jnp.transpose(out, (1, 0, 2))                    # (B, T, V)


# --------------------------- pure-JAX reference -------------------------------

def decoder_rnn_reference(features, captions, params):
    emb = params["embedding"]
    w_ih, w_hh, b = params["w_ih"], params["w_hh"], params["b_lstm"]
    w_fc, b_fc = params["w_fc"], params["b_fc"]
    B, E = features.shape
    H = w_hh.shape[0]

    embeddings = jnp.take(emb, captions[:, :-1], axis=0)
    x = jnp.concatenate([features[:, None, :], embeddings], axis=1)  # (B, T, E)

    def step(carry, x_t):
        h, c = carry
        gates = x_t @ w_ih + h @ w_hh + b[0]
        i = jax.nn.sigmoid(gates[:, 0 * H:1 * H])
        f = jax.nn.sigmoid(gates[:, 1 * H:2 * H])
        g = jnp.tanh(gates[:, 2 * H:3 * H])
        o = jax.nn.sigmoid(gates[:, 3 * H:4 * H])
        c_new = f * c + i * g
        h_new = o * jnp.tanh(c_new)
        return (h_new, c_new), h_new

    h0 = jnp.zeros((B, H), jnp.float32)
    c0 = jnp.zeros((B, H), jnp.float32)
    _, hs = jax.lax.scan(step, (h0, c0), jnp.transpose(x, (1, 0, 2)))
    hs = jnp.transpose(hs, (1, 0, 2))                        # (B, T, H)
    return hs @ w_fc + b_fc[0]


# ------------------------------- main -----------------------------------------

if __name__ == "__main__":
    # Small shapes consistent with the module.
    batch = 2
    embed_size = 32
    hidden_size = 32
    vocab_size = 64
    seq_len = 8           # caption length S -> LSTM runs T = S steps

    key = jax.random.PRNGKey(0)
    keys = jax.random.split(key, 10)
    scale = 1.0 / np.sqrt(hidden_size)

    params = {
        "embedding": jax.random.normal(keys[0], (vocab_size, embed_size),
                                       jnp.float32) * 0.1,
        # PyTorch weight_ih_l0 is (4H, E); store transposed (E, 4H).
        "w_ih": jax.random.uniform(keys[1], (embed_size, 4 * hidden_size),
                                   jnp.float32, -scale, scale),
        # PyTorch weight_hh_l0 is (4H, H); store transposed (H, 4H).
        "w_hh": jax.random.uniform(keys[2], (hidden_size, 4 * hidden_size),
                                   jnp.float32, -scale, scale),
        # Combined bias b_ih + b_hh, kept 2D for VMEM friendliness.
        "b_lstm": (jax.random.uniform(keys[3], (1, 4 * hidden_size),
                                      jnp.float32, -scale, scale)
                   + jax.random.uniform(keys[4], (1, 4 * hidden_size),
                                        jnp.float32, -scale, scale)),
        # PyTorch fc weight is (V, H); store transposed (H, V).
        "w_fc": jax.random.uniform(keys[5], (hidden_size, vocab_size),
                                   jnp.float32, -scale, scale),
        "b_fc": jax.random.uniform(keys[6], (1, vocab_size),
                                   jnp.float32, -scale, scale),
    }

    features = jax.random.normal(keys[7], (batch, embed_size), jnp.float32)
    captions = jax.random.randint(keys[8], (batch, seq_len), 0, vocab_size,
                                  dtype=jnp.int32)

    out = decoder_rnn_forward(features, captions, params)
    out = jax.block_until_ready(out)

    ref = jax.block_until_ready(decoder_rnn_reference(features, captions, params))

    assert out.shape == (batch, seq_len, vocab_size), out.shape
    # Tolerance accounts for bf16 MXU operands on the two batched matmuls
    # (f32 accumulation) plus accumulation-order differences vs. XLA.
    assert np.allclose(np.asarray(out), np.asarray(ref), atol=3e-2, rtol=3e-2), \
        "Pallas kernel output does not match reference"

    print("KERNEL_OK")
</pallas_src>

<mosaic_0001>
module attributes {stable_mosaic.version = 11 : i64} {
  func.func @_decoder_lstm_kernel(%arg0: memref<64x128xbf16, #tpu.memory_space<vmem>>, %arg1: memref<128x512xbf16, #tpu.memory_space<vmem>>, %arg2: memref<128x512xf32, #tpu.memory_space<vmem>>, %arg3: memref<1x512xf32, #tpu.memory_space<vmem>>, %arg4: memref<128x128xbf16, #tpu.memory_space<vmem>>, %arg5: memref<1x128xf32, #tpu.memory_space<vmem>>, %arg6: memref<64x128xf32, #tpu.memory_space<vmem>>, %arg7: memref<64x512xf32, #tpu.memory_space<vmem>>, %arg8: memref<64x128xf32, #tpu.memory_space<vmem>>) attributes {dimension_semantics = [], scalar_prefetch = 0 : i64, scratch_operands = 2 : i64, tpu.core_type = #tpu.core_type<tc>} {
    %c0 = arith.constant 0 : index
    %c0_0 = arith.constant 0 : index
    %0 = vector.load %arg0[%c0, %c0_0] : memref<64x128xbf16, #tpu.memory_space<vmem>>, vector<64x128xbf16>
    %c0_1 = arith.constant 0 : index
    %c0_2 = arith.constant 0 : index
    %1 = vector.load %arg1[%c0_1, %c0_2] : memref<128x512xbf16, #tpu.memory_space<vmem>>, vector<128x512xbf16>
    %cst = arith.constant dense<0.000000e+00> : vector<64x512xf32>
    %2 = tpu.matmul %0, %1, %cst {dimension_numbers = #tpu.dot_dimension_numbers<[1], [0], [0], [1], [0, 0, 1, 1], [], []>} : vector<64x128xbf16>, vector<128x512xbf16>, vector<64x512xf32> -> vector<64x512xf32>
    %c0_3 = arith.constant 0 : index
    %c0_4 = arith.constant 0 : index
    %3 = vector.load %arg3[%c0_3, %c0_4] : memref<1x512xf32, #tpu.memory_space<vmem>>, vector<1x512xf32>
    %4 = vector.broadcast %3 : vector<1x512xf32> to vector<64x512xf32>
    %5 = arith.addf %2, %4 : vector<64x512xf32>
    %c0_5 = arith.constant 0 : index
    %c0_6 = arith.constant 0 : index
    %6 = vector.load %arg7[%c0_5, %c0_6] : memref<64x512xf32, #tpu.memory_space<vmem>>, vector<64x512xf32>
    tpu.vector_store %arg7[%c0_5, %c0_6], %5 {strides = array<i32>} : memref<64x512xf32, #tpu.memory_space<vmem>>, vector<64x512xf32>,
    %cst_7 = arith.constant 0.000000e+00 : f32
    %7 = vector.broadcast %cst_7 : f32 to vector<8x128xf32>
    %cst_8 = arith.constant 0.000000e+00 : f32
    %8 = vector.broadcast %cst_8 : f32 to vector<8x128xf32>
    %c0_9 = arith.constant 0 : index
    %c0_10 = arith.constant 0 : index
    %9 = vector.load %arg7[%c0_9, %c0_10] : memref<64x512xf32, #tpu.memory_space<vmem>>, vector<8x512xf32>
    %c0_11 = arith.constant 0 : index
    %c0_12 = arith.constant 0 : index
    %10 = vector.load %arg2[%c0_11, %c0_12] : memref<128x512xf32, #tpu.memory_space<vmem>>, vector<128x512xf32>
    %cst_13 = arith.constant dense<0.000000e+00> : vector<8x512xf32>
    %11 = tpu.matmul %7, %10, %cst_13 {dimension_numbers = #tpu.dot_dimension_numbers<[1], [0], [0], [1], [0, 0, 1, 1], [], []>} : vector<8x128xf32>, vector<128x512xf32>, vector<8x512xf32> -> vector<8x512xf32>
    %12 = arith.addf %9, %11 : vector<8x512xf32>
    %13 = vector.extract_strided_slice %12 {offsets = [0, 0], sizes = [8, 384], strides = [1, 1]} : vector<8x512xf32> to vector<8x384xf32>
    %14 = arith.negf %13 : vector<8x384xf32>
    %15 = math.exp %14 : vector<8x384xf32>
    %cst_14 = arith.constant 1.000000e+00 : f32
    %16 = vector.broadcast %cst_14 : f32 to vector<8x384xf32>
    %17 = arith.addf %16, %15 : vector<8x384xf32>
    %18 = arith.divf %16, %17 : vector<8x384xf32>
    %19 = vector.extract_strided_slice %12 {offsets = [0, 384], sizes = [8, 128], strides = [1, 1]} : vector<8x512xf32> to vector<8x128xf32>
    %20 = math.tanh %19 : vector<8x128xf32>
    %21 = vector.extract_strided_slice %18 {offsets = [0, 0], sizes = [8, 128], strides = [1, 1]} : vector<8x384xf32> to vector<8x128xf32>
    %22 = vector.extract_strided_slice %18 {offsets = [0, 128], sizes = [8, 128], strides = [1, 1]} : vector<8x384xf32> to vector<8x128xf32>
    %23 = vector.extract_strided_slice %18 {offsets = [0, 256], sizes = [8, 128], strides = [1, 1]} : vector<8x384xf32> to vector<8x128xf32>
    %24 = arith.mulf %22, %8 : vector<8x128xf32>
    %25 = arith.mulf %21, %20 : vector<8x128xf32>
    %26 = arith.addf %24, %25 : vector<8x128xf32>
    %27 = math.tanh %26 : vector<8x128xf32>
    %28 = arith.mulf %23, %27 : vector<8x128xf32>
    %c0_15 = arith.constant 0 : index
    %c0_16 = arith.constant 0 : index
    %29 = vector.load %arg8[%c0_15, %c0_16] : memref<64x128xf32, #tpu.memory_space<vmem>>, vector<8x128xf32>
    tpu.vector_store %arg8[%c0_15, %c0_16], %28 {strides = array<i32>} : memref<64x128xf32, #tpu.memory_space<vmem>>, vector<8x128xf32>,
    %c8 = arith.constant 8 : index
    %c0_17 = arith.constant 0 : index
    %30 = vector.load %arg7[%c8, %c0_17] : memref<64x512xf32, #tpu.memory_space<vmem>>, vector<8x512xf32>
    %c0_18 = arith.constant 0 : index
    %c0_19 = arith.constant 0 : index
    %31 = vector.load %arg2[%c0_18, %c0_19] : memref<128x512xf32, #tpu.memory_space<vmem>>, vector<128x512xf32>
    %cst_20 = arith.constant dense<0.000000e+00> : vector<8x512xf32>
    %32 = tpu.matmul %28, %31, %cst_20 {dimension_numbers = #tpu.dot_dimension_numbers<[1], [0], [0], [1], [0, 0, 1, 1], [], []>} : vector<8x128xf32>, vector<128x512xf32>, vector<8x512xf32> -> vector<8x512xf32>
    %33 = arith.addf %30, %32 : vector<8x512xf32>
    %34 = vector.extract_strided_slice %33 {offsets = [0, 0], sizes = [8, 384], strides = [1, 1]} : vector<8x512xf32> to vector<8x384xf32>
    %35 = arith.negf %34 : vector<8x384xf32>
    %36 = math.exp %35 : vector<8x384xf32>
    %cst_21 = arith.constant 1.000000e+00 : f32
    %37 = vector.broadcast %cst_21 : f32 to vector<8x384xf32>
    %38 = arith.addf %37, %36 : vector<8x384xf32>
    %39 = arith.divf %37, %38 : vector<8x384xf32>
    %40 = vector.extract_strided_slice %33 {offsets = [0, 384], sizes = [8, 128], strides = [1, 1]} : vector<8x512xf32> to vector<8x128xf32>
    %41 = math.tanh %40 : vector<8x128xf32>
    %42 = vector.extract_strided_slice %39 {offsets = [0, 0], sizes = [8, 128], strides = [1, 1]} : vector<8x384xf32> to vector<8x128xf32>
    %43 = vector.extract_strided_slice %39 {offsets = [0, 128], sizes = [8, 128], strides = [1, 1]} : vector<8x384xf32> to vector<8x128xf32>
    %44 = vector.extract_strided_slice %39 {offsets = [0, 256], sizes = [8, 128], strides = [1, 1]} : vector<8x384xf32> to vector<8x128xf32>
    %45 = arith.mulf %43, %26 : vector<8x128xf32>
    %46 = arith.mulf %42, %41 : vector<8x128xf32>
    %47 = arith.addf %45, %46 : vector<8x128xf32>
    %48 = math.tanh %47 : vector<8x128xf32>
    %49 = arith.mulf %44, %48 : vector<8x128xf32>
    %c8_22 = arith.constant 8 : index
    %c0_23 = arith.constant 0 : index
    %50 = vector.load %arg8[%c8_22, %c0_23] : memref<64x128xf32, #tpu.memory_space<vmem>>, vector<8x128xf32>
    tpu.vector_store %arg8[%c8_22, %c0_23], %49 {strides = array<i32>} : memref<64x128xf32, #tpu.memory_space<vmem>>, vector<8x128xf32>,
    %c16 = arith.constant 16 : index
    %c0_24 = arith.constant 0 : index
    %51 = vector.load %arg7[%c16, %c0_24] : memref<64x512xf32, #tpu.memory_space<vmem>>, vector<8x512xf32>
    %c0_25 = arith.constant 0 : index
    %c0_26 = arith.constant 0 : index
    %52 = vector.load %arg2[%c0_25, %c0_26] : memref<128x512xf32, #tpu.memory_space<vmem>>, vector<128x512xf32>
    %cst_27 = arith.constant dense<0.000000e+00> : vector<8x512xf32>
    %53 = tpu.matmul %49, %52, %cst_27 {dimension_numbers = #tpu.dot_dimension_numbers<[1], [0], [0], [1], [0, 0, 1, 1], [], []>} : vector<8x128xf32>, vector<128x512xf32>, vector<8x512xf32> -> vector<8x512xf32>
    %54 = arith.addf %51, %53 : vector<8x512xf32>
    %55 = vector.extract_strided_slice %54 {offsets = [0, 0], sizes = [8, 384], strides = [1, 1]} : vector<8x512xf32> to vector<8x384xf32>
    %56 = arith.negf %55 : vector<8x384xf32>
    %57 = math.exp %56 : vector<8x384xf32>
    %cst_28 = arith.constant 1.000000e+00 : f32
    %58 = vector.broadcast %cst_28 : f32 to vector<8x384xf32>
    %59 = arith.addf %58, %57 : vector<8x384xf32>
    %60 = arith.divf %58, %59 : vector<8x384xf32>
    %61 = vector.extract_strided_slice %54 {offsets = [0, 384], sizes = [8, 128], strides = [1, 1]} : vector<8x512xf32> to vector<8x128xf32>
    %62 = math.tanh %61 : vector<8x128xf32>
    %63 = vector.extract_strided_slice %60 {offsets = [0, 0], sizes = [8, 128], strides = [1, 1]} : vector<8x384xf32> to vector<8x128xf32>
    %64 = vector.extract_strided_slice %60 {offsets = [0, 128], sizes = [8, 128], strides = [1, 1]} : vector<8x384xf32> to vector<8x128xf32>
    %65 = vector.extract_strided_slice %60 {offsets = [0, 256], sizes = [8, 128], strides = [1, 1]} : vector<8x384xf32> to vector<8x128xf32>
    %66 = arith.mulf %64, %47 : vector<8x128xf32>
    %67 = arith.mulf %63, %62 : vector<8x128xf32>
    %68 = arith.addf %66, %67 : vector<8x128xf32>
    %69 = math.tanh %68 : vector<8x128xf32>
    %70 = arith.mulf %65, %69 : vector<8x128xf32>
    %c16_29 = arith.constant 16 : index
    %c0_30 = arith.constant 0 : index
    %71 = vector.load %arg8[%c16_29, %c0_30] : memref<64x128xf32, #tpu.memory_space<vmem>>, vector<8x128xf32>
    tpu.vector_store %arg8[%c16_29, %c0_30], %70 {strides = array<i32>} : memref<64x128xf32, #tpu.memory_space<vmem>>, vector<8x128xf32>,
    %c24 = arith.constant 24 : index
    %c0_31 = arith.constant 0 : index
    %72 = vector.load %arg7[%c24, %c0_31] : memref<64x512xf32, #tpu.memory_space<vmem>>, vector<8x512xf32>
    %c0_32 = arith.constant 0 : index
    %c0_33 = arith.constant 0 : index
    %73 = vector.load %arg2[%c0_32, %c0_33] : memref<128x512xf32, #tpu.memory_space<vmem>>, vector<128x512xf32>
    %cst_34 = arith.constant dense<0.000000e+00> : vector<8x512xf32>
    %74 = tpu.matmul %70, %73, %cst_34 {dimension_numbers = #tpu.dot_dimension_numbers<[1], [0], [0], [1], [0, 0, 1, 1], [], []>} : vector<8x128xf32>, vector<128x512xf32>, vector<8x512xf32> -> vector<8x512xf32>
    %75 = arith.addf %72, %74 : vector<8x512xf32>
    %76 = vector.extract_strided_slice %75 {offsets = [0, 0], sizes = [8, 384], strides = [1, 1]} : vector<8x512xf32> to vector<8x384xf32>
    %77 = arith.negf %76 : vector<8x384xf32>
    %78 = math.exp %77 : vector<8x384xf32>
    %cst_35 = arith.constant 1.000000e+00 : f32
    %79 = vector.broadcast %cst_35 : f32 to vector<8x384xf32>
    %80 = arith.addf %79, %78 : vector<8x384xf32>
    %81 = arith.divf %79, %80 : vector<8x384xf32>
    %82 = vector.extract_strided_slice %75 {offsets = [0, 384], sizes = [8, 128], strides = [1, 1]} : vector<8x512xf32> to vector<8x128xf32>
    %83 = math.tanh %82 : vector<8x128xf32>
    %84 = vector.extract_strided_slice %81 {offsets = [0, 0], sizes = [8, 128], strides = [1, 1]} : vector<8x384xf32> to vector<8x128xf32>
    %85 = vector.extract_strided_slice %81 {offsets = [0, 128], sizes = [8, 128], strides = [1, 1]} : vector<8x384xf32> to vector<8x128xf32>
    %86 = vector.extract_strided_slice %81 {offsets = [0, 256], sizes = [8, 128], strides = [1, 1]} : vector<8x384xf32> to vector<8x128xf32>
    %87 = arith.mulf %85, %68 : vector<8x128xf32>
    %88 = arith.mulf %84, %83 : vector<8x128xf32>
    %89 = arith.addf %87, %88 : vector<8x128xf32>
    %90 = math.tanh %89 : vector<8x128xf32>
    %91 = arith.mulf %86, %90 : vector<8x128xf32>
    %c24_36 = arith.constant 24 : index
    %c0_37 = arith.constant 0 : index
    %92 = vector.load %arg8[%c24_36, %c0_37] : memref<64x128xf32, #tpu.memory_space<vmem>>, vector<8x128xf32>
    tpu.vector_store %arg8[%c24_36, %c0_37], %91 {strides = array<i32>} : memref<64x128xf32, #tpu.memory_space<vmem>>, vector<8x128xf32>,
    %c32 = arith.constant 32 : index
    %c0_38 = arith.constant 0 : index
    %93 = vector.load %arg7[%c32, %c0_38] : memref<64x512xf32, #tpu.memory_space<vmem>>, vector<8x512xf32>
    %c0_39 = arith.constant 0 : index
    %c0_40 = arith.constant 0 : index
    %94 = vector.load %arg2[%c0_39, %c0_40] : memref<128x512xf32, #tpu.memory_space<vmem>>, vector<128x512xf32>
    %cst_41 = arith.constant dense<0.000000e+00> : vector<8x512xf32>
    %95 = tpu.matmul %91, %94, %cst_41 {dimension_numbers = #tpu.dot_dimension_numbers<[1], [0], [0], [1], [0, 0, 1, 1], [], []>} : vector<8x128xf32>, vector<128x512xf32>, vector<8x512xf32> -> vector<8x512xf32>
    %96 = arith.addf %93, %95 : vector<8x512xf32>
    %97 = vector.extract_strided_slice %96 {offsets = [0, 0], sizes = [8, 384], strides = [1, 1]} : vector<8x512xf32> to vector<8x384xf32>
    %98 = arith.negf %97 : vector<8x384xf32>
    %99 = math.exp %98 : vector<8x384xf32>
    %cst_42 = arith.constant 1.000000e+00 : f32
    %100 = vector.broadcast %cst_42 : f32 to vector<8x384xf32>
    %101 = arith.addf %100, %99 : vector<8x384xf32>
    %102 = arith.divf %100, %101 : vector<8x384xf32>
    %103 = vector.extract_strided_slice %96 {offsets = [0, 384], sizes = [8, 128], strides = [1, 1]} : vector<8x512xf32> to vector<8x128xf32>
    %104 = math.tanh %103 : vector<8x128xf32>
    %105 = vector.extract_strided_slice %102 {offsets = [0, 0], sizes = [8, 128], strides = [1, 1]} : vector<8x384xf32> to vector<8x128xf32>
    %106 = vector.extract_strided_slice %102 {offsets = [0, 128], sizes = [8, 128], strides = [1, 1]} : vector<8x384xf32> to vector<8x128xf32>
    %107 = vector.extract_strided_slice %102 {offsets = [0, 256], sizes = [8, 128], strides = [1, 1]} : vector<8x384xf32> to vector<8x128xf32>
    %108 = arith.mulf %106, %89 : vector<8x128xf32>
    %109 = arith.mulf %105, %104 : vector<8x128xf32>
    %110 = arith.addf %108, %109 : vector<8x128xf32>
    %111 = math.tanh %110 : vector<8x128xf32>
    %112 = arith.mulf %107, %111 : vector<8x128xf32>
    %c32_43 = arith.constant 32 : index
    %c0_44 = arith.constant 0 : index
    %113 = vector.load %arg8[%c32_43, %c0_44] : memref<64x128xf32, #tpu.memory_space<vmem>>, vector<8x128xf32>
    tpu.vector_store %arg8[%c32_43, %c0_44], %112 {strides = array<i32>} : memref<64x128xf32, #tpu.memory_space<vmem>>, vector<8x128xf32>,
    %c40 = arith.constant 40 : index
    %c0_45 = arith.constant 0 : index
    %114 = vector.load %arg7[%c40, %c0_45] : memref<64x512xf32, #tpu.memory_space<vmem>>, vector<8x512xf32>
    %c0_46 = arith.constant 0 : index
    %c0_47 = arith.constant 0 : index
    %115 = vector.load %arg2[%c0_46, %c0_47] : memref<128x512xf32, #tpu.memory_space<vmem>>, vector<128x512xf32>
    %cst_48 = arith.constant dense<0.000000e+00> : vector<8x512xf32>
    %116 = tpu.matmul %112, %115, %cst_48 {dimension_numbers = #tpu.dot_dimension_numbers<[1], [0], [0], [1], [0, 0, 1, 1], [], []>} : vector<8x128xf32>, vector<128x512xf32>, vector<8x512xf32> -> vector<8x512xf32>
    %117 = arith.addf %114, %116 : vector<8x512xf32>
    %118 = vector.extract_strided_slice %117 {offsets = [0, 0], sizes = [8, 384], strides = [1, 1]} : vector<8x512xf32> to vector<8x384xf32>
    %119 = arith.negf %118 : vector<8x384xf32>
    %120 = math.exp %119 : vector<8x384xf32>
    %cst_49 = arith.constant 1.000000e+00 : f32
    %121 = vector.broadcast %cst_49 : f32 to vector<8x384xf32>
    %122 = arith.addf %121, %120 : vector<8x384xf32>
    %123 = arith.divf %121, %122 : vector<8x384xf32>
    %124 = vector.extract_strided_slice %117 {offsets = [0, 384], sizes = [8, 128], strides = [1, 1]} : vector<8x512xf32> to vector<8x128xf32>
    %125 = math.tanh %124 : vector<8x128xf32>
    %126 = vector.extract_strided_slice %123 {offsets = [0, 0], sizes = [8, 128], strides = [1, 1]} : vector<8x384xf32> to vector<8x128xf32>
    %127 = vector.extract_strided_slice %123 {offsets = [0, 128], sizes = [8, 128], strides = [1, 1]} : vector<8x384xf32> to vector<8x128xf32>
    %128 = vector.extract_strided_slice %123 {offsets = [0, 256], sizes = [8, 128], strides = [1, 1]} : vector<8x384xf32> to vector<8x128xf32>
    %129 = arith.mulf %127, %110 : vector<8x128xf32>
    %130 = arith.mulf %126, %125 : vector<8x128xf32>
    %131 = arith.addf %129, %130 : vector<8x128xf32>
    %132 = math.tanh %131 : vector<8x128xf32>
    %133 = arith.mulf %128, %132 : vector<8x128xf32>
    %c40_50 = arith.constant 40 : index
    %c0_51 = arith.constant 0 : index
    %134 = vector.load %arg8[%c40_50, %c0_51] : memref<64x128xf32, #tpu.memory_space<vmem>>, vector<8x128xf32>
    tpu.vector_store %arg8[%c40_50, %c0_51], %133 {strides = array<i32>} : memref<64x128xf32, #tpu.memory_space<vmem>>, vector<8x128xf32>,
    %c48 = arith.constant 48 : index
    %c0_52 = arith.constant 0 : index
    %135 = vector.load %arg7[%c48, %c0_52] : memref<64x512xf32, #tpu.memory_space<vmem>>, vector<8x512xf32>
    %c0_53 = arith.constant 0 : index
    %c0_54 = arith.constant 0 : index
    %136 = vector.load %arg2[%c0_53, %c0_54] : memref<128x512xf32, #tpu.memory_space<vmem>>, vector<128x512xf32>
    %cst_55 = arith.constant dense<0.000000e+00> : vector<8x512xf32>
    %137 = tpu.matmul %133, %136, %cst_55 {dimension_numbers = #tpu.dot_dimension_numbers<[1], [0], [0], [1], [0, 0, 1, 1], [], []>} : vector<8x128xf32>, vector<128x512xf32>, vector<8x512xf32> -> vector<8x512xf32>
    %138 = arith.addf %135, %137 : vector<8x512xf32>
    %139 = vector.extract_strided_slice %138 {offsets = [0, 0], sizes = [8, 384], strides = [1, 1]} : vector<8x512xf32> to vector<8x384xf32>
    %140 = arith.negf %139 : vector<8x384xf32>
    %141 = math.exp %140 : vector<8x384xf32>
    %cst_56 = arith.constant 1.000000e+00 : f32
    %142 = vector.broadcast %cst_56 : f32 to vector<8x384xf32>
    %143 = arith.addf %142, %141 : vector<8x384xf32>
    %144 = arith.divf %142, %143 : vector<8x384xf32>
    %145 = vector.extract_strided_slice %138 {offsets = [0, 384], sizes = [8, 128], strides = [1, 1]} : vector<8x512xf32> to vector<8x128xf32>
    %146 = math.tanh %145 : vector<8x128xf32>
    %147 = vector.extract_strided_slice %144 {offsets = [0, 0], sizes = [8, 128], strides = [1, 1]} : vector<8x384xf32> to vector<8x128xf32>
    %148 = vector.extract_strided_slice %144 {offsets = [0, 128], sizes = [8, 128], strides = [1, 1]} : vector<8x384xf32> to vector<8x128xf32>
    %149 = vector.extract_strided_slice %144 {offsets = [0, 256], sizes = [8, 128], strides = [1, 1]} : vector<8x384xf32> to vector<8x128xf32>
    %150 = arith.mulf %148, %131 : vector<8x128xf32>
    %151 = arith.mulf %147, %146 : vector<8x128xf32>
    %152 = arith.addf %150, %151 : vector<8x128xf32>
    %153 = math.tanh %152 : vector<8x128xf32>
    %154 = arith.mulf %149, %153 : vector<8x128xf32>
    %c48_57 = arith.constant 48 : index
    %c0_58 = arith.constant 0 : index
    %155 = vector.load %arg8[%c48_57, %c0_58] : memref<64x128xf32, #tpu.memory_space<vmem>>, vector<8x128xf32>
    tpu.vector_store %arg8[%c48_57, %c0_58], %154 {strides = array<i32>} : memref<64x128xf32, #tpu.memory_space<vmem>>, vector<8x128xf32>,
    %c56 = arith.constant 56 : index
    %c0_59 = arith.constant 0 : index
    %156 = vector.load %arg7[%c56, %c0_59] : memref<64x512xf32, #tpu.memory_space<vmem>>, vector<8x512xf32>
    %c0_60 = arith.constant 0 : index
    %c0_61 = arith.constant 0 : index
    %157 = vector.load %arg2[%c0_60, %c0_61] : memref<128x512xf32, #tpu.memory_space<vmem>>, vector<128x512xf32>
    %cst_62 = arith.constant dense<0.000000e+00> : vector<8x512xf32>
    %158 = tpu.matmul %154, %157, %cst_62 {dimension_numbers = #tpu.dot_dimension_numbers<[1], [0], [0], [1], [0, 0, 1, 1], [], []>} : vector<8x128xf32>, vector<128x512xf32>, vector<8x512xf32> -> vector<8x512xf32>
    %159 = arith.addf %156, %158 : vector<8x512xf32>
    %160 = vector.extract_strided_slice %159 {offsets = [0, 0], sizes = [8, 384], strides = [1, 1]} : vector<8x512xf32> to vector<8x384xf32>
    %161 = arith.negf %160 : vector<8x384xf32>
    %162 = math.exp %161 : vector<8x384xf32>
    %cst_63 = arith.constant 1.000000e+00 : f32
    %163 = vector.broadcast %cst_63 : f32 to vector<8x384xf32>
    %164 = arith.addf %163, %162 : vector<8x384xf32>
    %165 = arith.divf %163, %164 : vector<8x384xf32>
    %166 = vector.extract_strided_slice %159 {offsets = [0, 384], sizes = [8, 128], strides = [1, 1]} : vector<8x512xf32> to vector<8x128xf32>
    %167 = math.tanh %166 : vector<8x128xf32>
    %168 = vector.extract_strided_slice %165 {offsets = [0, 0], sizes = [8, 128], strides = [1, 1]} : vector<8x384xf32> to vector<8x128xf32>
    %169 = vector.extract_strided_slice %165 {offsets = [0, 128], sizes = [8, 128], strides = [1, 1]} : vector<8x384xf32> to vector<8x128xf32>
    %170 = vector.extract_strided_slice %165 {offsets = [0, 256], sizes = [8, 128], strides = [1, 1]} : vector<8x384xf32> to vector<8x128xf32>
    %171 = arith.mulf %169, %152 : vector<8x128xf32>
    %172 = arith.mulf %168, %167 : vector<8x128xf32>
    %173 = arith.addf %171, %172 : vector<8x128xf32>
    %174 = math.tanh %173 : vector<8x128xf32>
    %175 = arith.mulf %170, %174 : vector<8x128xf32>
    %c56_64 = arith.constant 56 : index
    %c0_65 = arith.constant 0 : index
    %176 = vector.load %arg8[%c56_64, %c0_65] : memref<64x128xf32, #tpu.memory_space<vmem>>, vector<8x128xf32>
    tpu.vector_store %arg8[%c56_64, %c0_65], %175 {strides = array<i32>} : memref<64x128xf32, #tpu.memory_space<vmem>>, vector<8x128xf32>,
    %c0_66 = arith.constant 0 : index
    %c0_67 = arith.constant 0 : index
    %177 = vector.load %arg8[%c0_66, %c0_67] : memref<64x128xf32, #tpu.memory_space<vmem>>, vector<64x128xf32>
    %178 = arith.truncf %177 : vector<64x128xf32> to vector<64x128xbf16>
    %c0_68 = arith.constant 0 : index
    %c0_69 = arith.constant 0 : index
    %179 = vector.load %arg4[%c0_68, %c0_69] : memref<128x128xbf16, #tpu.memory_space<vmem>>, vector<128x128xbf16>
    %cst_70 = arith.constant dense<0.000000e+00> : vector<64x128xf32>
    %180 = tpu.matmul %178, %179, %cst_70 {dimension_numbers = #tpu.dot_dimension_numbers<[1], [0], [0], [1], [0, 0, 1, 1], [], []>} : vector<64x128xbf16>, vector<128x128xbf16>, vector<64x128xf32> -> vector<64x128xf32>
    %c0_71 = arith.constant 0 : index
    %c0_72 = arith.constant 0 : index
    %181 = vector.load %arg5[%c0_71, %c0_72] : memref<1x128xf32, #tpu.memory_space<vmem>>, vector<1x128xf32>
    %182 = vector.broadcast %181 : vector<1x128xf32> to vector<64x128xf32>
    %183 = arith.addf %180, %182 : vector<64x128xf32>
    %c0_73 = arith.constant 0 : index
    %c0_74 = arith.constant 0 : index
    %184 = vector.load %arg6[%c0_73, %c0_74] : memref<64x128xf32, #tpu.memory_space<vmem>>, vector<64x128xf32>
    tpu.vector_store %arg6[%c0_73, %c0_74], %183 {strides = array<i32>} : memref<64x128xf32, #tpu.memory_space<vmem>>, vector<64x128xf32>,
    return
  }
}

</mosaic_0001>

<llo_original>
// kernel: tpu_custom_call.1
$region0: #{tpu_custom_call.1}
  #allocation0 [shape = 'u32[]', space=smem, size = 0x4, offset = 0x4, fixed_abs, tag = 'smem constant byte address 0x4 - core index']
  #allocation1 [shape = 'u32[144,128]{1,0:T(1,128)}', space=vmem, size = 0x12000, scoped, tag = 'internal scratch']
  #allocation2 [shape = 'f32[64,512]{1,0:T(8,128)}', space=vmem, size = 0x20000, scoped, tag = 'scratch operand']
  #allocation3 [shape = 'f32[64,128]{1,0:T(8,128)}', space=vmem, size = 0x8000, scoped, tag = 'scratch operand']
  %s0 = inlined_call_operand.hbm [shape: bf16[64,128], index: 0, kind: input, shape index: {}]
  %s1 = inlined_call_operand.hbm [shape: bf16[128,512], index: 1, kind: input, shape index: {}]
  %s2 = inlined_call_operand.hbm [shape: f32[128,512], index: 2, kind: input, shape index: {}]
  %s3 = inlined_call_operand.vmem [shape: f32[1,512], index: 3, kind: input, shape index: {}]
  %s4 = inlined_call_operand.hbm [shape: bf16[128,128], index: 4, kind: input, shape index: {}]
  %s5 = inlined_call_operand.vmem [shape: f32[1,128], index: 5, kind: input, shape index: {}]
  %s6 = inlined_call_operand.hbm [shape: f32[64,128], index: 6, kind: output, shape index: {}]
  %s7 = sld [smem:[#allocation0]]
  $region50: #{tpu_custom_call.1} parent=0
    _
  %s9 = ssub.s32 1, %s7
  %s10 = scalar_select 0, %s9, %s7
  $region1: #{tpu_custom_call.1} parent=0
    #allocation4 [shape = 'u8[16384]{0}', space=vmem, size = 0x4000, scoped, tag = 'input window, operand 0, single buffered']
    #allocation5 [shape = 's32[1]{0}', space=sflag, size = 0x4, scoped, tag = 'scoped memory for tpu_custom_call.1']
    #allocation6 [shape = 's32[1]{0}', space=sflag, size = 0x4, scoped, tag = 'scoped memory for tpu_custom_call.1']
    #allocation7 [shape = 'u8[131072]{0}', space=vmem, size = 0x20000, scoped, tag = 'input window, operand 1, single buffered']
    #allocation8 [shape = 's32[1]{0}', space=sflag, size = 0x4, scoped, tag = 'scoped memory for tpu_custom_call.1']
    #allocation9 [shape = 'u8[262144]{0}', space=vmem, size = 0x40000, scoped, tag = 'input window, operand 2, single buffered']
    #allocation10 [shape = 'u8[32768]{0}', space=vmem, size = 0x8000, scoped, tag = 'input window, operand 4, single buffered']
    #allocation11 [shape = 's32[1]{0}', space=sflag, size = 0x4, scoped, tag = 'scoped memory for tpu_custom_call.1']
    #allocation12 [shape = 'u8[32768]{0}', space=vmem, size = 0x8000, scoped, tag = 'output window, operand 0, single buffered']
    %11 = vsyncpa [#allocation5], 0
    %12 = vsyncpa [#allocation8], 0
    %13 = vsyncpa [#allocation11], 0
    %14 = vsyncpa [#allocation6], 0
    // Predicated region
    $region2: #{tpu_custom_call.1} parent=1 // pred_check
      _
    $region3: #{tpu_custom_call.1} parent=1 // pred_check_branch
      %16 = sbr.rel (0) target = $region5
    $region4: #{tpu_custom_call.1} parent=1 // pred_region
      %s18 = ssub.s32 512, 512
      %19 = vsyncadd [#allocation5], %s18
      %s20 = sshll.u32 [#allocation4], 4
      %s21 = int_to_ptr.vmem [resolvable:$true] %s20
      %26 = dma.hbm_to_vmem [thread:$0]  %s0, 512, %s21, [#allocation5], 64, 64, 4
    $region5: #{tpu_custom_call.1} parent=1 // pred_fallthru
      _
    // Predicated region
    $region6: #{tpu_custom_call.1} parent=1 // pred_check
      _
    $region7: #{tpu_custom_call.1} parent=1 // pred_check_branch
      %28 = sbr.rel (0) target = $region9
    $region8: #{tpu_custom_call.1} parent=1 // pred_region
      %s30 = ssub.s32 4096, 4096
      %31 = vsyncadd [#allocation8], %s30
      %s32 = sshll.u32 [#allocation7], 4
      %s33 = int_to_ptr.vmem [resolvable:$true] %s32
      %38 = dma.hbm_to_vmem [thread:$0]  %s1, 4096, %s33, [#allocation8], 256, 256, 16
    $region9: #{tpu_custom_call.1} parent=1 // pred_fallthru
      _
    // Predicated region
    $region10: #{tpu_custom_call.1} parent=1 // pred_check
      _
    $region11: #{tpu_custom_call.1} parent=1 // pred_check_branch
      %40 = sbr.rel (0) target = $region13
    $region12: #{tpu_custom_call.1} parent=1 // pred_region
      %s42 = ssub.s32 8192, 8192
      %43 = vsyncadd [#allocation8], %s42
      %s44 = sshll.u32 [#allocation9], 4
      %s45 = int_to_ptr.vmem [resolvable:$true] %s44
      %50 = dma.hbm_to_vmem [thread:$0]  %s2, 8192, %s45, [#allocation8], 512, 512, 32
    $region13: #{tpu_custom_call.1} parent=1 // pred_fallthru
      _
    // Predicated region
    $region14: #{tpu_custom_call.1} parent=1 // pred_check
      _
    $region15: #{tpu_custom_call.1} parent=1 // pred_check_branch
      %52 = sbr.rel (0) target = $region17
    $region16: #{tpu_custom_call.1} parent=1 // pred_region
      _
    $region17: #{tpu_custom_call.1} parent=1 // pred_fallthru
      _
    // Predicated region
    $region18: #{tpu_custom_call.1} parent=1 // pred_check
      _
    $region19: #{tpu_custom_call.1} parent=1 // pred_check_branch
      %54 = sbr.rel (0) target = $region21
    $region20: #{tpu_custom_call.1} parent=1 // pred_region
      %s56 = ssub.s32 1024, 1024
      %57 = vsyncadd [#allocation11], %s56
      %s58 = sshll.u32 [#allocation10], 4
      %s59 = int_to_ptr.vmem [resolvable:$true] %s58
      %64 = dma.hbm_to_vmem [thread:$0]  %s4, 1024, %s59, [#allocation11], 64, 64, 4
    $region21: #{tpu_custom_call.1} parent=1 // pred_fallthru
      _
    // Predicated region
    $region22: #{tpu_custom_call.1} parent=1 // pred_check
      _
    $region23: #{tpu_custom_call.1} parent=1 // pred_check_branch
      %66 = sbr.rel (0) target = $region25
    $region24: #{tpu_custom_call.1} parent=1 // pred_region
      _
    $region25: #{tpu_custom_call.1} parent=1 // pred_fallthru
      _
    // Predicated region
    $region26: #{tpu_custom_call.1} parent=1 // pred_check
      _
    $region27: #{tpu_custom_call.1} parent=1 // pred_check_branch
      %68 = sbr.rel (0) target = $region29
    $region28: #{tpu_custom_call.1} parent=1 // pred_region
      %69 = dma.done [#allocation5], 512
    $region29: #{tpu_custom_call.1} parent=1 // pred_fallthru
      _
    // Predicated region
    $region30: #{tpu_custom_call.1} parent=1 // pred_check
      _
    $region31: #{tpu_custom_call.1} parent=1 // pred_check_branch
      %71 = sbr.rel (0) target = $region33
    $region32: #{tpu_custom_call.1} parent=1 // pred_region
      %72 = dma.done [#allocation8], 4096
    $region33: #{tpu_custom_call.1} parent=1 // pred_fallthru
      _
    // Predicated region
    $region34: #{tpu_custom_call.1} parent=1 // pred_check
      _
    $region35: #{tpu_custom_call.1} parent=1 // pred_check_branch
      %74 = sbr.rel (0) target = $region37
    $region36: #{tpu_custom_call.1} parent=1 // pred_region
      %75 = dma.done [#allocation8], 8192
    $region37: #{tpu_custom_call.1} parent=1 // pred_fallthru
      _
    // Predicated region
    $region38: #{tpu_custom_call.1} parent=1 // pred_check
      _
    $region39: #{tpu_custom_call.1} parent=1 // pred_check_branch
      %77 = sbr.rel (0) target = $region41
    $region40: #{tpu_custom_call.1} parent=1 // pred_region
      %78 = dma.done [#allocation11], 1024
    $region41: #{tpu_custom_call.1} parent=1 // pred_fallthru
      _
    %v80 = vld [vmem:[#allocation4] sm:$0xf]
    %v81 = vld [vmem:[#allocation4 + $0x4] sm:$0xf]
    %v82 = vld [vmem:[#allocation4 + $0x8] sm:$0xf]
    %v83 = vld [vmem:[#allocation4 + $0xc] sm:$0xf]
    %v84 = vld [vmem:[#allocation4 + $0x10] sm:$0xf]
    %v85 = vld [vmem:[#allocation4 + $0x14] sm:$0xf]
    %v86 = vld [vmem:[#allocation4 + $0x18] sm:$0xf]
    %v87 = vld [vmem:[#allocation4 + $0x1c] sm:$0xf]
    %v88 = vld [vmem:[#allocation7] sm:$0xff]
    %v89 = vld [vmem:[#allocation7 + $0x8] sm:$0xff]
    %v90 = vld [vmem:[#allocation7 + $0x10] sm:$0xff]
    %v91 = vld [vmem:[#allocation7 + $0x18] sm:$0xff]
    %v92 = vld [vmem:[#allocation7 + $0x20] sm:$0xff]
    %v93 = vld [vmem:[#allocation7 + $0x28] sm:$0xff]
    %v94 = vld [vmem:[#allocation7 + $0x30] sm:$0xff]
    %v95 = vld [vmem:[#allocation7 + $0x38] sm:$0xff]
    %v96 = vld [vmem:[#allocation7 + $0x40] sm:$0xff]
    %v97 = vld [vmem:[#allocation7 + $0x48] sm:$0xff]
    %v98 = vld [vmem:[#allocation7 + $0x50] sm:$0xff]
    %v99 = vld [vmem:[#allocation7 + $0x58] sm:$0xff]
    %v100 = vld [vmem:[#allocation7 + $0x60] sm:$0xff]
    %v101 = vld [vmem:[#allocation7 + $0x68] sm:$0xff]
    %v102 = vld [vmem:[#allocation7 + $0x70] sm:$0xff]
    %v103 = vld [vmem:[#allocation7 + $0x78] sm:$0xff]
    %v104 = vld [vmem:[#allocation7 + $0x80] sm:$0xff]
    %v105 = vld [vmem:[#allocation7 + $0x88] sm:$0xff]
    %v106 = vld [vmem:[#allocation7 + $0x90] sm:$0xff]
    %v107 = vld [vmem:[#allocation7 + $0x98] sm:$0xff]
    %v108 = vld [vmem:[#allocation7 + $0xa0] sm:$0xff]
    %v109 = vld [vmem:[#allocation7 + $0xa8] sm:$0xff]
    %v110 = vld [vmem:[#allocation7 + $0xb0] sm:$0xff]
    %v111 = vld [vmem:[#allocation7 + $0xb8] sm:$0xff]
    %v112 = vld [vmem:[#allocation7 + $0xc0] sm:$0xff]
    %v113 = vld [vmem:[#allocation7 + $0xc8] sm:$0xff]
    %v114 = vld [vmem:[#allocation7 + $0xd0] sm:$0xff]
    %v115 = vld [vmem:[#allocation7 + $0xd8] sm:$0xff]
    %v116 = vld [vmem:[#allocation7 + $0xe0] sm:$0xff]
    %v117 = vld [vmem:[#allocation7 + $0xe8] sm:$0xff]
    %v118 = vld [vmem:[#allocation7 + $0xf0] sm:$0xff]
    %v119 = vld [vmem:[#allocation7 + $0xf8] sm:$0xff]
    %v120 = vld [vmem:[%s3] sm:$0xf]
    %v122 = vlaneseq
    %v123 = vshrl.u32 %v122, 7
    %v124 = vsub.s32 0, %v123
    %v125 = vrot.slane %v120, %v124
    %v126 = vlaneseq
    %v127 = vshrl.u32 %v126, 7
    %v128 = vsub.s32 1, %v127
    %v129 = vrot.slane %v120, %v128
    %v130 = vlaneseq
    %v131 = vshrl.u32 %v130, 7
    %v132 = vsub.s32 2, %v131
    %v133 = vrot.slane %v120, %v132
    %v134 = vlaneseq
    %v135 = vshrl.u32 %v134, 7
    %v136 = vsub.s32 3, %v135
    %v137 = vrot.slane %v120, %v136
    %v150 = vunpack.c.l.b16 %v80
    %v151 = vunpack.c.l.b16 %v81
    %v152 = vunpack.c.l.b16 %v82
    %v153 = vunpack.c.l.b16 %v83
    %v154 = vunpack.c.l.b16 %v84
    %v155 = vunpack.c.l.b16 %v85
    %v156 = vunpack.c.l.b16 %v86
    %v157 = vunpack.c.l.b16 %v87
    %v158 = vpack.c.b16 %v151, %v150
    %v159 = vpack.c.b16 %v153, %v152
    %v160 = vpack.c.b16 %v155, %v154
    %v161 = vpack.c.b16 %v157, %v156
    %v198 = vunpack.c.l.b16 %v88
    %v199 = vunpack.c.h.b16 %v88
    %v200 = vunpack.c.l.b16 %v89
    %v201 = vunpack.c.h.b16 %v89
    %v202 = vunpack.c.l.b16 %v90
    %v203 = vunpack.c.h.b16 %v90
    %v204 = vunpack.c.l.b16 %v91
    %v205 = vunpack.c.h.b16 %v91
    %v206 = vunpack.c.l.b16 %v92
    %v207 = vunpack.c.h.b16 %v92
    %v208 = vunpack.c.l.b16 %v93
    %v209 = vunpack.c.h.b16 %v93
    %v210 = vunpack.c.l.b16 %v94
    %v211 = vunpack.c.h.b16 %v94
    %v212 = vunpack.c.l.b16 %v95
    %v213 = vunpack.c.h.b16 %v95
    %v214 = vunpack.c.l.b16 %v96
    %v215 = vunpack.c.h.b16 %v96
    %v216 = vunpack.c.l.b16 %v97
    %v217 = vunpack.c.h.b16 %v97
    %v218 = vunpack.c.l.b16 %v98
    %v219 = vunpack.c.h.b16 %v98
    %v220 = vunpack.c.l.b16 %v99
    %v221 = vunpack.c.h.b16 %v99
    %v222 = vunpack.c.l.b16 %v100
    %v223 = vunpack.c.h.b16 %v100
    %v224 = vunpack.c.l.b16 %v101
    %v225 = vunpack.c.h.b16 %v101
    %v226 = vunpack.c.l.b16 %v102
    %v227 = vunpack.c.h.b16 %v102
    %v228 = vunpack.c.l.b16 %v103
    %v229 = vunpack.c.h.b16 %v103
    %v230 = vunpack.c.l.b16 %v104
    %v231 = vunpack.c.h.b16 %v104
    %v232 = vunpack.c.l.b16 %v105
    %v233 = vunpack.c.h.b16 %v105
    %v234 = vunpack.c.l.b16 %v106
    %v235 = vunpack.c.h.b16 %v106
    %v236 = vunpack.c.l.b16 %v107
    %v237 = vunpack.c.h.b16 %v107
    %v238 = vunpack.c.l.b16 %v108
    %v239 = vunpack.c.h.b16 %v108
    %v240 = vunpack.c.l.b16 %v109
    %v241 = vunpack.c.h.b16 %v109
    %v242 = vunpack.c.l.b16 %v110
    %v243 = vunpack.c.h.b16 %v110
    %v244 = vunpack.c.l.b16 %v111
    %v245 = vunpack.c.h.b16 %v111
    %v246 = vunpack.c.l.b16 %v112
    %v247 = vunpack.c.h.b16 %v112
    %v248 = vunpack.c.l.b16 %v113
    %v249 = vunpack.c.h.b16 %v113
    %v250 = vunpack.c.l.b16 %v114
    %v251 = vunpack.c.h.b16 %v114
    %v252 = vunpack.c.l.b16 %v115
    %v253 = vunpack.c.h.b16 %v115
    %v254 = vunpack.c.l.b16 %v116
    %v255 = vunpack.c.h.b16 %v116
    %v256 = vunpack.c.l.b16 %v117
    %v257 = vunpack.c.h.b16 %v117
    %v258 = vunpack.c.l.b16 %v118
    %v259 = vunpack.c.h.b16 %v118
    %v260 = vunpack.c.l.b16 %v119
    %v261 = vunpack.c.h.b16 %v119
    %v262 = vpack.c.b16 %v202, %v198
    %v263 = vpack.c.b16 %v203, %v199
    %v264 = vpack.c.b16 %v204, %v200
    %v265 = vpack.c.b16 %v205, %v201
    %v266 = vpack.c.b16 %v210, %v206
    %v267 = vpack.c.b16 %v211, %v207
    %v268 = vpack.c.b16 %v212, %v208
    %v269 = vpack.c.b16 %v213, %v209
    %v270 = vpack.c.b16 %v218, %v214
    %v271 = vpack.c.b16 %v219, %v215
    %v272 = vpack.c.b16 %v220, %v216
    %v273 = vpack.c.b16 %v221, %v217
    %v274 = vpack.c.b16 %v226, %v222
    %v275 = vpack.c.b16 %v227, %v223
    %v276 = vpack.c.b16 %v228, %v224
    %v277 = vpack.c.b16 %v229, %v225
    %v278 = vpack.c.b16 %v234, %v230
    %v279 = vpack.c.b16 %v235, %v231
    %v280 = vpack.c.b16 %v236, %v232
    %v281 = vpack.c.b16 %v237, %v233
    %v282 = vpack.c.b16 %v242, %v238
    %v283 = vpack.c.b16 %v243, %v239
    %v284 = vpack.c.b16 %v244, %v240
    %v285 = vpack.c.b16 %v245, %v241
    %v286 = vpack.c.b16 %v250, %v246
    %v287 = vpack.c.b16 %v251, %v247
    %v288 = vpack.c.b16 %v252, %v248
    %v289 = vpack.c.b16 %v253, %v249
    %v290 = vpack.c.b16 %v258, %v254
    %v291 = vpack.c.b16 %v259, %v255
    %v292 = vpack.c.b16 %v260, %v256
    %v293 = vpack.c.b16 %v261, %v257
    %326 = vmatprep.subr.bf16.mxu0 %v263
    %327 = vmatpush1.bf16.msra.mxu0 %v262
    %328 = vmatprep.subr.bf16.mxu0 %v267
    %329 = vmatpush1.bf16.msra.mxu0 %v266
    %330 = vmatprep.subr.bf16.mxu0 %v271
    %331 = vmatpush1.bf16.msra.mxu0 %v270
    %332 = vmatprep.subr.bf16.mxu0 %v275
    %333 = vmatpush1.bf16.msra.mxu0 %v274
    %334 = vmatprep.subr.bf16.mxu0 %v279
    %335 = vmatpush1.bf16.msra.mxu0 %v278
    %336 = vmatprep.subr.bf16.mxu0 %v283
    %337 = vmatpush1.bf16.msra.mxu0 %v282
    %338 = vmatprep.subr.bf16.mxu0 %v287
    %339 = vmatpush1.bf16.msra.mxu0 %v286
    %340 = vmatprep.subr.bf16.mxu0 %v291
    %341 = vmatpush1.bf16.msra.mxu0 %v290
    %342 = vmatprep.subr.bf16.mxu0 0
    %343 = vmatpush1.bf16.msra.mxu0 0
    %344 = vmatprep.subr.bf16.mxu0 0
    %345 = vmatpush1.bf16.msra.mxu0 0
    %346 = vmatprep.subr.bf16.mxu0 0
    %347 = vmatpush1.bf16.msra.mxu0 0
    %348 = vmatprep.subr.bf16.mxu0 0
    %349 = vmatpush1.bf16.msra.mxu0 0
    %350 = vmatprep.subr.bf16.mxu0 0
    %351 = vmatpush1.bf16.msra.mxu0 0
    %352 = vmatprep.subr.bf16.mxu0 0
    %353 = vmatpush1.bf16.msra.mxu0 0
    %354 = vmatprep.subr.bf16.mxu0 0
    %355 = vmatpush1.bf16.msra.mxu0 0
    %356 = vmatprep.subr.bf16.mxu0 0
    %357 = vmatpush1.bf16.msra.mxu0 0
    %358 = vmatprep.mubr.bf16.mxu0 0
    %359 = vmatmul.mubr.bf16.gmra.mrb[0].mxu0 %v158
    %v360 = vpop.f32.mrb[0].mxu0
    %v361 = vadd.f32 %v125, %v360
    %v362 = vpop.f32.mrb[0].mxu0
    %v363 = vadd.f32 %v129, %v362
    %v364 = vpop.f32.mrb[0].mxu0
    %v365 = vadd.f32 %v125, %v364
    %v366 = vpop.f32.mrb[0].mxu0
    %v367 = vadd.f32 %v129, %v366
    %368 = vmatprep.mubr.bf16.mxu0 0
    %369 = vmatmul.mubr.bf16.gmra.mrb[0].mxu0 %v159
    %v370 = vpop.f32.mrb[0].mxu0
    %v371 = vadd.f32 %v125, %v370
    %v372 = vpop.f32.mrb[0].mxu0
    %v373 = vadd.f32 %v129, %v372
    %v374 = vpop.f32.mrb[0].mxu0
    %v375 = vadd.f32 %v125, %v374
    %v376 = vpop.f32.mrb[0].mxu0
    %v377 = vadd.f32 %v129, %v376
    %378 = vmatprep.mubr.bf16.mxu0 0
    %379 = vmatmul.mubr.bf16.gmra.mrb[0].mxu0 %v160
    %v380 = vpop.f32.mrb[0].mxu0
    %v381 = vadd.f32 %v125, %v380
    %v382 = vpop.f32.mrb[0].mxu0
    %v383 = vadd.f32 %v129, %v382
    %v384 = vpop.f32.mrb[0].mxu0
    %v385 = vadd.f32 %v125, %v384
    %v386 = vpop.f32.mrb[0].mxu0
    %v387 = vadd.f32 %v129, %v386
    %388 = vmatprep.mubr.bf16.mxu0 0
    %389 = vmatmul.mubr.bf16.gmra.mrb[0].mxu0 %v161
    %v390 = vpop.f32.mrb[0].mxu0
    %v391 = vadd.f32 %v125, %v390
    %v392 = vpop.f32.mrb[0].mxu0
    %v393 = vadd.f32 %v129, %v392
    %v394 = vpop.f32.mrb[0].mxu0
    %v395 = vadd.f32 %v125, %v394
    %v396 = vpop.f32.mrb[0].mxu0
    %v397 = vadd.f32 %v129, %v396
    %398 = vdwg.mxu0
    %399 = vmatprep.subr.bf16.mxu0 %v265
    %400 = vmatpush1.bf16.msra.mxu0 %v264
    %401 = vmatprep.subr.bf16.mxu0 %v269
    %402 = vmatpush1.bf16.msra.mxu0 %v268
    %403 = vmatprep.subr.bf16.mxu0 %v273
    %404 = vmatpush1.bf16.msra.mxu0 %v272
    %405 = vmatprep.subr.bf16.mxu0 %v277
    %406 = vmatpush1.bf16.msra.mxu0 %v276
    %407 = vmatprep.subr.bf16.mxu0 %v281
    %408 = vmatpush1.bf16.msra.mxu0 %v280
    %409 = vmatprep.subr.bf16.mxu0 %v285
    %410 = vmatpush1.bf16.msra.mxu0 %v284
    %411 = vmatprep.subr.bf16.mxu0 %v289
    %412 = vmatpush1.bf16.msra.mxu0 %v288
    %413 = vmatprep.subr.bf16.mxu0 %v293
    %414 = vmatpush1.bf16.msra.mxu0 %v292
    %415 = vmatprep.subr.bf16.mxu0 0
    %416 = vmatpush1.bf16.msra.mxu0 0
    %417 = vmatprep.subr.bf16.mxu0 0
    %418 = vmatpush1.bf16.msra.mxu0 0
    %419 = vmatprep.subr.bf16.mxu0 0
    %420 = vmatpush1.bf16.msra.mxu0 0
    %421 = vmatprep.subr.bf16.mxu0 0
    %422 = vmatpush1.bf16.msra.mxu0 0
    %423 = vmatprep.subr.bf16.mxu0 0
    %424 = vmatpush1.bf16.msra.mxu0 0
    %425 = vmatprep.subr.bf16.mxu0 0
    %426 = vmatpush1.bf16.msra.mxu0 0
    %427 = vmatprep.subr.bf16.mxu0 0
    %428 = vmatpush1.bf16.msra.mxu0 0
    %429 = vmatprep.subr.bf16.mxu0 0
    %430 = vmatpush1.bf16.msra.mxu0 0
    %431 = vmatprep.mubr.bf16.mxu0 0
    %432 = vmatmul.mubr.bf16.gmra.mrb[0].mxu0 %v158
    %v433 = vpop.f32.mrb[0].mxu0
    %v434 = vadd.f32 %v133, %v433
    %v435 = vpop.f32.mrb[0].mxu0
    %v436 = vadd.f32 %v137, %v435
    %v437 = vpop.f32.mrb[0].mxu0
    %v438 = vadd.f32 %v133, %v437
    %v439 = vpop.f32.mrb[0].mxu0
    %v440 = vadd.f32 %v137, %v439
    %441 = vmatprep.mubr.bf16.mxu0 0
    %442 = vmatmul.mubr.bf16.gmra.mrb[0].mxu0 %v159
    %v443 = vpop.f32.mrb[0].mxu0
    %v444 = vadd.f32 %v133, %v443
    %v445 = vpop.f32.mrb[0].mxu0
    %v446 = vadd.f32 %v137, %v445
    %v447 = vpop.f32.mrb[0].mxu0
    %v448 = vadd.f32 %v133, %v447
    %v449 = vpop.f32.mrb[0].mxu0
    %v450 = vadd.f32 %v137, %v449
    %451 = vmatprep.mubr.bf16.mxu0 0
    %452 = vmatmul.mubr.bf16.gmra.mrb[0].mxu0 %v160
    %v453 = vpop.f32.mrb[0].mxu0
    %v454 = vadd.f32 %v133, %v453
    %v455 = vpop.f32.mrb[0].mxu0
    %v456 = vadd.f32 %v137, %v455
    %v457 = vpop.f32.mrb[0].mxu0
    %v458 = vadd.f32 %v133, %v457
    %v459 = vpop.f32.mrb[0].mxu0
    %v460 = vadd.f32 %v137, %v459
    %461 = vmatprep.mubr.bf16.mxu0 0
    %462 = vmatmul.mubr.bf16.gmra.mrb[0].mxu0 %v161
    %v463 = vpop.f32.mrb[0].mxu0
    %v464 = vadd.f32 %v133, %v463
    %v465 = vpop.f32.mrb[0].mxu0
    %v466 = vadd.f32 %v137, %v465
    %v467 = vpop.f32.mrb[0].mxu0
    %v468 = vadd.f32 %v133, %v467
    %v469 = vpop.f32.mrb[0].mxu0
    %v470 = vadd.f32 %v137, %v469
    %471 = vdwg.mxu0
    %472 = vst [vmem:[#allocation2] sm:$0xff] %v361
    %473 = vst [vmem:[#allocation2 + $0x8] sm:$0xff] %v363
    %474 = vst [vmem:[#allocation2 + $0x10] sm:$0xff] %v434
    %475 = vst [vmem:[#allocation2 + $0x18] sm:$0xff] %v436
    %476 = vst [vmem:[#allocation2 + $0x20] sm:$0xff] %v365
    %477 = vst [vmem:[#allocation2 + $0x28] sm:$0xff] %v367
    %478 = vst [vmem:[#allocation2 + $0x30] sm:$0xff] %v438
    %479 = vst [vmem:[#allocation2 + $0x38] sm:$0xff] %v440
    %480 = vst [vmem:[#allocation2 + $0x40] sm:$0xff] %v371
    %481 = vst [vmem:[#allocation2 + $0x48] sm:$0xff] %v373
    %482 = vst [vmem:[#allocation2 + $0x50] sm:$0xff] %v444
    %483 = vst [vmem:[#allocation2 + $0x58] sm:$0xff] %v446
    %484 = vst [vmem:[#allocation2 + $0x60] sm:$0xff] %v375
    %485 = vst [vmem:[#allocation2 + $0x68] sm:$0xff] %v377
    %486 = vst [vmem:[#allocation2 + $0x70] sm:$0xff] %v448
    %487 = vst [vmem:[#allocation2 + $0x78] sm:$0xff] %v450
    %488 = vst [vmem:[#allocation2 + $0x80] sm:$0xff] %v381
    %489 = vst [vmem:[#allocation2 + $0x88] sm:$0xff] %v383
    %490 = vst [vmem:[#allocation2 + $0x90] sm:$0xff] %v454
    %491 = vst [vmem:[#allocation2 + $0x98] sm:$0xff] %v456
    %492 = vst [vmem:[#allocation2 + $0xa0] sm:$0xff] %v385
    %493 = vst [vmem:[#allocation2 + $0xa8] sm:$0xff] %v387
    %494 = vst [vmem:[#allocation2 + $0xb0] sm:$0xff] %v458
    %495 = vst [vmem:[#allocation2 + $0xb8] sm:$0xff] %v460
    %496 = vst [vmem:[#allocation2 + $0xc0] sm:$0xff] %v391
    %497 = vst [vmem:[#allocation2 + $0xc8] sm:$0xff] %v393
    %498 = vst [vmem:[#allocation2 + $0xd0] sm:$0xff] %v464
    %499 = vst [vmem:[#allocation2 + $0xd8] sm:$0xff] %v466
    %500 = vst [vmem:[#allocation2 + $0xe0] sm:$0xff] %v395
    %501 = vst [vmem:[#allocation2 + $0xe8] sm:$0xff] %v397
    %502 = vst [vmem:[#allocation2 + $0xf0] sm:$0xff] %v468
    %503 = vst [vmem:[#allocation2 + $0xf8] sm:$0xff] %v470
    %v504 = vld [vmem:[#allocation2] sm:$0xff]
    %v505 = vld [vmem:[#allocation2 + $0x8] sm:$0xff]
    %v506 = vld [vmem:[#allocation2 + $0x10] sm:$0xff]
    %v507 = vld [vmem:[#allocation2 + $0x18] sm:$0xff]
    %v508 = vld [vmem:[#allocation9] sm:$0xff]
    %v509 = vld [vmem:[#allocation9 + $0x8] sm:$0xff]
    %v510 = vld [vmem:[#allocation9 + $0x10] sm:$0xff]
    %v511 = vld [vmem:[#allocation9 + $0x18] sm:$0xff]
    %v512 = vld [vmem:[#allocation9 + $0x20] sm:$0xff]
    %v513 = vld [vmem:[#allocation9 + $0x28] sm:$0xff]
    %v514 = vld [vmem:[#allocation9 + $0x30] sm:$0xff]
    %v515 = vld [vmem:[#allocation9 + $0x38] sm:$0xff]
    %v516 = vld [vmem:[#allocation9 + $0x40] sm:$0xff]
    %v517 = vld [vmem:[#allocation9 + $0x48] sm:$0xff]
    %v518 = vld [vmem:[#allocation9 + $0x50] sm:$0xff]
    %v519 = vld [vmem:[#allocation9 + $0x58] sm:$0xff]
    %v520 = vld [vmem:[#allocation9 + $0x60] sm:$0xff]
    %v521 = vld [vmem:[#allocation9 + $0x68] sm:$0xff]
    %v522 = vld [vmem:[#allocation9 + $0x70] sm:$0xff]
    %v523 = vld [vmem:[#allocation9 + $0x78] sm:$0xff]
    %v524 = vld [vmem:[#allocation9 + $0x80] sm:$0xff]
    %v525 = vld [vmem:[#allocation9 + $0x88] sm:$0xff]
    %v526 = vld [vmem:[#allocation9 + $0x90] sm:$0xff]
    %v527 = vld [vmem:[#allocation9 + $0x98] sm:$0xff]
    %v528 = vld [vmem:[#allocation9 + $0xa0] sm:$0xff]
    %v529 = vld [vmem:[#allocation9 + $0xa8] sm:$0xff]
    %v530 = vld [vmem:[#allocation9 + $0xb0] sm:$0xff]
    %v531 = vld [vmem:[#allocation9 + $0xb8] sm:$0xff]
    %v532 = vld [vmem:[#allocation9 + $0xc0] sm:$0xff]
    %v533 = vld [vmem:[#allocation9 + $0xc8] sm:$0xff]
    %v534 = vld [vmem:[#allocation9 + $0xd0] sm:$0xff]
    %v535 = vld [vmem:[#allocation9 + $0xd8] sm:$0xff]
    %v536 = vld [vmem:[#allocation9 + $0xe0] sm:$0xff]
    %v537 = vld [vmem:[#allocation9 + $0xe8] sm:$0xff]
    %v538 = vld [vmem:[#allocation9 + $0xf0] sm:$0xff]
    %v539 = vld [vmem:[#allocation9 + $0xf8] sm:$0xff]
    %v540 = vld [vmem:[#allocation9 + $0x100] sm:$0xff]
    %v541 = vld [vmem:[#allocation9 + $0x108] sm:$0xff]
    %v542 = vld [vmem:[#allocation9 + $0x110] sm:$0xff]
    %v543 = vld [vmem:[#allocation9 + $0x118] sm:$0xff]
    %v544 = vld [vmem:[#allocation9 + $0x120] sm:$0xff]
    %v545 = vld [vmem:[#allocation9 + $0x128] sm:$0xff]
    %v546 = vld [vmem:[#allocation9 + $0x130] sm:$0xff]
    %v547 = vld [vmem:[#allocation9 + $0x138] sm:$0xff]
    %v548 = vld [vmem:[#allocation9 + $0x140] sm:$0xff]
    %v549 = vld [vmem:[#allocation9 + $0x148] sm:$0xff]
    %v550 = vld [vmem:[#allocation9 + $0x150] sm:$0xff]
    %v551 = vld [vmem:[#allocation9 + $0x158] sm:$0xff]
    %v552 = vld [vmem:[#allocation9 + $0x160] sm:$0xff]
    %v553 = vld [vmem:[#allocation9 + $0x168] sm:$0xff]
    %v554 = vld [vmem:[#allocation9 + $0x170] sm:$0xff]
    %v555 = vld [vmem:[#allocation9 + $0x178] sm:$0xff]
    %v556 = vld [vmem:[#allocation9 + $0x180] sm:$0xff]
    %v557 = vld [vmem:[#allocation9 + $0x188] sm:$0xff]
    %v558 = vld [vmem:[#allocation9 + $0x190] sm:$0xff]
    %v559 = vld [vmem:[#allocation9 + $0x198] sm:$0xff]
    %v560 = vld [vmem:[#allocation9 + $0x1a0] sm:$0xff]
    %v561 = vld [vmem:[#allocation9 + $0x1a8] sm:$0xff]
    %v562 = vld [vmem:[#allocation9 + $0x1b0] sm:$0xff]
    %v563 = vld [vmem:[#allocation9 + $0x1b8] sm:$0xff]
    %v564 = vld [vmem:[#allocation9 + $0x1c0] sm:$0xff]
    %v565 = vld [vmem:[#allocation9 + $0x1c8] sm:$0xff]
    %v566 = vld [vmem:[#allocation9 + $0x1d0] sm:$0xff]
    %v567 = vld [vmem:[#allocation9 + $0x1d8] sm:$0xff]
    %v568 = vld [vmem:[#allocation9 + $0x1e0] sm:$0xff]
    %v569 = vld [vmem:[#allocation9 + $0x1e8] sm:$0xff]
    %v570 = vld [vmem:[#allocation9 + $0x1f0] sm:$0xff]
    %v571 = vld [vmem:[#allocation9 + $0x1f8] sm:$0xff]
    %572 = vmatprep.subr.mxu0 %v509
    %573 = vmatpush1.msra.mxu0 %v508
    %574 = vmatprep.subr.mxu0 %v513
    %575 = vmatpush1.msra.mxu0 %v512
    %576 = vmatprep.subr.mxu0 %v517
    %577 = vmatpush1.msra.mxu0 %v516
    %578 = vmatprep.subr.mxu0 %v521
    %579 = vmatpush1.msra.mxu0 %v520
    %580 = vmatprep.subr.mxu0 %v525
    %581 = vmatpush1.msra.mxu0 %v524
    %582 = vmatprep.subr.mxu0 %v529
    %583 = vmatpush1.msra.mxu0 %v528
    %584 = vmatprep.subr.mxu0 %v533
    %585 = vmatpush1.msra.mxu0 %v532
    %586 = vmatprep.subr.mxu0 %v537
    %587 = vmatpush1.msra.mxu0 %v536
    %588 = vmatprep.subr.mxu0 %v541
    %589 = vmatpush1.msra.mxu0 %v540
    %590 = vmatprep.subr.mxu0 %v545
    %591 = vmatpush1.msra.mxu0 %v544
    %592 = vmatprep.subr.mxu0 %v549
    %593 = vmatpush1.msra.mxu0 %v548
    %594 = vmatprep.subr.mxu0 %v553
    %595 = vmatpush1.msra.mxu0 %v552
    %596 = vmatprep.subr.mxu0 %v557
    %597 = vmatpush1.msra.mxu0 %v556
    %598 = vmatprep.subr.mxu0 %v561
    %599 = vmatpush1.msra.mxu0 %v560
    %600 = vmatprep.subr.mxu0 %v565
    %601 = vmatpush1.msra.mxu0 %v564
    %602 = vmatprep.subr.mxu0 %v569
    %603 = vmatpush1.msra.mxu0 %v568
    %604 = vmatprep.subr.mxu0 0.0
    %605 = vmatpush1.msra.mxu0 0.0
    %606 = vmatprep.subr.mxu0 0.0
    %607 = vmatpush1.msra.mxu0 0.0
    %608 = vmatprep.subr.mxu0 0.0
    %609 = vmatpush1.msra.mxu0 0.0
    %610 = vmatprep.subr.mxu0 0.0
    %611 = vmatpush1.msra.mxu0 0.0
    %612 = vmatprep.subr.mxu0 0.0
    %613 = vmatpush1.msra.mxu0 0.0
    %614 = vmatprep.subr.mxu0 0.0
    %615 = vmatpush1.msra.mxu0 0.0
    %616 = vmatprep.subr.mxu0 0.0
    %617 = vmatpush1.msra.mxu0 0.0
    %618 = vmatprep.subr.mxu0 0.0
    %619 = vmatpush1.msra.mxu0 0.0
    %620 = vmatprep.subr.mxu0 0.0
    %621 = vmatpush1.msra.mxu0 0.0
    %622 = vmatprep.subr.mxu0 0.0
    %623 = vmatpush1.msra.mxu0 0.0
    %624 = vmatprep.subr.mxu0 0.0
    %625 = vmatpush1.msra.mxu0 0.0
    %626 = vmatprep.subr.mxu0 0.0
    %627 = vmatpush1.msra.mxu0 0.0
    %628 = vmatprep.subr.mxu0 0.0
    %629 = vmatpush1.msra.mxu0 0.0
    %630 = vmatprep.subr.mxu0 0.0
    %631 = vmatpush1.msra.mxu0 0.0
    %632 = vmatprep.subr.mxu0 0.0
    %633 = vmatpush1.msra.mxu0 0.0
    %634 = vmatprep.subr.mxu0 0.0
    %635 = vmatpush1.msra.mxu0 0.0
    %636 = vmatprep.mubr.f32.mxu0 0.0
    %637 = vmatmul.mubr.f32.gmra.mrb[0].mxu0 0.0
    %v638 = vpop.f32.mrb[0].mxu0
    %v639 = vadd.f32 0.0, %v638
    %v640 = vpop.f32.mrb[0].mxu0
    %v641 = vadd.f32 0.0, %v640
    %642 = vdwg.mxu0
    %643 = vmatprep.subr.mxu0 %v511
    %644 = vmatpush1.msra.mxu0 %v510
    %645 = vmatprep.subr.mxu0 %v515
    %646 = vmatpush1.msra.mxu0 %v514
    %647 = vmatprep.subr.mxu0 %v519
    %648 = vmatpush1.msra.mxu0 %v518
    %649 = vmatprep.subr.mxu0 %v523
    %650 = vmatpush1.msra.mxu0 %v522
    %651 = vmatprep.subr.mxu0 %v527
    %652 = vmatpush1.msra.mxu0 %v526
    %653 = vmatprep.subr.mxu0 %v531
    %654 = vmatpush1.msra.mxu0 %v530
    %655 = vmatprep.subr.mxu0 %v535
    %656 = vmatpush1.msra.mxu0 %v534
    %657 = vmatprep.subr.mxu0 %v539
    %658 = vmatpush1.msra.mxu0 %v538
    %659 = vmatprep.subr.mxu0 %v543
    %660 = vmatpush1.msra.mxu0 %v542
    %661 = vmatprep.subr.mxu0 %v547
    %662 = vmatpush1.msra.mxu0 %v546
    %663 = vmatprep.subr.mxu0 %v551
    %664 = vmatpush1.msra.mxu0 %v550
    %665 = vmatprep.subr.mxu0 %v555
    %666 = vmatpush1.msra.mxu0 %v554
    %667 = vmatprep.subr.mxu0 %v559
    %668 = vmatpush1.msra.mxu0 %v558
    %669 = vmatprep.subr.mxu0 %v563
    %670 = vmatpush1.msra.mxu0 %v562
    %671 = vmatprep.subr.mxu0 %v567
    %672 = vmatpush1.msra.mxu0 %v566
    %673 = vmatprep.subr.mxu0 %v571
    %674 = vmatpush1.msra.mxu0 %v570
    %675 = vmatprep.subr.mxu0 0.0
    %676 = vmatpush1.msra.mxu0 0.0
    %677 = vmatprep.subr.mxu0 0.0
    %678 = vmatpush1.msra.mxu0 0.0
    %679 = vmatprep.subr.mxu0 0.0
    %680 = vmatpush1.msra.mxu0 0.0
    %681 = vmatprep.subr.mxu0 0.0
    %682 = vmatpush1.msra.mxu0 0.0
    %683 = vmatprep.subr.mxu0 0.0
    %684 = vmatpush1.msra.mxu0 0.0
    %685 = vmatprep.subr.mxu0 0.0
    %686 = vmatpush1.msra.mxu0 0.0
    %687 = vmatprep.subr.mxu0 0.0
    %688 = vmatpush1.msra.mxu0 0.0
    %689 = vmatprep.subr.mxu0 0.0
    %690 = vmatpush1.msra.mxu0 0.0
    %691 = vmatprep.subr.mxu0 0.0
    %692 = vmatpush1.msra.mxu0 0.0
    %693 = vmatprep.subr.mxu0 0.0
    %694 = vmatpush1.msra.mxu0 0.0
    %695 = vmatprep.subr.mxu0 0.0
    %696 = vmatpush1.msra.mxu0 0.0
    %697 = vmatprep.subr.mxu0 0.0
    %698 = vmatpush1.msra.mxu0 0.0
    %699 = vmatprep.subr.mxu0 0.0
    %700 = vmatpush1.msra.mxu0 0.0
    %701 = vmatprep.subr.mxu0 0.0
    %702 = vmatpush1.msra.mxu0 0.0
    %703 = vmatprep.subr.mxu0 0.0
    %704 = vmatpush1.msra.mxu0 0.0
    %705 = vmatprep.subr.mxu0 0.0
    %706 = vmatpush1.msra.mxu0 0.0
    %707 = vmatprep.mubr.f32.mxu0 0.0
    %708 = vmatmul.mubr.f32.gmra.mrb[0].mxu0 0.0
    %v709 = vpop.f32.mrb[0].mxu0
    %v710 = vadd.f32 0.0, %v709
    %v711 = vpop.f32.mrb[0].mxu0
    %v712 = vadd.f32 0.0, %v711
    %713 = vdwg.mxu0
    %v714 = vadd.f32 %v504, %v639
    %v715 = vadd.f32 %v505, %v641
    %v716 = vadd.f32 %v506, %v710
    %v717 = vadd.f32 %v507, %v712
    %v718 = vxor.u32 %v714, 2147483648
    %v719 = vxor.u32 %v715, 2147483648
    %v720 = vxor.u32 %v716, 2147483648
    %v721 = vmul.f32 %v718, 1.442695
    %v722 = vpow.pop %v721
    %v723 = vmul.f32 %v719, 1.442695
    %v724 = vpow.pop %v723
    %v725 = vmul.f32 %v720, 1.442695
    %v726 = vpow.pop %v725
    %v727 = vadd.f32 %v722, 1.0
    %v728 = vadd.f32 %v724, 1.0
    %v729 = vadd.f32 %v726, 1.0
    %v730 = vrcp.pop %v727
    %v731 = vmul.f32 1.0, %v730
    %v732 = vrcp.pop %v728
    %v733 = vmul.f32 1.0, %v732
    %v734 = vrcp.pop %v729
    %v735 = vmul.f32 1.0, %v734
    %v736 = vtanh.pop %v717
    %v737 = vmul.f32 %v733, 0.0
    %v738 = vmul.f32 %v731, %v736
    %v739 = vadd.f32 %v737, %v738
    %v740 = vtanh.pop %v739
    %v741 = vmul.f32 %v735, %v740
    %742 = vst [vmem:[#allocation3] sm:$0xff] %v741
    %v743 = vld [vmem:[#allocation2 + $0x20] sm:$0xff]
    %v744 = vld [vmem:[#allocation2 + $0x28] sm:$0xff]
    %v745 = vld [vmem:[#allocation2 + $0x30] sm:$0xff]
    %v746 = vld [vmem:[#allocation2 + $0x38] sm:$0xff]
    %v747 = vld [vmem:[#allocation9] sm:$0xff]
    %v748 = vld [vmem:[#allocation9 + $0x8] sm:$0xff]
    %v749 = vld [vmem:[#allocation9 + $0x10] sm:$0xff]
    %v750 = vld [vmem:[#allocation9 + $0x18] sm:$0xff]
    %v751 = vld [vmem:[#allocation9 + $0x20] sm:$0xff]
    %v752 = vld [vmem:[#allocation9 + $0x28] sm:$0xff]
    %v753 = vld [vmem:[#allocation9 + $0x30] sm:$0xff]
    %v754 = vld [vmem:[#allocation9 + $0x38] sm:$0xff]
    %v755 = vld [vmem:[#allocation9 + $0x40] sm:$0xff]
    %v756 = vld [vmem:[#allocation9 + $0x48] sm:$0xff]
    %v757 = vld [vmem:[#allocation9 + $0x50] sm:$0xff]
    %v758 = vld [vmem:[#allocation9 + $0x58] sm:$0xff]
    %v759 = vld [vmem:[#allocation9 + $0x60] sm:$0xff]
    %v760 = vld [vmem:[#allocation9 + $0x68] sm:$0xff]
    %v761 = vld [vmem:[#allocation9 + $0x70] sm:$0xff]
    %v762 = vld [vmem:[#allocation9 + $0x78] sm:$0xff]
    %v763 = vld [vmem:[#allocation9 + $0x80] sm:$0xff]
    %v764 = vld [vmem:[#allocation9 + $0x88] sm:$0xff]
    %v765 = vld [vmem:[#allocation9 + $0x90] sm:$0xff]
    %v766 = vld [vmem:[#allocation9 + $0x98] sm:$0xff]
    %v767 = vld [vmem:[#allocation9 + $0xa0] sm:$0xff]
    %v768 = vld [vmem:[#allocation9 + $0xa8] sm:$0xff]
    %v769 = vld [vmem:[#allocation9 + $0xb0] sm:$0xff]
    %v770 = vld [vmem:[#allocation9 + $0xb8] sm:$0xff]
    %v771 = vld [vmem:[#allocation9 + $0xc0] sm:$0xff]
    %v772 = vld [vmem:[#allocation9 + $0xc8] sm:$0xff]
    %v773 = vld [vmem:[#allocation9 + $0xd0] sm:$0xff]
    %v774 = vld [vmem:[#allocation9 + $0xd8] sm:$0xff]
    %v775 = vld [vmem:[#allocation9 + $0xe0] sm:$0xff]
    %v776 = vld [vmem:[#allocation9 + $0xe8] sm:$0xff]
    %v777 = vld [vmem:[#allocation9 + $0xf0] sm:$0xff]
    %v778 = vld [vmem:[#allocation9 + $0xf8] sm:$0xff]
    %v779 = vld [vmem:[#allocation9 + $0x100] sm:$0xff]
    %v780 = vld [vmem:[#allocation9 + $0x108] sm:$0xff]
    %v781 = vld [vmem:[#allocation9 + $0x110] sm:$0xff]
    %v782 = vld [vmem:[#allocation9 + $0x118] sm:$0xff]
    %v783 = vld [vmem:[#allocation9 + $0x120] sm:$0xff]
    %v784 = vld [vmem:[#allocation9 + $0x128] sm:$0xff]
    %v785 = vld [vmem:[#allocation9 + $0x130] sm:$0xff]
    %v786 = vld [vmem:[#allocation9 + $0x138] sm:$0xff]
    %v787 = vld [vmem:[#allocation9 + $0x140] sm:$0xff]
    %v788 = vld [vmem:[#allocation9 + $0x148] sm:$0xff]
    %v789 = vld [vmem:[#allocation9 + $0x150] sm:$0xff]
    %v790 = vld [vmem:[#allocation9 + $0x158] sm:$0xff]
    %v791 = vld [vmem:[#allocation9 + $0x160] sm:$0xff]
    %v792 = vld [vmem:[#allocation9 + $0x168] sm:$0xff]
    %v793 = vld [vmem:[#allocation9 + $0x170] sm:$0xff]
    %v794 = vld [vmem:[#allocation9 + $0x178] sm:$0xff]
    %v795 = vld [vmem:[#allocation9 + $0x180] sm:$0xff]
    %v796 = vld [vmem:[#allocation9 + $0x188] sm:$0xff]
    %v797 = vld [vmem:[#allocation9 + $0x190] sm:$0xff]
    %v798 = vld [vmem:[#allocation9 + $0x198] sm:$0xff]
    %v799 = vld [vmem:[#allocation9 + $0x1a0] sm:$0xff]
    %v800 = vld [vmem:[#allocation9 + $0x1a8] sm:$0xff]
    %v801 = vld [vmem:[#allocation9 + $0x1b0] sm:$0xff]
    %v802 = vld [vmem:[#allocation9 + $0x1b8] sm:$0xff]
    %v803 = vld [vmem:[#allocation9 + $0x1c0] sm:$0xff]
    %v804 = vld [vmem:[#allocation9 + $0x1c8] sm:$0xff]
    %v805 = vld [vmem:[#allocation9 + $0x1d0] sm:$0xff]
    %v806 = vld [vmem:[#allocation9 + $0x1d8] sm:$0xff]
    %v807 = vld [vmem:[#allocation9 + $0x1e0] sm:$0xff]
    %v808 = vld [vmem:[#allocation9 + $0x1e8] sm:$0xff]
    %v809 = vld [vmem:[#allocation9 + $0x1f0] sm:$0xff]
    %v810 = vld [vmem:[#allocation9 + $0x1f8] sm:$0xff]
    %811 = vmatprep.subr.mxu0 %v748
    %812 = vmatpush1.msra.mxu0 %v747
    %813 = vmatprep.subr.mxu0 %v752
    %814 = vmatpush1.msra.mxu0 %v751
    %815 = vmatprep.subr.mxu0 %v756
    %816 = vmatpush1.msra.mxu0 %v755
    %817 = vmatprep.subr.mxu0 %v760
    %818 = vmatpush1.msra.mxu0 %v759
    %819 = vmatprep.subr.mxu0 %v764
    %820 = vmatpush1.msra.mxu0 %v763
    %821 = vmatprep.subr.mxu0 %v768
    %822 = vmatpush1.msra.mxu0 %v767
    %823 = vmatprep.subr.mxu0 %v772
    %824 = vmatpush1.msra.mxu0 %v771
    %825 = vmatprep.subr.mxu0 %v776
    %826 = vmatpush1.msra.mxu0 %v775
    %827 = vmatprep.subr.mxu0 %v780
    %828 = vmatpush1.msra.mxu0 %v779
    %829 = vmatprep.subr.mxu0 %v784
    %830 = vmatpush1.msra.mxu0 %v783
    %831 = vmatprep.subr.mxu0 %v788
    %832 = vmatpush1.msra.mxu0 %v787
    %833 = vmatprep.subr.mxu0 %v792
    %834 = vmatpush1.msra.mxu0 %v791
    %835 = vmatprep.subr.mxu0 %v796
    %836 = vmatpush1.msra.mxu0 %v795
    %837 = vmatprep.subr.mxu0 %v800
    %838 = vmatpush1.msra.mxu0 %v799
    %839 = vmatprep.subr.mxu0 %v804
    %840 = vmatpush1.msra.mxu0 %v803
    %841 = vmatprep.subr.mxu0 %v808
    %842 = vmatpush1.msra.mxu0 %v807
    %843 = vmatprep.subr.mxu0 0.0
    %844 = vmatpush1.msra.mxu0 0.0
    %845 = vmatprep.subr.mxu0 0.0
    %846 = vmatpush1.msra.mxu0 0.0
    %847 = vmatprep.subr.mxu0 0.0
    %848 = vmatpush1.msra.mxu0 0.0
    %849 = vmatprep.subr.mxu0 0.0
    %850 = vmatpush1.msra.mxu0 0.0
    %851 = vmatprep.subr.mxu0 0.0
    %852 = vmatpush1.msra.mxu0 0.0
    %853 = vmatprep.subr.mxu0 0.0
    %854 = vmatpush1.msra.mxu0 0.0
    %855 = vmatprep.subr.mxu0 0.0
    %856 = vmatpush1.msra.mxu0 0.0
    %857 = vmatprep.subr.mxu0 0.0
    %858 = vmatpush1.msra.mxu0 0.0
    %859 = vmatprep.subr.mxu0 0.0
    %860 = vmatpush1.msra.mxu0 0.0
    %861 = vmatprep.subr.mxu0 0.0
    %862 = vmatpush1.msra.mxu0 0.0
    %863 = vmatprep.subr.mxu0 0.0
    %864 = vmatpush1.msra.mxu0 0.0
    %865 = vmatprep.subr.mxu0 0.0
    %866 = vmatpush1.msra.mxu0 0.0
    %867 = vmatprep.subr.mxu0 0.0
    %868 = vmatpush1.msra.mxu0 0.0
    %869 = vmatprep.subr.mxu0 0.0
    %870 = vmatpush1.msra.mxu0 0.0
    %871 = vmatprep.subr.mxu0 0.0
    %872 = vmatpush1.msra.mxu0 0.0
    %873 = vmatprep.subr.mxu0 0.0
    %874 = vmatpush1.msra.mxu0 0.0
    %875 = vmatprep.mubr.f32.mxu0 0.0
    %876 = vmatmul.mubr.f32.gmra.mrb[0].mxu0 %v741
    %v877 = vpop.f32.mrb[0].mxu0
    %v878 = vadd.f32 0.0, %v877
    %v879 = vpop.f32.mrb[0].mxu0
    %v880 = vadd.f32 0.0, %v879
    %881 = vdwg.mxu0
    %882 = vmatprep.subr.mxu0 %v750
    %883 = vmatpush1.msra.mxu0 %v749
    %884 = vmatprep.subr.mxu0 %v754
    %885 = vmatpush1.msra.mxu0 %v753
    %886 = vmatprep.subr.mxu0 %v758
    %887 = vmatpush1.msra.mxu0 %v757
    %888 = vmatprep.subr.mxu0 %v762
    %889 = vmatpush1.msra.mxu0 %v761
    %890 = vmatprep.subr.mxu0 %v766
    %891 = vmatpush1.msra.mxu0 %v765
    %892 = vmatprep.subr.mxu0 %v770
    %893 = vmatpush1.msra.mxu0 %v769
    %894 = vmatprep.subr.mxu0 %v774
    %895 = vmatpush1.msra.mxu0 %v773
    %896 = vmatprep.subr.mxu0 %v778
    %897 = vmatpush1.msra.mxu0 %v777
    %898 = vmatprep.subr.mxu0 %v782
    %899 = vmatpush1.msra.mxu0 %v781
    %900 = vmatprep.subr.mxu0 %v786
    %901 = vmatpush1.msra.mxu0 %v785
    %902 = vmatprep.subr.mxu0 %v790
    %903 = vmatpush1.msra.mxu0 %v789
    %904 = vmatprep.subr.mxu0 %v794
    %905 = vmatpush1.msra.mxu0 %v793
    %906 = vmatprep.subr.mxu0 %v798
    %907 = vmatpush1.msra.mxu0 %v797
    %908 = vmatprep.subr.mxu0 %v802
    %909 = vmatpush1.msra.mxu0 %v801
    %910 = vmatprep.subr.mxu0 %v806
    %911 = vmatpush1.msra.mxu0 %v805
    %912 = vmatprep.subr.mxu0 %v810
    %913 = vmatpush1.msra.mxu0 %v809
    %914 = vmatprep.subr.mxu0 0.0
    %915 = vmatpush1.msra.mxu0 0.0
    %916 = vmatprep.subr.mxu0 0.0
    %917 = vmatpush1.msra.mxu0 0.0
    %918 = vmatprep.subr.mxu0 0.0
    %919 = vmatpush1.msra.mxu0 0.0
    %920 = vmatprep.subr.mxu0 0.0
    %921 = vmatpush1.msra.mxu0 0.0
    %922 = vmatprep.subr.mxu0 0.0
    %923 = vmatpush1.msra.mxu0 0.0
    %924 = vmatprep.subr.mxu0 0.0
    %925 = vmatpush1.msra.mxu0 0.0
    %926 = vmatprep.subr.mxu0 0.0
    %927 = vmatpush1.msra.mxu0 0.0
    %928 = vmatprep.subr.mxu0 0.0
    %929 = vmatpush1.msra.mxu0 0.0
    %930 = vmatprep.subr.mxu0 0.0
    %931 = vmatpush1.msra.mxu0 0.0
    %932 = vmatprep.subr.mxu0 0.0
    %933 = vmatpush1.msra.mxu0 0.0
    %934 = vmatprep.subr.mxu0 0.0
    %935 = vmatpush1.msra.mxu0 0.0
    %936 = vmatprep.subr.mxu0 0.0
    %937 = vmatpush1.msra.mxu0 0.0
    %938 = vmatprep.subr.mxu0 0.0
    %939 = vmatpush1.msra.mxu0 0.0
    %940 = vmatprep.subr.mxu0 0.0
    %941 = vmatpush1.msra.mxu0 0.0
    %942 = vmatprep.subr.mxu0 0.0
    %943 = vmatpush1.msra.mxu0 0.0
    %944 = vmatprep.subr.mxu0 0.0
    %945 = vmatpush1.msra.mxu0 0.0
    %946 = vmatprep.mubr.f32.mxu0 0.0
    %947 = vmatmul.mubr.f32.gmra.mrb[0].mxu0 %v741
    %v948 = vpop.f32.mrb[0].mxu0
    %v949 = vadd.f32 0.0, %v948
    %v950 = vpop.f32.mrb[0].mxu0
    %v951 = vadd.f32 0.0, %v950
    %952 = vdwg.mxu0
    %v953 = vadd.f32 %v743, %v878
    %v954 = vadd.f32 %v744, %v880
    %v955 = vadd.f32 %v745, %v949
    %v956 = vadd.f32 %v746, %v951
    %v957 = vxor.u32 %v953, 2147483648
    %v958 = vxor.u32 %v954, 2147483648
    %v959 = vxor.u32 %v955, 2147483648
    %v960 = vmul.f32 %v957, 1.442695
    %v961 = vpow.pop %v960
    %v962 = vmul.f32 %v958, 1.442695
    %v963 = vpow.pop %v962
    %v964 = vmul.f32 %v959, 1.442695
    %v965 = vpow.pop %v964
    %v966 = vadd.f32 %v961, 1.0
    %v967 = vadd.f32 %v963, 1.0
    %v968 = vadd.f32 %v965, 1.0
    %v969 = vrcp.pop %v966
    %v970 = vmul.f32 1.0, %v969
    %v971 = vrcp.pop %v967
    %v972 = vmul.f32 1.0, %v971
    %v973 = vrcp.pop %v968
    %v974 = vmul.f32 1.0, %v973
    %v975 = vtanh.pop %v956
    %v976 = vmul.f32 %v972, %v739
    %v977 = vmul.f32 %v970, %v975
    %v978 = vadd.f32 %v976, %v977
    %v979 = vtanh.pop %v978
    %v980 = vmul.f32 %v974, %v979
    %981 = vst [vmem:[#allocation3 + $0x8] sm:$0xff] %v980
    %v982 = vld [vmem:[#allocation2 + $0x40] sm:$0xff]
    %v983 = vld [vmem:[#allocation2 + $0x48] sm:$0xff]
    %v984 = vld [vmem:[#allocation2 + $0x50] sm:$0xff]
    %v985 = vld [vmem:[#allocation2 + $0x58] sm:$0xff]
    %v986 = vld [vmem:[#allocation9] sm:$0xff]
    %v987 = vld [vmem:[#allocation9 + $0x8] sm:$0xff]
    %v988 = vld [vmem:[#allocation9 + $0x10] sm:$0xff]
    %v989 = vld [vmem:[#allocation9 + $0x18] sm:$0xff]
    %v990 = vld [vmem:[#allocation9 + $0x20] sm:$0xff]
    %v991 = vld [vmem:[#allocation9 + $0x28] sm:$0xff]
    %v992 = vld [vmem:[#allocation9 + $0x30] sm:$0xff]
    %v993 = vld [vmem:[#allocation9 + $0x38] sm:$0xff]
    %v994 = vld [vmem:[#allocation9 + $0x40] sm:$0xff]
    %v995 = vld [vmem:[#allocation9 + $0x48] sm:$0xff]
    %v996 = vld [vmem:[#allocation9 + $0x50] sm:$0xff]
    %v997 = vld [vmem:[#allocation9 + $0x58] sm:$0xff]
    %v998 = vld [vmem:[#allocation9 + $0x60] sm:$0xff]
    %v999 = vld [vmem:[#allocation9 + $0x68] sm:$0xff]
    %v1000 = vld [vmem:[#allocation9 + $0x70] sm:$0xff]
    %v1001 = vld [vmem:[#allocation9 + $0x78] sm:$0xff]
    %v1002 = vld [vmem:[#allocation9 + $0x80] sm:$0xff]
    %v1003 = vld [vmem:[#allocation9 + $0x88] sm:$0xff]
    %v1004 = vld [vmem:[#allocation9 + $0x90] sm:$0xff]
    %v1005 = vld [vmem:[#allocation9 + $0x98] sm:$0xff]
    %v1006 = vld [vmem:[#allocation9 + $0xa0] sm:$0xff]
    %v1007 = vld [vmem:[#allocation9 + $0xa8] sm:$0xff]
    %v1008 = vld [vmem:[#allocation9 + $0xb0] sm:$0xff]
    %v1009 = vld [vmem:[#allocation9 + $0xb8] sm:$0xff]
    %v1010 = vld [vmem:[#allocation9 + $0xc0] sm:$0xff]
    %v1011 = vld [vmem:[#allocation9 + $0xc8] sm:$0xff]
    %v1012 = vld [vmem:[#allocation9 + $0xd0] sm:$0xff]
    %v1013 = vld [vmem:[#allocation9 + $0xd8] sm:$0xff]
    %v1014 = vld [vmem:[#allocation9 + $0xe0] sm:$0xff]
    %v1015 = vld [vmem:[#allocation9 + $0xe8] sm:$0xff]
    %v1016 = vld [vmem:[#allocation9 + $0xf0] sm:$0xff]
    %v1017 = vld [vmem:[#allocation9 + $0xf8] sm:$0xff]
    %v1018 = vld [vmem:[#allocation9 + $0x100] sm:$0xff]
    %v1019 = vld [vmem:[#allocation9 + $0x108] sm:$0xff]
    %v1020 = vld [vmem:[#allocation9 + $0x110] sm:$0xff]
    %v1021 = vld [vmem:[#allocation9 + $0x118] sm:$0xff]
    %v1022 = vld [vmem:[#allocation9 + $0x120] sm:$0xff]
    %v1023 = vld [vmem:[#allocation9 + $0x128] sm:$0xff]
    %v1024 = vld [vmem:[#allocation9 + $0x130] sm:$0xff]
    %v1025 = vld [vmem:[#allocation9 + $0x138] sm:$0xff]
    %v1026 = vld [vmem:[#allocation9 + $0x140] sm:$0xff]
    %v1027 = vld [vmem:[#allocation9 + $0x148] sm:$0xff]
    %v1028 = vld [vmem:[#allocation9 + $0x150] sm:$0xff]
    %v1029 = vld [vmem:[#allocation9 + $0x158] sm:$0xff]
    %v1030 = vld [vmem:[#allocation9 + $0x160] sm:$0xff]
    %v1031 = vld [vmem:[#allocation9 + $0x168] sm:$0xff]
    %v1032 = vld [vmem:[#allocation9 + $0x170] sm:$0xff]
    %v1033 = vld [vmem:[#allocation9 + $0x178] sm:$0xff]
    %v1034 = vld [vmem:[#allocation9 + $0x180] sm:$0xff]
    %v1035 = vld [vmem:[#allocation9 + $0x188] sm:$0xff]
    %v1036 = vld [vmem:[#allocation9 + $0x190] sm:$0xff]
    %v1037 = vld [vmem:[#allocation9 + $0x198] sm:$0xff]
    %v1038 = vld [vmem:[#allocation9 + $0x1a0] sm:$0xff]
    %v1039 = vld [vmem:[#allocation9 + $0x1a8] sm:$0xff]
    %v1040 = vld [vmem:[#allocation9 + $0x1b0] sm:$0xff]
    %v1041 = vld [vmem:[#allocation9 + $0x1b8] sm:$0xff]
    %v1042 = vld [vmem:[#allocation9 + $0x1c0] sm:$0xff]
    %v1043 = vld [vmem:[#allocation9 + $0x1c8] sm:$0xff]
    %v1044 = vld [vmem:[#allocation9 + $0x1d0] sm:$0xff]
    %v1045 = vld [vmem:[#allocation9 + $0x1d8] sm:$0xff]
    %v1046 = vld [vmem:[#allocation9 + $0x1e0] sm:$0xff]
    %v1047 = vld [vmem:[#allocation9 + $0x1e8] sm:$0xff]
    %v1048 = vld [vmem:[#allocation9 + $0x1f0] sm:$0xff]
    %v1049 = vld [vmem:[#allocation9 + $0x1f8] sm:$0xff]
    %1050 = vmatprep.subr.mxu0 %v987
    %1051 = vmatpush1.msra.mxu0 %v986
    %1052 = vmatprep.subr.mxu0 %v991
    %1053 = vmatpush1.msra.mxu0 %v990
    %1054 = vmatprep.subr.mxu0 %v995
    %1055 = vmatpush1.msra.mxu0 %v994
    %1056 = vmatprep.subr.mxu0 %v999
    %1057 = vmatpush1.msra.mxu0 %v998
    %1058 = vmatprep.subr.mxu0 %v1003
    %1059 = vmatpush1.msra.mxu0 %v1002
    %1060 = vmatprep.subr.mxu0 %v1007
    %1061 = vmatpush1.msra.mxu0 %v1006
    %1062 = vmatprep.subr.mxu0 %v1011
    %1063 = vmatpush1.msra.mxu0 %v1010
    %1064 = vmatprep.subr.mxu0 %v1015
    %1065 = vmatpush1.msra.mxu0 %v1014
    %1066 = vmatprep.subr.mxu0 %v1019
    %1067 = vmatpush1.msra.mxu0 %v1018
    %1068 = vmatprep.subr.mxu0 %v1023
    %1069 = vmatpush1.msra.mxu0 %v1022
    %1070 = vmatprep.subr.mxu0 %v1027
    %1071 = vmatpush1.msra.mxu0 %v1026
    %1072 = vmatprep.subr.mxu0 %v1031
    %1073 = vmatpush1.msra.mxu0 %v1030
    %1074 = vmatprep.subr.mxu0 %v1035
    %1075 = vmatpush1.msra.mxu0 %v1034
    %1076 = vmatprep.subr.mxu0 %v1039
    %1077 = vmatpush1.msra.mxu0 %v1038
    %1078 = vmatprep.subr.mxu0 %v1043
    %1079 = vmatpush1.msra.mxu0 %v1042
    %1080 = vmatprep.subr.mxu0 %v1047
    %1081 = vmatpush1.msra.mxu0 %v1046
    %1082 = vmatprep.subr.mxu0 0.0
    %1083 = vmatpush1.msra.mxu0 0.0
    %1084 = vmatprep.subr.mxu0 0.0
    %1085 = vmatpush1.msra.mxu0 0.0
    %1086 = vmatprep.subr.mxu0 0.0
    %1087 = vmatpush1.msra.mxu0 0.0
    %1088 = vmatprep.subr.mxu0 0.0
    %1089 = vmatpush1.msra.mxu0 0.0
    %1090 = vmatprep.subr.mxu0 0.0
    %1091 = vmatpush1.msra.mxu0 0.0
    %1092 = vmatprep.subr.mxu0 0.0
    %1093 = vmatpush1.msra.mxu0 0.0
    %1094 = vmatprep.subr.mxu0 0.0
    %1095 = vmatpush1.msra.mxu0 0.0
    %1096 = vmatprep.subr.mxu0 0.0
    %1097 = vmatpush1.msra.mxu0 0.0
    %1098 = vmatprep.subr.mxu0 0.0
    %1099 = vmatpush1.msra.mxu0 0.0
    %1100 = vmatprep.subr.mxu0 0.0
    %1101 = vmatpush1.msra.mxu0 0.0
    %1102 = vmatprep.subr.mxu0 0.0
    %1103 = vmatpush1.msra.mxu0 0.0
    %1104 = vmatprep.subr.mxu0 0.0
    %1105 = vmatpush1.msra.mxu0 0.0
    %1106 = vmatprep.subr.mxu0 0.0
    %1107 = vmatpush1.msra.mxu0 0.0
    %1108 = vmatprep.subr.mxu0 0.0
    %1109 = vmatpush1.msra.mxu0 0.0
    %1110 = vmatprep.subr.mxu0 0.0
    %1111 = vmatpush1.msra.mxu0 0.0
    %1112 = vmatprep.subr.mxu0 0.0
    %1113 = vmatpush1.msra.mxu0 0.0
    %1114 = vmatprep.mubr.f32.mxu0 0.0
    %1115 = vmatmul.mubr.f32.gmra.mrb[0].mxu0 %v980
    %v1116 = vpop.f32.mrb[0].mxu0
    %v1117 = vadd.f32 0.0, %v1116
    %v1118 = vpop.f32.mrb[0].mxu0
    %v1119 = vadd.f32 0.0, %v1118
    %1120 = vdwg.mxu0
    %1121 = vmatprep.subr.mxu0 %v989
    %1122 = vmatpush1.msra.mxu0 %v988
    %1123 = vmatprep.subr.mxu0 %v993
    %1124 = vmatpush1.msra.mxu0 %v992
    %1125 = vmatprep.subr.mxu0 %v997
    %1126 = vmatpush1.msra.mxu0 %v996
    %1127 = vmatprep.subr.mxu0 %v1001
    %1128 = vmatpush1.msra.mxu0 %v1000
    %1129 = vmatprep.subr.mxu0 %v1005
    %1130 = vmatpush1.msra.mxu0 %v1004
    %1131 = vmatprep.subr.mxu0 %v1009
    %1132 = vmatpush1.msra.mxu0 %v1008
    %1133 = vmatprep.subr.mxu0 %v1013
    %1134 = vmatpush1.msra.mxu0 %v1012
    %1135 = vmatprep.subr.mxu0 %v1017
    %1136 = vmatpush1.msra.mxu0 %v1016
    %1137 = vmatprep.subr.mxu0 %v1021
    %1138 = vmatpush1.msra.mxu0 %v1020
    %1139 = vmatprep.subr.mxu0 %v1025
    %1140 = vmatpush1.msra.mxu0 %v1024
    %1141 = vmatprep.subr.mxu0 %v1029
    %1142 = vmatpush1.msra.mxu0 %v1028
    %1143 = vmatprep.subr.mxu0 %v1033
    %1144 = vmatpush1.msra.mxu0 %v1032
    %1145 = vmatprep.subr.mxu0 %v1037
    %1146 = vmatpush1.msra.mxu0 %v1036
    %1147 = vmatprep.subr.mxu0 %v1041
    %1148 = vmatpush1.msra.mxu0 %v1040
    %1149 = vmatprep.subr.mxu0 %v1045
    %1150 = vmatpush1.msra.mxu0 %v1044
    %1151 = vmatprep.subr.mxu0 %v1049
    %1152 = vmatpush1.msra.mxu0 %v1048
    %1153 = vmatprep.subr.mxu0 0.0
    %1154 = vmatpush1.msra.mxu0 0.0
    %1155 = vmatprep.subr.mxu0 0.0
    %1156 = vmatpush1.msra.mxu0 0.0
    %1157 = vmatprep.subr.mxu0 0.0
    %1158 = vmatpush1.msra.mxu0 0.0
    %1159 = vmatprep.subr.mxu0 0.0
    %1160 = vmatpush1.msra.mxu0 0.0
    %1161 = vmatprep.subr.mxu0 0.0
    %1162 = vmatpush1.msra.mxu0 0.0
    %1163 = vmatprep.subr.mxu0 0.0
    %1164 = vmatpush1.msra.mxu0 0.0
    %1165 = vmatprep.subr.mxu0 0.0
    %1166 = vmatpush1.msra.mxu0 0.0
    %1167 = vmatprep.subr.mxu0 0.0
    %1168 = vmatpush1.msra.mxu0 0.0
    %1169 = vmatprep.subr.mxu0 0.0
    %1170 = vmatpush1.msra.mxu0 0.0
    %1171 = vmatprep.subr.mxu0 0.0
    %1172 = vmatpush1.msra.mxu0 0.0
    %1173 = vmatprep.subr.mxu0 0.0
    %1174 = vmatpush1.msra.mxu0 0.0
    %1175 = vmatprep.subr.mxu0 0.0
    %1176 = vmatpush1.msra.mxu0 0.0
    %1177 = vmatprep.subr.mxu0 0.0
    %1178 = vmatpush1.msra.mxu0 0.0
    %1179 = vmatprep.subr.mxu0 0.0
    %1180 = vmatpush1.msra.mxu0 0.0
    %1181 = vmatprep.subr.mxu0 0.0
    %1182 = vmatpush1.msra.mxu0 0.0
    %1183 = vmatprep.subr.mxu0 0.0
    %1184 = vmatpush1.msra.mxu0 0.0
    %1185 = vmatprep.mubr.f32.mxu0 0.0
    %1186 = vmatmul.mubr.f32.gmra.mrb[0].mxu0 %v980
    %v1187 = vpop.f32.mrb[0].mxu0
    %v1188 = vadd.f32 0.0, %v1187
    %v1189 = vpop.f32.mrb[0].mxu0
    %v1190 = vadd.f32 0.0, %v1189
    %1191 = vdwg.mxu0
    %v1192 = vadd.f32 %v982, %v1117
    %v1193 = vadd.f32 %v983, %v1119
    %v1194 = vadd.f32 %v984, %v1188
    %v1195 = vadd.f32 %v985, %v1190
    %v1196 = vxor.u32 %v1192, 2147483648
    %v1197 = vxor.u32 %v1193, 2147483648
    %v1198 = vxor.u32 %v1194, 2147483648
    %v1199 = vmul.f32 %v1196, 1.442695
    %v1200 = vpow.pop %v1199
    %v1201 = vmul.f32 %v1197, 1.442695
    %v1202 = vpow.pop %v1201
    %v1203 = vmul.f32 %v1198, 1.442695
    %v1204 = vpow.pop %v1203
    %v1205 = vadd.f32 %v1200, 1.0
    %v1206 = vadd.f32 %v1202, 1.0
    %v1207 = vadd.f32 %v1204, 1.0
    %v1208 = vrcp.pop %v1205
    %v1209 = vmul.f32 1.0, %v1208
    %v1210 = vrcp.pop %v1206
    %v1211 = vmul.f32 1.0, %v1210
    %v1212 = vrcp.pop %v1207
    %v1213 = vmul.f32 1.0, %v1212
    %v1214 = vtanh.pop %v1195
    %v1215 = vmul.f32 %v1211, %v978
    %v1216 = vmul.f32 %v1209, %v1214
    %v1217 = vadd.f32 %v1215, %v1216
    %v1218 = vtanh.pop %v1217
    %v1219 = vmul.f32 %v1213, %v1218
    %1220 = vst [vmem:[#allocation3 + $0x10] sm:$0xff] %v1219
    %v1221 = vld [vmem:[#allocation2 + $0x60] sm:$0xff]
    %v1222 = vld [vmem:[#allocation2 + $0x68] sm:$0xff]
    %v1223 = vld [vmem:[#allocation2 + $0x70] sm:$0xff]
    %v1224 = vld [vmem:[#allocation2 + $0x78] sm:$0xff]
    %v1225 = vld [vmem:[#allocation9] sm:$0xff]
    %v1226 = vld [vmem:[#allocation9 + $0x8] sm:$0xff]
    %v1227 = vld [vmem:[#allocation9 + $0x10] sm:$0xff]
    %v1228 = vld [vmem:[#allocation9 + $0x18] sm:$0xff]
    %v1229 = vld [vmem:[#allocation9 + $0x20] sm:$0xff]
    %v1230 = vld [vmem:[#allocation9 + $0x28] sm:$0xff]
    %v1231 = vld [vmem:[#allocation9 + $0x30] sm:$0xff]
    %v1232 = vld [vmem:[#allocation9 + $0x38] sm:$0xff]
    %v1233 = vld [vmem:[#allocation9 + $0x40] sm:$0xff]
    %v1234 = vld [vmem:[#allocation9 + $0x48] sm:$0xff]
    %v1235 = vld [vmem:[#allocation9 + $0x50] sm:$0xff]
    %v1236 = vld [vmem:[#allocation9 + $0x58] sm:$0xff]
    %v1237 = vld [vmem:[#allocation9 + $0x60] sm:$0xff]
    %v1238 = vld [vmem:[#allocation9 + $0x68] sm:$0xff]
    %v1239 = vld [vmem:[#allocation9 + $0x70] sm:$0xff]
    %v1240 = vld [vmem:[#allocation9 + $0x78] sm:$0xff]
    %v1241 = vld [vmem:[#allocation9 + $0x80] sm:$0xff]
    %v1242 = vld [vmem:[#allocation9 + $0x88] sm:$0xff]
    %v1243 = vld [vmem:[#allocation9 + $0x90] sm:$0xff]
    %v1244 = vld [vmem:[#allocation9 + $0x98] sm:$0xff]
    %v1245 = vld [vmem:[#allocation9 + $0xa0] sm:$0xff]
    %v1246 = vld [vmem:[#allocation9 + $0xa8] sm:$0xff]
    %v1247 = vld [vmem:[#allocation9 + $0xb0] sm:$0xff]
    %v1248 = vld [vmem:[#allocation9 + $0xb8] sm:$0xff]
    %v1249 = vld [vmem:[#allocation9 + $0xc0] sm:$0xff]
    %v1250 = vld [vmem:[#allocation9 + $0xc8] sm:$0xff]
    %v1251 = vld [vmem:[#allocation9 + $0xd0] sm:$0xff]
    %v1252 = vld [vmem:[#allocation9 + $0xd8] sm:$0xff]
    %v1253 = vld [vmem:[#allocation9 + $0xe0] sm:$0xff]
    %v1254 = vld [vmem:[#allocation9 + $0xe8] sm:$0xff]
    %v1255 = vld [vmem:[#allocation9 + $0xf0] sm:$0xff]
    %v1256 = vld [vmem:[#allocation9 + $0xf8] sm:$0xff]
    %v1257 = vld [vmem:[#allocation9 + $0x100] sm:$0xff]
    %v1258 = vld [vmem:[#allocation9 + $0x108] sm:$0xff]
    %v1259 = vld [vmem:[#allocation9 + $0x110] sm:$0xff]
    %v1260 = vld [vmem:[#allocation9 + $0x118] sm:$0xff]
    %v1261 = vld [vmem:[#allocation9 + $0x120] sm:$0xff]
    %v1262 = vld [vmem:[#allocation9 + $0x128] sm:$0xff]
    %v1263 = vld [vmem:[#allocation9 + $0x130] sm:$0xff]
    %v1264 = vld [vmem:[#allocation9 + $0x138] sm:$0xff]
    %v1265 = vld [vmem:[#allocation9 + $0x140] sm:$0xff]
    %v1266 = vld [vmem:[#allocation9 + $0x148] sm:$0xff]
    %v1267 = vld [vmem:[#allocation9 + $0x150] sm:$0xff]
    %v1268 = vld [vmem:[#allocation9 + $0x158] sm:$0xff]
    %v1269 = vld [vmem:[#allocation9 + $0x160] sm:$0xff]
    %v1270 = vld [vmem:[#allocation9 + $0x168] sm:$0xff]
    %v1271 = vld [vmem:[#allocation9 + $0x170] sm:$0xff]
    %v1272 = vld [vmem:[#allocation9 + $0x178] sm:$0xff]
    %v1273 = vld [vmem:[#allocation9 + $0x180] sm:$0xff]
    %v1274 = vld [vmem:[#allocation9 + $0x188] sm:$0xff]
    %v1275 = vld [vmem:[#allocation9 + $0x190] sm:$0xff]
    %v1276 = vld [vmem:[#allocation9 + $0x198] sm:$0xff]
    %v1277 = vld [vmem:[#allocation9 + $0x1a0] sm:$0xff]
    %v1278 = vld [vmem:[#allocation9 + $0x1a8] sm:$0xff]
    %v1279 = vld [vmem:[#allocation9 + $0x1b0] sm:$0xff]
    %v1280 = vld [vmem:[#allocation9 + $0x1b8] sm:$0xff]
    %v1281 = vld [vmem:[#allocation9 + $0x1c0] sm:$0xff]
    %v1282 = vld [vmem:[#allocation9 + $0x1c8] sm:$0xff]
    %v1283 = vld [vmem:[#allocation9 + $0x1d0] sm:$0xff]
    %v1284 = vld [vmem:[#allocation9 + $0x1d8] sm:$0xff]
    %v1285 = vld [vmem:[#allocation9 + $0x1e0] sm:$0xff]
    %v1286 = vld [vmem:[#allocation9 + $0x1e8] sm:$0xff]
    %v1287 = vld [vmem:[#allocation9 + $0x1f0] sm:$0xff]
    %v1288 = vld [vmem:[#allocation9 + $0x1f8] sm:$0xff]
    %1289 = vmatprep.subr.mxu0 %v1226
    %1290 = vmatpush1.msra.mxu0 %v1225
    %1291 = vmatprep.subr.mxu0 %v1230
    %1292 = vmatpush1.msra.mxu0 %v1229
    %1293 = vmatprep.subr.mxu0 %v1234
    %1294 = vmatpush1.msra.mxu0 %v1233
    %1295 = vmatprep.subr.mxu0 %v1238
    %1296 = vmatpush1.msra.mxu0 %v1237
    %1297 = vmatprep.subr.mxu0 %v1242
    %1298 = vmatpush1.msra.mxu0 %v1241
    %1299 = vmatprep.subr.mxu0 %v1246
    %1300 = vmatpush1.msra.mxu0 %v1245
    %1301 = vmatprep.subr.mxu0 %v1250
    %1302 = vmatpush1.msra.mxu0 %v1249
    %1303 = vmatprep.subr.mxu0 %v1254
    %1304 = vmatpush1.msra.mxu0 %v1253
    %1305 = vmatprep.subr.mxu0 %v1258
    %1306 = vmatpush1.msra.mxu0 %v1257
    %1307 = vmatprep.subr.mxu0 %v1262
    %1308 = vmatpush1.msra.mxu0 %v1261
    %1309 = vmatprep.subr.mxu0 %v1266
    %1310 = vmatpush1.msra.mxu0 %v1265
    %1311 = vmatprep.subr.mxu0 %v1270
    %1312 = vmatpush1.msra.mxu0 %v1269
    %1313 = vmatprep.subr.mxu0 %v1274
    %1314 = vmatpush1.msra.mxu0 %v1273
    %1315 = vmatprep.subr.mxu0 %v1278
    %1316 = vmatpush1.msra.mxu0 %v1277
    %1317 = vmatprep.subr.mxu0 %v1282
    %1318 = vmatpush1.msra.mxu0 %v1281
    %1319 = vmatprep.subr.mxu0 %v1286
    %1320 = vmatpush1.msra.mxu0 %v1285
    %1321 = vmatprep.subr.mxu0 0.0
    %1322 = vmatpush1.msra.mxu0 0.0
    %1323 = vmatprep.subr.mxu0 0.0
    %1324 = vmatpush1.msra.mxu0 0.0
    %1325 = vmatprep.subr.mxu0 0.0
    %1326 = vmatpush1.msra.mxu0 0.0
    %1327 = vmatprep.subr.mxu0 0.0
    %1328 = vmatpush1.msra.mxu0 0.0
    %1329 = vmatprep.subr.mxu0 0.0
    %1330 = vmatpush1.msra.mxu0 0.0
    %1331 = vmatprep.subr.mxu0 0.0
    %1332 = vmatpush1.msra.mxu0 0.0
    %1333 = vmatprep.subr.mxu0 0.0
    %1334 = vmatpush1.msra.mxu0 0.0
    %1335 = vmatprep.subr.mxu0 0.0
    %1336 = vmatpush1.msra.mxu0 0.0
    %1337 = vmatprep.subr.mxu0 0.0
    %1338 = vmatpush1.msra.mxu0 0.0
    %1339 = vmatprep.subr.mxu0 0.0
    %1340 = vmatpush1.msra.mxu0 0.0
    %1341 = vmatprep.subr.mxu0 0.0
    %1342 = vmatpush1.msra.mxu0 0.0
    %1343 = vmatprep.subr.mxu0 0.0
    %1344 = vmatpush1.msra.mxu0 0.0
    %1345 = vmatprep.subr.mxu0 0.0
    %1346 = vmatpush1.msra.mxu0 0.0
    %1347 = vmatprep.subr.mxu0 0.0
    %1348 = vmatpush1.msra.mxu0 0.0
    %1349 = vmatprep.subr.mxu0 0.0
    %1350 = vmatpush1.msra.mxu0 0.0
    %1351 = vmatprep.subr.mxu0 0.0
    %1352 = vmatpush1.msra.mxu0 0.0
    %1353 = vmatprep.mubr.f32.mxu0 0.0
    %1354 = vmatmul.mubr.f32.gmra.mrb[0].mxu0 %v1219
    %v1355 = vpop.f32.mrb[0].mxu0
    %v1356 = vadd.f32 0.0, %v1355
    %v1357 = vpop.f32.mrb[0].mxu0
    %v1358 = vadd.f32 0.0, %v1357
    %1359 = vdwg.mxu0
    %1360 = vmatprep.subr.mxu0 %v1228
    %1361 = vmatpush1.msra.mxu0 %v1227
    %1362 = vmatprep.subr.mxu0 %v1232
    %1363 = vmatpush1.msra.mxu0 %v1231
    %1364 = vmatprep.subr.mxu0 %v1236
    %1365 = vmatpush1.msra.mxu0 %v1235
    %1366 = vmatprep.subr.mxu0 %v1240
    %1367 = vmatpush1.msra.mxu0 %v1239
    %1368 = vmatprep.subr.mxu0 %v1244
    %1369 = vmatpush1.msra.mxu0 %v1243
    %1370 = vmatprep.subr.mxu0 %v1248
    %1371 = vmatpush1.msra.mxu0 %v1247
    %1372 = vmatprep.subr.mxu0 %v1252
    %1373 = vmatpush1.msra.mxu0 %v1251
    %1374 = vmatprep.subr.mxu0 %v1256
    %1375 = vmatpush1.msra.mxu0 %v1255
    %1376 = vmatprep.subr.mxu0 %v1260
    %1377 = vmatpush1.msra.mxu0 %v1259
    %1378 = vmatprep.subr.mxu0 %v1264
    %1379 = vmatpush1.msra.mxu0 %v1263
    %1380 = vmatprep.subr.mxu0 %v1268
    %1381 = vmatpush1.msra.mxu0 %v1267
    %1382 = vmatprep.subr.mxu0 %v1272
    %1383 = vmatpush1.msra.mxu0 %v1271
    %1384 = vmatprep.subr.mxu0 %v1276
    %1385 = vmatpush1.msra.mxu0 %v1275
    %1386 = vmatprep.subr.mxu0 %v1280
    %1387 = vmatpush1.msra.mxu0 %v1279
    %1388 = vmatprep.subr.mxu0 %v1284
    %1389 = vmatpush1.msra.mxu0 %v1283
    %1390 = vmatprep.subr.mxu0 %v1288
    %1391 = vmatpush1.msra.mxu0 %v1287
    %1392 = vmatprep.subr.mxu0 0.0
    %1393 = vmatpush1.msra.mxu0 0.0
    %1394 = vmatprep.subr.mxu0 0.0
    %1395 = vmatpush1.msra.mxu0 0.0
    %1396 = vmatprep.subr.mxu0 0.0
    %1397 = vmatpush1.msra.mxu0 0.0
    %1398 = vmatprep.subr.mxu0 0.0
    %1399 = vmatpush1.msra.mxu0 0.0
    %1400 = vmatprep.subr.mxu0 0.0
    %1401 = vmatpush1.msra.mxu0 0.0
    %1402 = vmatprep.subr.mxu0 0.0
    %1403 = vmatpush1.msra.mxu0 0.0
    %1404 = vmatprep.subr.mxu0 0.0
    %1405 = vmatpush1.msra.mxu0 0.0
    %1406 = vmatprep.subr.mxu0 0.0
    %1407 = vmatpush1.msra.mxu0 0.0
    %1408 = vmatprep.subr.mxu0 0.0
    %1409 = vmatpush1.msra.mxu0 0.0
    %1410 = vmatprep.subr.mxu0 0.0
    %1411 = vmatpush1.msra.mxu0 0.0
    %1412 = vmatprep.subr.mxu0 0.0
    %1413 = vmatpush1.msra.mxu0 0.0
    %1414 = vmatprep.subr.mxu0 0.0
    %1415 = vmatpush1.msra.mxu0 0.0
    %1416 = vmatprep.subr.mxu0 0.0
    %1417 = vmatpush1.msra.mxu0 0.0
    %1418 = vmatprep.subr.mxu0 0.0
    %1419 = vmatpush1.msra.mxu0 0.0
    %1420 = vmatprep.subr.mxu0 0.0
    %1421 = vmatpush1.msra.mxu0 0.0
    %1422 = vmatprep.subr.mxu0 0.0
    %1423 = vmatpush1.msra.mxu0 0.0
    %1424 = vmatprep.mubr.f32.mxu0 0.0
    %1425 = vmatmul.mubr.f32.gmra.mrb[0].mxu0 %v1219
    %v1426 = vpop.f32.mrb[0].mxu0
    %v1427 = vadd.f32 0.0, %v1426
    %v1428 = vpop.f32.mrb[0].mxu0
    %v1429 = vadd.f32 0.0, %v1428
    %1430 = vdwg.mxu0
    %v1431 = vadd.f32 %v1221, %v1356
    %v1432 = vadd.f32 %v1222, %v1358
    %v1433 = vadd.f32 %v1223, %v1427
    %v1434 = vadd.f32 %v1224, %v1429
    %v1435 = vxor.u32 %v1431, 2147483648
    %v1436 = vxor.u32 %v1432, 2147483648
    %v1437 = vxor.u32 %v1433, 2147483648
    %v1438 = vmul.f32 %v1435, 1.442695
    %v1439 = vpow.pop %v1438
    %v1440 = vmul.f32 %v1436, 1.442695
    %v1441 = vpow.pop %v1440
    %v1442 = vmul.f32 %v1437, 1.442695
    %v1443 = vpow.pop %v1442
    %v1444 = vadd.f32 %v1439, 1.0
    %v1445 = vadd.f32 %v1441, 1.0
    %v1446 = vadd.f32 %v1443, 1.0
    %v1447 = vrcp.pop %v1444
    %v1448 = vmul.f32 1.0, %v1447
    %v1449 = vrcp.pop %v1445
    %v1450 = vmul.f32 1.0, %v1449
    %v1451 = vrcp.pop %v1446
    %v1452 = vmul.f32 1.0, %v1451
    %v1453 = vtanh.pop %v1434
    %v1454 = vmul.f32 %v1450, %v1217
    %v1455 = vmul.f32 %v1448, %v1453
    %v1456 = vadd.f32 %v1454, %v1455
    %v1457 = vtanh.pop %v1456
    %v1458 = vmul.f32 %v1452, %v1457
    %1459 = vst [vmem:[#allocation3 + $0x18] sm:$0xff] %v1458
    %v1460 = vld [vmem:[#allocation2 + $0x80] sm:$0xff]
    %v1461 = vld [vmem:[#allocation2 + $0x88] sm:$0xff]
    %v1462 = vld [vmem:[#allocation2 + $0x90] sm:$0xff]
    %v1463 = vld [vmem:[#allocation2 + $0x98] sm:$0xff]
    %v1464 = vld [vmem:[#allocation9] sm:$0xff]
    %v1465 = vld [vmem:[#allocation9 + $0x8] sm:$0xff]
    %v1466 = vld [vmem:[#allocation9 + $0x10] sm:$0xff]
    %v1467 = vld [vmem:[#allocation9 + $0x18] sm:$0xff]
    %v1468 = vld [vmem:[#allocation9 + $0x20] sm:$0xff]
    %v1469 = vld [vmem:[#allocation9 + $0x28] sm:$0xff]
    %v1470 = vld [vmem:[#allocation9 + $0x30] sm:$0xff]
    %v1471 = vld [vmem:[#allocation9 + $0x38] sm:$0xff]
    %v1472 = vld [vmem:[#allocation9 + $0x40] sm:$0xff]
    %v1473 = vld [vmem:[#allocation9 + $0x48] sm:$0xff]
    %v1474 = vld [vmem:[#allocation9 + $0x50] sm:$0xff]
    %v1475 = vld [vmem:[#allocation9 + $0x58] sm:$0xff]
    %v1476 = vld [vmem:[#allocation9 + $0x60] sm:$0xff]
    %v1477 = vld [vmem:[#allocation9 + $0x68] sm:$0xff]
    %v1478 = vld [vmem:[#allocation9 + $0x70] sm:$0xff]
    %v1479 = vld [vmem:[#allocation9 + $0x78] sm:$0xff]
    %v1480 = vld [vmem:[#allocation9 + $0x80] sm:$0xff]
    %v1481 = vld [vmem:[#allocation9 + $0x88] sm:$0xff]
    %v1482 = vld [vmem:[#allocation9 + $0x90] sm:$0xff]
    %v1483 = vld [vmem:[#allocation9 + $0x98] sm:$0xff]
    %v1484 = vld [vmem:[#allocation9 + $0xa0] sm:$0xff]
    %v1485 = vld [vmem:[#allocation9 + $0xa8] sm:$0xff]
    %v1486 = vld [vmem:[#allocation9 + $0xb0] sm:$0xff]
    %v1487 = vld [vmem:[#allocation9 + $0xb8] sm:$0xff]
    %v1488 = vld [vmem:[#allocation9 + $0xc0] sm:$0xff]
    %v1489 = vld [vmem:[#allocation9 + $0xc8] sm:$0xff]
    %v1490 = vld [vmem:[#allocation9 + $0xd0] sm:$0xff]
    %v1491 = vld [vmem:[#allocation9 + $0xd8] sm:$0xff]
    %v1492 = vld [vmem:[#allocation9 + $0xe0] sm:$0xff]
    %v1493 = vld [vmem:[#allocation9 + $0xe8] sm:$0xff]
    %v1494 = vld [vmem:[#allocation9 + $0xf0] sm:$0xff]
    %v1495 = vld [vmem:[#allocation9 + $0xf8] sm:$0xff]
    %v1496 = vld [vmem:[#allocation9 + $0x100] sm:$0xff]
    %v1497 = vld [vmem:[#allocation9 + $0x108] sm:$0xff]
    %v1498 = vld [vmem:[#allocation9 + $0x110] sm:$0xff]
    %v1499 = vld [vmem:[#allocation9 + $0x118] sm:$0xff]
    %v1500 = vld [vmem:[#allocation9 + $0x120] sm:$0xff]
    %v1501 = vld [vmem:[#allocation9 + $0x128] sm:$0xff]
    %v1502 = vld [vmem:[#allocation9 + $0x130] sm:$0xff]
    %v1503 = vld [vmem:[#allocation9 + $0x138] sm:$0xff]
    %v1504 = vld [vmem:[#allocation9 + $0x140] sm:$0xff]
    %v1505 = vld [vmem:[#allocation9 + $0x148] sm:$0xff]
    %v1506 = vld [vmem:[#allocation9 + $0x150] sm:$0xff]
    %v1507 = vld [vmem:[#allocation9 + $0x158] sm:$0xff]
    %v1508 = vld [vmem:[#allocation9 + $0x160] sm:$0xff]
    %v1509 = vld [vmem:[#allocation9 + $0x168] sm:$0xff]
    %v1510 = vld [vmem:[#allocation9 + $0x170] sm:$0xff]
    %v1511 = vld [vmem:[#allocation9 + $0x178] sm:$0xff]
    %v1512 = vld [vmem:[#allocation9 + $0x180] sm:$0xff]
    %v1513 = vld [vmem:[#allocation9 + $0x188] sm:$0xff]
    %v1514 = vld [vmem:[#allocation9 + $0x190] sm:$0xff]
    %v1515 = vld [vmem:[#allocation9 + $0x198] sm:$0xff]
    %v1516 = vld [vmem:[#allocation9 + $0x1a0] sm:$0xff]
    %v1517 = vld [vmem:[#allocation9 + $0x1a8] sm:$0xff]
    %v1518 = vld [vmem:[#allocation9 + $0x1b0] sm:$0xff]
    %v1519 = vld [vmem:[#allocation9 + $0x1b8] sm:$0xff]
    %v1520 = vld [vmem:[#allocation9 + $0x1c0] sm:$0xff]
    %v1521 = vld [vmem:[#allocation9 + $0x1c8] sm:$0xff]
    %v1522 = vld [vmem:[#allocation9 + $0x1d0] sm:$0xff]
    %v1523 = vld [vmem:[#allocation9 + $0x1d8] sm:$0xff]
    %v1524 = vld [vmem:[#allocation9 + $0x1e0] sm:$0xff]
    %v1525 = vld [vmem:[#allocation9 + $0x1e8] sm:$0xff]
    %v1526 = vld [vmem:[#allocation9 + $0x1f0] sm:$0xff]
    %v1527 = vld [vmem:[#allocation9 + $0x1f8] sm:$0xff]
    %1528 = vmatprep.subr.mxu0 %v1465
    %1529 = vmatpush1.msra.mxu0 %v1464
    %1530 = vmatprep.subr.mxu0 %v1469
    %1531 = vmatpush1.msra.mxu0 %v1468
    %1532 = vmatprep.subr.mxu0 %v1473
    %1533 = vmatpush1.msra.mxu0 %v1472
    %1534 = vmatprep.subr.mxu0 %v1477
    %1535 = vmatpush1.msra.mxu0 %v1476
    %1536 = vmatprep.subr.mxu0 %v1481
    %1537 = vmatpush1.msra.mxu0 %v1480
    %1538 = vmatprep.subr.mxu0 %v1485
    %1539 = vmatpush1.msra.mxu0 %v1484
    %1540 = vmatprep.subr.mxu0 %v1489
    %1541 = vmatpush1.msra.mxu0 %v1488
    %1542 = vmatprep.subr.mxu0 %v1493
    %1543 = vmatpush1.msra.mxu0 %v1492
    %1544 = vmatprep.subr.mxu0 %v1497
    %1545 = vmatpush1.msra.mxu0 %v1496
    %1546 = vmatprep.subr.mxu0 %v1501
    %1547 = vmatpush1.msra.mxu0 %v1500
    %1548 = vmatprep.subr.mxu0 %v1505
    %1549 = vmatpush1.msra.mxu0 %v1504
    %1550 = vmatprep.subr.mxu0 %v1509
    %1551 = vmatpush1.msra.mxu0 %v1508
    %1552 = vmatprep.subr.mxu0 %v1513
    %1553 = vmatpush1.msra.mxu0 %v1512
    %1554 = vmatprep.subr.mxu0 %v1517
    %1555 = vmatpush1.msra.mxu0 %v1516
    %1556 = vmatprep.subr.mxu0 %v1521
    %1557 = vmatpush1.msra.mxu0 %v1520
    %1558 = vmatprep.subr.mxu0 %v1525
    %1559 = vmatpush1.msra.mxu0 %v1524
    %1560 = vmatprep.subr.mxu0 0.0
    %1561 = vmatpush1.msra.mxu0 0.0
    %1562 = vmatprep.subr.mxu0 0.0
    %1563 = vmatpush1.msra.mxu0 0.0
    %1564 = vmatprep.subr.mxu0 0.0
    %1565 = vmatpush1.msra.mxu0 0.0
    %1566 = vmatprep.subr.mxu0 0.0
    %1567 = vmatpush1.msra.mxu0 0.0
    %1568 = vmatprep.subr.mxu0 0.0
    %1569 = vmatpush1.msra.mxu0 0.0
    %1570 = vmatprep.subr.mxu0 0.0
    %1571 = vmatpush1.msra.mxu0 0.0
    %1572 = vmatprep.subr.mxu0 0.0
    %1573 = vmatpush1.msra.mxu0 0.0
    %1574 = vmatprep.subr.mxu0 0.0
    %1575 = vmatpush1.msra.mxu0 0.0
    %1576 = vmatprep.subr.mxu0 0.0
    %1577 = vmatpush1.msra.mxu0 0.0
    %1578 = vmatprep.subr.mxu0 0.0
    %1579 = vmatpush1.msra.mxu0 0.0
    %1580 = vmatprep.subr.mxu0 0.0
    %1581 = vmatpush1.msra.mxu0 0.0
    %1582 = vmatprep.subr.mxu0 0.0
    %1583 = vmatpush1.msra.mxu0 0.0
    %1584 = vmatprep.subr.mxu0 0.0
    %1585 = vmatpush1.msra.mxu0 0.0
    %1586 = vmatprep.subr.mxu0 0.0
    %1587 = vmatpush1.msra.mxu0 0.0
    %1588 = vmatprep.subr.mxu0 0.0
    %1589 = vmatpush1.msra.mxu0 0.0
    %1590 = vmatprep.subr.mxu0 0.0
    %1591 = vmatpush1.msra.mxu0 0.0
    %1592 = vmatprep.mubr.f32.mxu0 0.0
    %1593 = vmatmul.mubr.f32.gmra.mrb[0].mxu0 %v1458
    %v1594 = vpop.f32.mrb[0].mxu0
    %v1595 = vadd.f32 0.0, %v1594
    %v1596 = vpop.f32.mrb[0].mxu0
    %v1597 = vadd.f32 0.0, %v1596
    %1598 = vdwg.mxu0
    %1599 = vmatprep.subr.mxu0 %v1467
    %1600 = vmatpush1.msra.mxu0 %v1466
    %1601 = vmatprep.subr.mxu0 %v1471
    %1602 = vmatpush1.msra.mxu0 %v1470
    %1603 = vmatprep.subr.mxu0 %v1475
    %1604 = vmatpush1.msra.mxu0 %v1474
    %1605 = vmatprep.subr.mxu0 %v1479
    %1606 = vmatpush1.msra.mxu0 %v1478
    %1607 = vmatprep.subr.mxu0 %v1483
    %1608 = vmatpush1.msra.mxu0 %v1482
    %1609 = vmatprep.subr.mxu0 %v1487
    %1610 = vmatpush1.msra.mxu0 %v1486
    %1611 = vmatprep.subr.mxu0 %v1491
    %1612 = vmatpush1.msra.mxu0 %v1490
    %1613 = vmatprep.subr.mxu0 %v1495
    %1614 = vmatpush1.msra.mxu0 %v1494
    %1615 = vmatprep.subr.mxu0 %v1499
    %1616 = vmatpush1.msra.mxu0 %v1498
    %1617 = vmatprep.subr.mxu0 %v1503
    %1618 = vmatpush1.msra.mxu0 %v1502
    %1619 = vmatprep.subr.mxu0 %v1507
    %1620 = vmatpush1.msra.mxu0 %v1506
    %1621 = vmatprep.subr.mxu0 %v1511
    %1622 = vmatpush1.msra.mxu0 %v1510
    %1623 = vmatprep.subr.mxu0 %v1515
    %1624 = vmatpush1.msra.mxu0 %v1514
    %1625 = vmatprep.subr.mxu0 %v1519
    %1626 = vmatpush1.msra.mxu0 %v1518
    %1627 = vmatprep.subr.mxu0 %v1523
    %1628 = vmatpush1.msra.mxu0 %v1522
    %1629 = vmatprep.subr.mxu0 %v1527
    %1630 = vmatpush1.msra.mxu0 %v1526
    %1631 = vmatprep.subr.mxu0 0.0
    %1632 = vmatpush1.msra.mxu0 0.0
    %1633 = vmatprep.subr.mxu0 0.0
    %1634 = vmatpush1.msra.mxu0 0.0
    %1635 = vmatprep.subr.mxu0 0.0
    %1636 = vmatpush1.msra.mxu0 0.0
    %1637 = vmatprep.subr.mxu0 0.0
    %1638 = vmatpush1.msra.mxu0 0.0
    %1639 = vmatprep.subr.mxu0 0.0
    %1640 = vmatpush1.msra.mxu0 0.0
    %1641 = vmatprep.subr.mxu0 0.0
    %1642 = vmatpush1.msra.mxu0 0.0
    %1643 = vmatprep.subr.mxu0 0.0
    %1644 = vmatpush1.msra.mxu0 0.0
    %1645 = vmatprep.subr.mxu0 0.0
    %1646 = vmatpush1.msra.mxu0 0.0
    %1647 = vmatprep.subr.mxu0 0.0
    %1648 = vmatpush1.msra.mxu0 0.0
    %1649 = vmatprep.subr.mxu0 0.0
    %1650 = vmatpush1.msra.mxu0 0.0
    %1651 = vmatprep.subr.mxu0 0.0
    %1652 = vmatpush1.msra.mxu0 0.0
    %1653 = vmatprep.subr.mxu0 0.0
    %1654 = vmatpush1.msra.mxu0 0.0
    %1655 = vmatprep.subr.mxu0 0.0
    %1656 = vmatpush1.msra.mxu0 0.0
    %1657 = vmatprep.subr.mxu0 0.0
    %1658 = vmatpush1.msra.mxu0 0.0
    %1659 = vmatprep.subr.mxu0 0.0
    %1660 = vmatpush1.msra.mxu0 0.0
    %1661 = vmatprep.subr.mxu0 0.0
    %1662 = vmatpush1.msra.mxu0 0.0
    %1663 = vmatprep.mubr.f32.mxu0 0.0
    %1664 = vmatmul.mubr.f32.gmra.mrb[0].mxu0 %v1458
    %v1665 = vpop.f32.mrb[0].mxu0
    %v1666 = vadd.f32 0.0, %v1665
    %v1667 = vpop.f32.mrb[0].mxu0
    %v1668 = vadd.f32 0.0, %v1667
    %1669 = vdwg.mxu0
    %v1670 = vadd.f32 %v1460, %v1595
    %v1671 = vadd.f32 %v1461, %v1597
    %v1672 = vadd.f32 %v1462, %v1666
    %v1673 = vadd.f32 %v1463, %v1668
    %v1674 = vxor.u32 %v1670, 2147483648
    %v1675 = vxor.u32 %v1671, 2147483648
    %v1676 = vxor.u32 %v1672, 2147483648
    %v1677 = vmul.f32 %v1674, 1.442695
    %v1678 = vpow.pop %v1677
    %v1679 = vmul.f32 %v1675, 1.442695
    %v1680 = vpow.pop %v1679
    %v1681 = vmul.f32 %v1676, 1.442695
    %v1682 = vpow.pop %v1681
    %v1683 = vadd.f32 %v1678, 1.0
    %v1684 = vadd.f32 %v1680, 1.0
    %v1685 = vadd.f32 %v1682, 1.0
    %v1686 = vrcp.pop %v1683
    %v1687 = vmul.f32 1.0, %v1686
    %v1688 = vrcp.pop %v1684
    %v1689 = vmul.f32 1.0, %v1688
    %v1690 = vrcp.pop %v1685
    %v1691 = vmul.f32 1.0, %v1690
    %v1692 = vtanh.pop %v1673
    %v1693 = vmul.f32 %v1689, %v1456
    %v1694 = vmul.f32 %v1687, %v1692
    %v1695 = vadd.f32 %v1693, %v1694
    %v1696 = vtanh.pop %v1695
    %v1697 = vmul.f32 %v1691, %v1696
    %1698 = vst [vmem:[#allocation3 + $0x20] sm:$0xff] %v1697
    %v1699 = vld [vmem:[#allocation2 + $0xa0] sm:$0xff]
    %v1700 = vld [vmem:[#allocation2 + $0xa8] sm:$0xff]
    %v1701 = vld [vmem:[#allocation2 + $0xb0] sm:$0xff]
    %v1702 = vld [vmem:[#allocation2 + $0xb8] sm:$0xff]
    %v1703 = vld [vmem:[#allocation9] sm:$0xff]
    %v1704 = vld [vmem:[#allocation9 + $0x8] sm:$0xff]
    %v1705 = vld [vmem:[#allocation9 + $0x10] sm:$0xff]
    %v1706 = vld [vmem:[#allocation9 + $0x18] sm:$0xff]
    %v1707 = vld [vmem:[#allocation9 + $0x20] sm:$0xff]
    %v1708 = vld [vmem:[#allocation9 + $0x28] sm:$0xff]
    %v1709 = vld [vmem:[#allocation9 + $0x30] sm:$0xff]
    %v1710 = vld [vmem:[#allocation9 + $0x38] sm:$0xff]
    %v1711 = vld [vmem:[#allocation9 + $0x40] sm:$0xff]
    %v1712 = vld [vmem:[#allocation9 + $0x48] sm:$0xff]
    %v1713 = vld [vmem:[#allocation9 + $0x50] sm:$0xff]
    %v1714 = vld [vmem:[#allocation9 + $0x58] sm:$0xff]
    %v1715 = vld [vmem:[#allocation9 + $0x60] sm:$0xff]
    %v1716 = vld [vmem:[#allocation9 + $0x68] sm:$0xff]
    %v1717 = vld [vmem:[#allocation9 + $0x70] sm:$0xff]
    %v1718 = vld [vmem:[#allocation9 + $0x78] sm:$0xff]
    %v1719 = vld [vmem:[#allocation9 + $0x80] sm:$0xff]
    %v1720 = vld [vmem:[#allocation9 + $0x88] sm:$0xff]
    %v1721 = vld [vmem:[#allocation9 + $0x90] sm:$0xff]
    %v1722 = vld [vmem:[#allocation9 + $0x98] sm:$0xff]
    %v1723 = vld [vmem:[#allocation9 + $0xa0] sm:$0xff]
    %v1724 = vld [vmem:[#allocation9 + $0xa8] sm:$0xff]
    %v1725 = vld [vmem:[#allocation9 + $0xb0] sm:$0xff]
    %v1726 = vld [vmem:[#allocation9 + $0xb8] sm:$0xff]
    %v1727 = vld [vmem:[#allocation9 + $0xc0] sm:$0xff]
    %v1728 = vld [vmem:[#allocation9 + $0xc8] sm:$0xff]
    %v1729 = vld [vmem:[#allocation9 + $0xd0] sm:$0xff]
    %v1730 = vld [vmem:[#allocation9 + $0xd8] sm:$0xff]
    %v1731 = vld [vmem:[#allocation9 + $0xe0] sm:$0xff]
    %v1732 = vld [vmem:[#allocation9 + $0xe8] sm:$0xff]
    %v1733 = vld [vmem:[#allocation9 + $0xf0] sm:$0xff]
    %v1734 = vld [vmem:[#allocation9 + $0xf8] sm:$0xff]
    %v1735 = vld [vmem:[#allocation9 + $0x100] sm:$0xff]
    %v1736 = vld [vmem:[#allocation9 + $0x108] sm:$0xff]
    %v1737 = vld [vmem:[#allocation9 + $0x110] sm:$0xff]
    %v1738 = vld [vmem:[#allocation9 + $0x118] sm:$0xff]
    %v1739 = vld [vmem:[#allocation9 + $0x120] sm:$0xff]
    %v1740 = vld [vmem:[#allocation9 + $0x128] sm:$0xff]
    %v1741 = vld [vmem:[#allocation9 + $0x130] sm:$0xff]
    %v1742 = vld [vmem:[#allocation9 + $0x138] sm:$0xff]
    %v1743 = vld [vmem:[#allocation9 + $0x140] sm:$0xff]
    %v1744 = vld [vmem:[#allocation9 + $0x148] sm:$0xff]
    %v1745 = vld [vmem:[#allocation9 + $0x150] sm:$0xff]
    %v1746 = vld [vmem:[#allocation9 + $0x158] sm:$0xff]
    %v1747 = vld [vmem:[#allocation9 + $0x160] sm:$0xff]
    %v1748 = vld [vmem:[#allocation9 + $0x168] sm:$0xff]
    %v1749 = vld [vmem:[#allocation9 + $0x170] sm:$0xff]
    %v1750 = vld [vmem:[#allocation9 + $0x178] sm:$0xff]
    %v1751 = vld [vmem:[#allocation9 + $0x180] sm:$0xff]
    %v1752 = vld [vmem:[#allocation9 + $0x188] sm:$0xff]
    %v1753 = vld [vmem:[#allocation9 + $0x190] sm:$0xff]
    %v1754 = vld [vmem:[#allocation9 + $0x198] sm:$0xff]
    %v1755 = vld [vmem:[#allocation9 + $0x1a0] sm:$0xff]
    %v1756 = vld [vmem:[#allocation9 + $0x1a8] sm:$0xff]
    %v1757 = vld [vmem:[#allocation9 + $0x1b0] sm:$0xff]
    %v1758 = vld [vmem:[#allocation9 + $0x1b8] sm:$0xff]
    %v1759 = vld [vmem:[#allocation9 + $0x1c0] sm:$0xff]
    %v1760 = vld [vmem:[#allocation9 + $0x1c8] sm:$0xff]
    %v1761 = vld [vmem:[#allocation9 + $0x1d0] sm:$0xff]
    %v1762 = vld [vmem:[#allocation9 + $0x1d8] sm:$0xff]
    %v1763 = vld [vmem:[#allocation9 + $0x1e0] sm:$0xff]
    %v1764 = vld [vmem:[#allocation9 + $0x1e8] sm:$0xff]
    %v1765 = vld [vmem:[#allocation9 + $0x1f0] sm:$0xff]
    %v1766 = vld [vmem:[#allocation9 + $0x1f8] sm:$0xff]
    %1767 = vmatprep.subr.mxu0 %v1704
    %1768 = vmatpush1.msra.mxu0 %v1703
    %1769 = vmatprep.subr.mxu0 %v1708
    %1770 = vmatpush1.msra.mxu0 %v1707
    %1771 = vmatprep.subr.mxu0 %v1712
    %1772 = vmatpush1.msra.mxu0 %v1711
    %1773 = vmatprep.subr.mxu0 %v1716
    %1774 = vmatpush1.msra.mxu0 %v1715
    %1775 = vmatprep.subr.mxu0 %v1720
    %1776 = vmatpush1.msra.mxu0 %v1719
    %1777 = vmatprep.subr.mxu0 %v1724
    %1778 = vmatpush1.msra.mxu0 %v1723
    %1779 = vmatprep.subr.mxu0 %v1728
    %1780 = vmatpush1.msra.mxu0 %v1727
    %1781 = vmatprep.subr.mxu0 %v1732
    %1782 = vmatpush1.msra.mxu0 %v1731
    %1783 = vmatprep.subr.mxu0 %v1736
    %1784 = vmatpush1.msra.mxu0 %v1735
    %1785 = vmatprep.subr.mxu0 %v1740
    %1786 = vmatpush1.msra.mxu0 %v1739
    %1787 = vmatprep.subr.mxu0 %v1744
    %1788 = vmatpush1.msra.mxu0 %v1743
    %1789 = vmatprep.subr.mxu0 %v1748
    %1790 = vmatpush1.msra.mxu0 %v1747
    %1791 = vmatprep.subr.mxu0 %v1752
    %1792 = vmatpush1.msra.mxu0 %v1751
    %1793 = vmatprep.subr.mxu0 %v1756
    %1794 = vmatpush1.msra.mxu0 %v1755
    %1795 = vmatprep.subr.mxu0 %v1760
    %1796 = vmatpush1.msra.mxu0 %v1759
    %1797 = vmatprep.subr.mxu0 %v1764
    %1798 = vmatpush1.msra.mxu0 %v1763
    %1799 = vmatprep.subr.mxu0 0.0
    %1800 = vmatpush1.msra.mxu0 0.0
    %1801 = vmatprep.subr.mxu0 0.0
    %1802 = vmatpush1.msra.mxu0 0.0
    %1803 = vmatprep.subr.mxu0 0.0
    %1804 = vmatpush1.msra.mxu0 0.0
    %1805 = vmatprep.subr.mxu0 0.0
    %1806 = vmatpush1.msra.mxu0 0.0
    %1807 = vmatprep.subr.mxu0 0.0
    %1808 = vmatpush1.msra.mxu0 0.0
    %1809 = vmatprep.subr.mxu0 0.0
    %1810 = vmatpush1.msra.mxu0 0.0
    %1811 = vmatprep.subr.mxu0 0.0
    %1812 = vmatpush1.msra.mxu0 0.0
    %1813 = vmatprep.subr.mxu0 0.0
    %1814 = vmatpush1.msra.mxu0 0.0
    %1815 = vmatprep.subr.mxu0 0.0
    %1816 = vmatpush1.msra.mxu0 0.0
    %1817 = vmatprep.subr.mxu0 0.0
    %1818 = vmatpush1.msra.mxu0 0.0
    %1819 = vmatprep.subr.mxu0 0.0
    %1820 = vmatpush1.msra.mxu0 0.0
    %1821 = vmatprep.subr.mxu0 0.0
    %1822 = vmatpush1.msra.mxu0 0.0
    %1823 = vmatprep.subr.mxu0 0.0
    %1824 = vmatpush1.msra.mxu0 0.0
    %1825 = vmatprep.subr.mxu0 0.0
    %1826 = vmatpush1.msra.mxu0 0.0
    %1827 = vmatprep.subr.mxu0 0.0
    %1828 = vmatpush1.msra.mxu0 0.0
    %1829 = vmatprep.subr.mxu0 0.0
    %1830 = vmatpush1.msra.mxu0 0.0
    %1831 = vmatprep.mubr.f32.mxu0 0.0
    %1832 = vmatmul.mubr.f32.gmra.mrb[0].mxu0 %v1697
    %v1833 = vpop.f32.mrb[0].mxu0
    %v1834 = vadd.f32 0.0, %v1833
    %v1835 = vpop.f32.mrb[0].mxu0
    %v1836 = vadd.f32 0.0, %v1835
    %1837 = vdwg.mxu0
    %1838 = vmatprep.subr.mxu0 %v1706
    %1839 = vmatpush1.msra.mxu0 %v1705
    %1840 = vmatprep.subr.mxu0 %v1710
    %1841 = vmatpush1.msra.mxu0 %v1709
    %1842 = vmatprep.subr.mxu0 %v1714
    %1843 = vmatpush1.msra.mxu0 %v1713
    %1844 = vmatprep.subr.mxu0 %v1718
    %1845 = vmatpush1.msra.mxu0 %v1717
    %1846 = vmatprep.subr.mxu0 %v1722
    %1847 = vmatpush1.msra.mxu0 %v1721
    %1848 = vmatprep.subr.mxu0 %v1726
    %1849 = vmatpush1.msra.mxu0 %v1725
    %1850 = vmatprep.subr.mxu0 %v1730
    %1851 = vmatpush1.msra.mxu0 %v1729
    %1852 = vmatprep.subr.mxu0 %v1734
    %1853 = vmatpush1.msra.mxu0 %v1733
    %1854 = vmatprep.subr.mxu0 %v1738
    %1855 = vmatpush1.msra.mxu0 %v1737
    %1856 = vmatprep.subr.mxu0 %v1742
    %1857 = vmatpush1.msra.mxu0 %v1741
    %1858 = vmatprep.subr.mxu0 %v1746
    %1859 = vmatpush1.msra.mxu0 %v1745
    %1860 = vmatprep.subr.mxu0 %v1750
    %1861 = vmatpush1.msra.mxu0 %v1749
    %1862 = vmatprep.subr.mxu0 %v1754
    %1863 = vmatpush1.msra.mxu0 %v1753
    %1864 = vmatprep.subr.mxu0 %v1758
    %1865 = vmatpush1.msra.mxu0 %v1757
    %1866 = vmatprep.subr.mxu0 %v1762
    %1867 = vmatpush1.msra.mxu0 %v1761
    %1868 = vmatprep.subr.mxu0 %v1766
    %1869 = vmatpush1.msra.mxu0 %v1765
    %1870 = vmatprep.subr.mxu0 0.0
    %1871 = vmatpush1.msra.mxu0 0.0
    %1872 = vmatprep.subr.mxu0 0.0
    %1873 = vmatpush1.msra.mxu0 0.0
    %1874 = vmatprep.subr.mxu0 0.0
    %1875 = vmatpush1.msra.mxu0 0.0
    %1876 = vmatprep.subr.mxu0 0.0
    %1877 = vmatpush1.msra.mxu0 0.0
    %1878 = vmatprep.subr.mxu0 0.0
    %1879 = vmatpush1.msra.mxu0 0.0
    %1880 = vmatprep.subr.mxu0 0.0
    %1881 = vmatpush1.msra.mxu0 0.0
    %1882 = vmatprep.subr.mxu0 0.0
    %1883 = vmatpush1.msra.mxu0 0.0
    %1884 = vmatprep.subr.mxu0 0.0
    %1885 = vmatpush1.msra.mxu0 0.0
    %1886 = vmatprep.subr.mxu0 0.0
    %1887 = vmatpush1.msra.mxu0 0.0
    %1888 = vmatprep.subr.mxu0 0.0
    %1889 = vmatpush1.msra.mxu0 0.0
    %1890 = vmatprep.subr.mxu0 0.0
    %1891 = vmatpush1.msra.mxu0 0.0
    %1892 = vmatprep.subr.mxu0 0.0
    %1893 = vmatpush1.msra.mxu0 0.0
    %1894 = vmatprep.subr.mxu0 0.0
    %1895 = vmatpush1.msra.mxu0 0.0
    %1896 = vmatprep.subr.mxu0 0.0
    %1897 = vmatpush1.msra.mxu0 0.0
    %1898 = vmatprep.subr.mxu0 0.0
    %1899 = vmatpush1.msra.mxu0 0.0
    %1900 = vmatprep.subr.mxu0 0.0
    %1901 = vmatpush1.msra.mxu0 0.0
    %1902 = vmatprep.mubr.f32.mxu0 0.0
    %1903 = vmatmul.mubr.f32.gmra.mrb[0].mxu0 %v1697
    %v1904 = vpop.f32.mrb[0].mxu0
    %v1905 = vadd.f32 0.0, %v1904
    %v1906 = vpop.f32.mrb[0].mxu0
    %v1907 = vadd.f32 0.0, %v1906
    %1908 = vdwg.mxu0
    %v1909 = vadd.f32 %v1699, %v1834
    %v1910 = vadd.f32 %v1700, %v1836
    %v1911 = vadd.f32 %v1701, %v1905
    %v1912 = vadd.f32 %v1702, %v1907
    %v1913 = vxor.u32 %v1909, 2147483648
    %v1914 = vxor.u32 %v1910, 2147483648
    %v1915 = vxor.u32 %v1911, 2147483648
    %v1916 = vmul.f32 %v1913, 1.442695
    %v1917 = vpow.pop %v1916
    %v1918 = vmul.f32 %v1914, 1.442695
    %v1919 = vpow.pop %v1918
    %v1920 = vmul.f32 %v1915, 1.442695
    %v1921 = vpow.pop %v1920
    %v1922 = vadd.f32 %v1917, 1.0
    %v1923 = vadd.f32 %v1919, 1.0
    %v1924 = vadd.f32 %v1921, 1.0
    %v1925 = vrcp.pop %v1922
    %v1926 = vmul.f32 1.0, %v1925
    %v1927 = vrcp.pop %v1923
    %v1928 = vmul.f32 1.0, %v1927
    %v1929 = vrcp.pop %v1924
    %v1930 = vmul.f32 1.0, %v1929
    %v1931 = vtanh.pop %v1912
    %v1932 = vmul.f32 %v1928, %v1695
    %v1933 = vmul.f32 %v1926, %v1931
    %v1934 = vadd.f32 %v1932, %v1933
    %v1935 = vtanh.pop %v1934
    %v1936 = vmul.f32 %v1930, %v1935
    %1937 = vst [vmem:[#allocation3 + $0x28] sm:$0xff] %v1936
    %v1938 = vld [vmem:[#allocation2 + $0xc0] sm:$0xff]
    %v1939 = vld [vmem:[#allocation2 + $0xc8] sm:$0xff]
    %v1940 = vld [vmem:[#allocation2 + $0xd0] sm:$0xff]
    %v1941 = vld [vmem:[#allocation2 + $0xd8] sm:$0xff]
    %v1942 = vld [vmem:[#allocation9] sm:$0xff]
    %v1943 = vld [vmem:[#allocation9 + $0x8] sm:$0xff]
    %v1944 = vld [vmem:[#allocation9 + $0x10] sm:$0xff]
    %v1945 = vld [vmem:[#allocation9 + $0x18] sm:$0xff]
    %v1946 = vld [vmem:[#allocation9 + $0x20] sm:$0xff]
    %v1947 = vld [vmem:[#allocation9 + $0x28] sm:$0xff]
    %v1948 = vld [vmem:[#allocation9 + $0x30] sm:$0xff]
    %v1949 = vld [vmem:[#allocation9 + $0x38] sm:$0xff]
    %v1950 = vld [vmem:[#allocation9 + $0x40] sm:$0xff]
    %v1951 = vld [vmem:[#allocation9 + $0x48] sm:$0xff]
    %v1952 = vld [vmem:[#allocation9 + $0x50] sm:$0xff]
    %v1953 = vld [vmem:[#allocation9 + $0x58] sm:$0xff]
    %v1954 = vld [vmem:[#allocation9 + $0x60] sm:$0xff]
    %v1955 = vld [vmem:[#allocation9 + $0x68] sm:$0xff]
    %v1956 = vld [vmem:[#allocation9 + $0x70] sm:$0xff]
    %v1957 = vld [vmem:[#allocation9 + $0x78] sm:$0xff]
    %v1958 = vld [vmem:[#allocation9 + $0x80] sm:$0xff]
    %v1959 = vld [vmem:[#allocation9 + $0x88] sm:$0xff]
    %v1960 = vld [vmem:[#allocation9 + $0x90] sm:$0xff]
    %v1961 = vld [vmem:[#allocation9 + $0x98] sm:$0xff]
    %v1962 = vld [vmem:[#allocation9 + $0xa0] sm:$0xff]
    %v1963 = vld [vmem:[#allocation9 + $0xa8] sm:$0xff]
    %v1964 = vld [vmem:[#allocation9 + $0xb0] sm:$0xff]
    %v1965 = vld [vmem:[#allocation9 + $0xb8] sm:$0xff]
    %v1966 = vld [vmem:[#allocation9 + $0xc0] sm:$0xff]
    %v1967 = vld [vmem:[#allocation9 + $0xc8] sm:$0xff]
    %v1968 = vld [vmem:[#allocation9 + $0xd0] sm:$0xff]
    %v1969 = vld [vmem:[#allocation9 + $0xd8] sm:$0xff]
    %v1970 = vld [vmem:[#allocation9 + $0xe0] sm:$0xff]
    %v1971 = vld [vmem:[#allocation9 + $0xe8] sm:$0xff]
    %v1972 = vld [vmem:[#allocation9 + $0xf0] sm:$0xff]
    %v1973 = vld [vmem:[#allocation9 + $0xf8] sm:$0xff]
    %v1974 = vld [vmem:[#allocation9 + $0x100] sm:$0xff]
    %v1975 = vld [vmem:[#allocation9 + $0x108] sm:$0xff]
    %v1976 = vld [vmem:[#allocation9 + $0x110] sm:$0xff]
    %v1977 = vld [vmem:[#allocation9 + $0x118] sm:$0xff]
    %v1978 = vld [vmem:[#allocation9 + $0x120] sm:$0xff]
    %v1979 = vld [vmem:[#allocation9 + $0x128] sm:$0xff]
    %v1980 = vld [vmem:[#allocation9 + $0x130] sm:$0xff]
    %v1981 = vld [vmem:[#allocation9 + $0x138] sm:$0xff]
    %v1982 = vld [vmem:[#allocation9 + $0x140] sm:$0xff]
    %v1983 = vld [vmem:[#allocation9 + $0x148] sm:$0xff]
    %v1984 = vld [vmem:[#allocation9 + $0x150] sm:$0xff]
    %v1985 = vld [vmem:[#allocation9 + $0x158] sm:$0xff]
    %v1986 = vld [vmem:[#allocation9 + $0x160] sm:$0xff]
    %v1987 = vld [vmem:[#allocation9 + $0x168] sm:$0xff]
    %v1988 = vld [vmem:[#allocation9 + $0x170] sm:$0xff]
    %v1989 = vld [vmem:[#allocation9 + $0x178] sm:$0xff]
    %v1990 = vld [vmem:[#allocation9 + $0x180] sm:$0xff]
    %v1991 = vld [vmem:[#allocation9 + $0x188] sm:$0xff]
    %v1992 = vld [vmem:[#allocation9 + $0x190] sm:$0xff]
    %v1993 = vld [vmem:[#allocation9 + $0x198] sm:$0xff]
    %v1994 = vld [vmem:[#allocation9 + $0x1a0] sm:$0xff]
    %v1995 = vld [vmem:[#allocation9 + $0x1a8] sm:$0xff]
    %v1996 = vld [vmem:[#allocation9 + $0x1b0] sm:$0xff]
    %v1997 = vld [vmem:[#allocation9 + $0x1b8] sm:$0xff]
    %v1998 = vld [vmem:[#allocation9 + $0x1c0] sm:$0xff]
    %v1999 = vld [vmem:[#allocation9 + $0x1c8] sm:$0xff]
    %v2000 = vld [vmem:[#allocation9 + $0x1d0] sm:$0xff]
    %v2001 = vld [vmem:[#allocation9 + $0x1d8] sm:$0xff]
    %v2002 = vld [vmem:[#allocation9 + $0x1e0] sm:$0xff]
    %v2003 = vld [vmem:[#allocation9 + $0x1e8] sm:$0xff]
    %v2004 = vld [vmem:[#allocation9 + $0x1f0] sm:$0xff]
    %v2005 = vld [vmem:[#allocation9 + $0x1f8] sm:$0xff]
    %2006 = vmatprep.subr.mxu0 %v1943
    %2007 = vmatpush1.msra.mxu0 %v1942
    %2008 = vmatprep.subr.mxu0 %v1947
    %2009 = vmatpush1.msra.mxu0 %v1946
    %2010 = vmatprep.subr.mxu0 %v1951
    %2011 = vmatpush1.msra.mxu0 %v1950
    %2012 = vmatprep.subr.mxu0 %v1955
    %2013 = vmatpush1.msra.mxu0 %v1954
    %2014 = vmatprep.subr.mxu0 %v1959
    %2015 = vmatpush1.msra.mxu0 %v1958
    %2016 = vmatprep.subr.mxu0 %v1963
    %2017 = vmatpush1.msra.mxu0 %v1962
    %2018 = vmatprep.subr.mxu0 %v1967
    %2019 = vmatpush1.msra.mxu0 %v1966
    %2020 = vmatprep.subr.mxu0 %v1971
    %2021 = vmatpush1.msra.mxu0 %v1970
    %2022 = vmatprep.subr.mxu0 %v1975
    %2023 = vmatpush1.msra.mxu0 %v1974
    %2024 = vmatprep.subr.mxu0 %v1979
    %2025 = vmatpush1.msra.mxu0 %v1978
    %2026 = vmatprep.subr.mxu0 %v1983
    %2027 = vmatpush1.msra.mxu0 %v1982
    %2028 = vmatprep.subr.mxu0 %v1987
    %2029 = vmatpush1.msra.mxu0 %v1986
    %2030 = vmatprep.subr.mxu0 %v1991
    %2031 = vmatpush1.msra.mxu0 %v1990
    %2032 = vmatprep.subr.mxu0 %v1995
    %2033 = vmatpush1.msra.mxu0 %v1994
    %2034 = vmatprep.subr.mxu0 %v1999
    %2035 = vmatpush1.msra.mxu0 %v1998
    %2036 = vmatprep.subr.mxu0 %v2003
    %2037 = vmatpush1.msra.mxu0 %v2002
    %2038 = vmatprep.subr.mxu0 0.0
    %2039 = vmatpush1.msra.mxu0 0.0
    %2040 = vmatprep.subr.mxu0 0.0
    %2041 = vmatpush1.msra.mxu0 0.0
    %2042 = vmatprep.subr.mxu0 0.0
    %2043 = vmatpush1.msra.mxu0 0.0
    %2044 = vmatprep.subr.mxu0 0.0
    %2045 = vmatpush1.msra.mxu0 0.0
    %2046 = vmatprep.subr.mxu0 0.0
    %2047 = vmatpush1.msra.mxu0 0.0
    %2048 = vmatprep.subr.mxu0 0.0
    %2049 = vmatpush1.msra.mxu0 0.0
    %2050 = vmatprep.subr.mxu0 0.0
    %2051 = vmatpush1.msra.mxu0 0.0
    %2052 = vmatprep.subr.mxu0 0.0
    %2053 = vmatpush1.msra.mxu0 0.0
    %2054 = vmatprep.subr.mxu0 0.0
    %2055 = vmatpush1.msra.mxu0 0.0
    %2056 = vmatprep.subr.mxu0 0.0
    %2057 = vmatpush1.msra.mxu0 0.0
    %2058 = vmatprep.subr.mxu0 0.0
    %2059 = vmatpush1.msra.mxu0 0.0
    %2060 = vmatprep.subr.mxu0 0.0
    %2061 = vmatpush1.msra.mxu0 0.0
    %2062 = vmatprep.subr.mxu0 0.0
    %2063 = vmatpush1.msra.mxu0 0.0
    %2064 = vmatprep.subr.mxu0 0.0
    %2065 = vmatpush1.msra.mxu0 0.0
    %2066 = vmatprep.subr.mxu0 0.0
    %2067 = vmatpush1.msra.mxu0 0.0
    %2068 = vmatprep.subr.mxu0 0.0
    %2069 = vmatpush1.msra.mxu0 0.0
    %2070 = vmatprep.mubr.f32.mxu0 0.0
    %2071 = vmatmul.mubr.f32.gmra.mrb[0].mxu0 %v1936
    %v2072 = vpop.f32.mrb[0].mxu0
    %v2073 = vadd.f32 0.0, %v2072
    %v2074 = vpop.f32.mrb[0].mxu0
    %v2075 = vadd.f32 0.0, %v2074
    %2076 = vdwg.mxu0
    %2077 = vmatprep.subr.mxu0 %v1945
    %2078 = vmatpush1.msra.mxu0 %v1944
    %2079 = vmatprep.subr.mxu0 %v1949
    %2080 = vmatpush1.msra.mxu0 %v1948
    %2081 = vmatprep.subr.mxu0 %v1953
    %2082 = vmatpush1.msra.mxu0 %v1952
    %2083 = vmatprep.subr.mxu0 %v1957
    %2084 = vmatpush1.msra.mxu0 %v1956
    %2085 = vmatprep.subr.mxu0 %v1961
    %2086 = vmatpush1.msra.mxu0 %v1960
    %2087 = vmatprep.subr.mxu0 %v1965
    %2088 = vmatpush1.msra.mxu0 %v1964
    %2089 = vmatprep.subr.mxu0 %v1969
    %2090 = vmatpush1.msra.mxu0 %v1968
    %2091 = vmatprep.subr.mxu0 %v1973
    %2092 = vmatpush1.msra.mxu0 %v1972
    %2093 = vmatprep.subr.mxu0 %v1977
    %2094 = vmatpush1.msra.mxu0 %v1976
    %2095 = vmatprep.subr.mxu0 %v1981
    %2096 = vmatpush1.msra.mxu0 %v1980
    %2097 = vmatprep.subr.mxu0 %v1985
    %2098 = vmatpush1.msra.mxu0 %v1984
    %2099 = vmatprep.subr.mxu0 %v1989
    %2100 = vmatpush1.msra.mxu0 %v1988
    %2101 = vmatprep.subr.mxu0 %v1993
    %2102 = vmatpush1.msra.mxu0 %v1992
    %2103 = vmatprep.subr.mxu0 %v1997
    %2104 = vmatpush1.msra.mxu0 %v1996
    %2105 = vmatprep.subr.mxu0 %v2001
    %2106 = vmatpush1.msra.mxu0 %v2000
    %2107 = vmatprep.subr.mxu0 %v2005
    %2108 = vmatpush1.msra.mxu0 %v2004
    %2109 = vmatprep.subr.mxu0 0.0
    %2110 = vmatpush1.msra.mxu0 0.0
    %2111 = vmatprep.subr.mxu0 0.0
    %2112 = vmatpush1.msra.mxu0 0.0
    %2113 = vmatprep.subr.mxu0 0.0
    %2114 = vmatpush1.msra.mxu0 0.0
    %2115 = vmatprep.subr.mxu0 0.0
    %2116 = vmatpush1.msra.mxu0 0.0
    %2117 = vmatprep.subr.mxu0 0.0
    %2118 = vmatpush1.msra.mxu0 0.0
    %2119 = vmatprep.subr.mxu0 0.0
    %2120 = vmatpush1.msra.mxu0 0.0
    %2121 = vmatprep.subr.mxu0 0.0
    %2122 = vmatpush1.msra.mxu0 0.0
    %2123 = vmatprep.subr.mxu0 0.0
    %2124 = vmatpush1.msra.mxu0 0.0
    %2125 = vmatprep.subr.mxu0 0.0
    %2126 = vmatpush1.msra.mxu0 0.0
    %2127 = vmatprep.subr.mxu0 0.0
    %2128 = vmatpush1.msra.mxu0 0.0
    %2129 = vmatprep.subr.mxu0 0.0
    %2130 = vmatpush1.msra.mxu0 0.0
    %2131 = vmatprep.subr.mxu0 0.0
    %2132 = vmatpush1.msra.mxu0 0.0
    %2133 = vmatprep.subr.mxu0 0.0
    %2134 = vmatpush1.msra.mxu0 0.0
    %2135 = vmatprep.subr.mxu0 0.0
    %2136 = vmatpush1.msra.mxu0 0.0
    %2137 = vmatprep.subr.mxu0 0.0
    %2138 = vmatpush1.msra.mxu0 0.0
    %2139 = vmatprep.subr.mxu0 0.0
    %2140 = vmatpush1.msra.mxu0 0.0
    %2141 = vmatprep.mubr.f32.mxu0 0.0
    %2142 = vmatmul.mubr.f32.gmra.mrb[0].mxu0 %v1936
    %v2143 = vpop.f32.mrb[0].mxu0
    %v2144 = vadd.f32 0.0, %v2143
    %v2145 = vpop.f32.mrb[0].mxu0
    %v2146 = vadd.f32 0.0, %v2145
    %2147 = vdwg.mxu0
    %v2148 = vadd.f32 %v1938, %v2073
    %v2149 = vadd.f32 %v1939, %v2075
    %v2150 = vadd.f32 %v1940, %v2144
    %v2151 = vadd.f32 %v1941, %v2146
    %v2152 = vxor.u32 %v2148, 2147483648
    %v2153 = vxor.u32 %v2149, 2147483648
    %v2154 = vxor.u32 %v2150, 2147483648
    %v2155 = vmul.f32 %v2152, 1.442695
    %v2156 = vpow.pop %v2155
    %v2157 = vmul.f32 %v2153, 1.442695
    %v2158 = vpow.pop %v2157
    %v2159 = vmul.f32 %v2154, 1.442695
    %v2160 = vpow.pop %v2159
    %v2161 = vadd.f32 %v2156, 1.0
    %v2162 = vadd.f32 %v2158, 1.0
    %v2163 = vadd.f32 %v2160, 1.0
    %v2164 = vrcp.pop %v2161
    %v2165 = vmul.f32 1.0, %v2164
    %v2166 = vrcp.pop %v2162
    %v2167 = vmul.f32 1.0, %v2166
    %v2168 = vrcp.pop %v2163
    %v2169 = vmul.f32 1.0, %v2168
    %v2170 = vtanh.pop %v2151
    %v2171 = vmul.f32 %v2167, %v1934
    %v2172 = vmul.f32 %v2165, %v2170
    %v2173 = vadd.f32 %v2171, %v2172
    %v2174 = vtanh.pop %v2173
    %v2175 = vmul.f32 %v2169, %v2174
    %2176 = vst [vmem:[#allocation3 + $0x30] sm:$0xff] %v2175
    %v2177 = vld [vmem:[#allocation2 + $0xe0] sm:$0xff]
    %v2178 = vld [vmem:[#allocation2 + $0xe8] sm:$0xff]
    %v2179 = vld [vmem:[#allocation2 + $0xf0] sm:$0xff]
    %v2180 = vld [vmem:[#allocation2 + $0xf8] sm:$0xff]
    %v2181 = vld [vmem:[#allocation9] sm:$0xff]
    %v2182 = vld [vmem:[#allocation9 + $0x8] sm:$0xff]
    %v2183 = vld [vmem:[#allocation9 + $0x10] sm:$0xff]
    %v2184 = vld [vmem:[#allocation9 + $0x18] sm:$0xff]
    %v2185 = vld [vmem:[#allocation9 + $0x20] sm:$0xff]
    %v2186 = vld [vmem:[#allocation9 + $0x28] sm:$0xff]
    %v2187 = vld [vmem:[#allocation9 + $0x30] sm:$0xff]
    %v2188 = vld [vmem:[#allocation9 + $0x38] sm:$0xff]
    %v2189 = vld [vmem:[#allocation9 + $0x40] sm:$0xff]
    %v2190 = vld [vmem:[#allocation9 + $0x48] sm:$0xff]
    %v2191 = vld [vmem:[#allocation9 + $0x50] sm:$0xff]
    %v2192 = vld [vmem:[#allocation9 + $0x58] sm:$0xff]
    %v2193 = vld [vmem:[#allocation9 + $0x60] sm:$0xff]
    %v2194 = vld [vmem:[#allocation9 + $0x68] sm:$0xff]
    %v2195 = vld [vmem:[#allocation9 + $0x70] sm:$0xff]
    %v2196 = vld [vmem:[#allocation9 + $0x78] sm:$0xff]
    %v2197 = vld [vmem:[#allocation9 + $0x80] sm:$0xff]
    %v2198 = vld [vmem:[#allocation9 + $0x88] sm:$0xff]
    %v2199 = vld [vmem:[#allocation9 + $0x90] sm:$0xff]
    %v2200 = vld [vmem:[#allocation9 + $0x98] sm:$0xff]
    %v2201 = vld [vmem:[#allocation9 + $0xa0] sm:$0xff]
    %v2202 = vld [vmem:[#allocation9 + $0xa8] sm:$0xff]
    %v2203 = vld [vmem:[#allocation9 + $0xb0] sm:$0xff]
    %v2204 = vld [vmem:[#allocation9 + $0xb8] sm:$0xff]
    %v2205 = vld [vmem:[#allocation9 + $0xc0] sm:$0xff]
    %v2206 = vld [vmem:[#allocation9 + $0xc8] sm:$0xff]
    %v2207 = vld [vmem:[#allocation9 + $0xd0] sm:$0xff]
    %v2208 = vld [vmem:[#allocation9 + $0xd8] sm:$0xff]
    %v2209 = vld [vmem:[#allocation9 + $0xe0] sm:$0xff]
    %v2210 = vld [vmem:[#allocation9 + $0xe8] sm:$0xff]
    %v2211 = vld [vmem:[#allocation9 + $0xf0] sm:$0xff]
    %v2212 = vld [vmem:[#allocation9 + $0xf8] sm:$0xff]
    %v2213 = vld [vmem:[#allocation9 + $0x100] sm:$0xff]
    %v2214 = vld [vmem:[#allocation9 + $0x108] sm:$0xff]
    %v2215 = vld [vmem:[#allocation9 + $0x110] sm:$0xff]
    %v2216 = vld [vmem:[#allocation9 + $0x118] sm:$0xff]
    %v2217 = vld [vmem:[#allocation9 + $0x120] sm:$0xff]
    %v2218 = vld [vmem:[#allocation9 + $0x128] sm:$0xff]
    %v2219 = vld [vmem:[#allocation9 + $0x130] sm:$0xff]
    %v2220 = vld [vmem:[#allocation9 + $0x138] sm:$0xff]
    %v2221 = vld [vmem:[#allocation9 + $0x140] sm:$0xff]
    %v2222 = vld [vmem:[#allocation9 + $0x148] sm:$0xff]
    %v2223 = vld [vmem:[#allocation9 + $0x150] sm:$0xff]
    %v2224 = vld [vmem:[#allocation9 + $0x158] sm:$0xff]
    %v2225 = vld [vmem:[#allocation9 + $0x160] sm:$0xff]
    %v2226 = vld [vmem:[#allocation9 + $0x168] sm:$0xff]
    %v2227 = vld [vmem:[#allocation9 + $0x170] sm:$0xff]
    %v2228 = vld [vmem:[#allocation9 + $0x178] sm:$0xff]
    %v2229 = vld [vmem:[#allocation9 + $0x180] sm:$0xff]
    %v2230 = vld [vmem:[#allocation9 + $0x188] sm:$0xff]
    %v2231 = vld [vmem:[#allocation9 + $0x190] sm:$0xff]
    %v2232 = vld [vmem:[#allocation9 + $0x198] sm:$0xff]
    %v2233 = vld [vmem:[#allocation9 + $0x1a0] sm:$0xff]
    %v2234 = vld [vmem:[#allocation9 + $0x1a8] sm:$0xff]
    %v2235 = vld [vmem:[#allocation9 + $0x1b0] sm:$0xff]
    %v2236 = vld [vmem:[#allocation9 + $0x1b8] sm:$0xff]
    %v2237 = vld [vmem:[#allocation9 + $0x1c0] sm:$0xff]
    %v2238 = vld [vmem:[#allocation9 + $0x1c8] sm:$0xff]
    %v2239 = vld [vmem:[#allocation9 + $0x1d0] sm:$0xff]
    %v2240 = vld [vmem:[#allocation9 + $0x1d8] sm:$0xff]
    %v2241 = vld [vmem:[#allocation9 + $0x1e0] sm:$0xff]
    %v2242 = vld [vmem:[#allocation9 + $0x1e8] sm:$0xff]
    %v2243 = vld [vmem:[#allocation9 + $0x1f0] sm:$0xff]
    %v2244 = vld [vmem:[#allocation9 + $0x1f8] sm:$0xff]
    %2245 = vmatprep.subr.mxu0 %v2182
    %2246 = vmatpush1.msra.mxu0 %v2181
    %2247 = vmatprep.subr.mxu0 %v2186
    %2248 = vmatpush1.msra.mxu0 %v2185
    %2249 = vmatprep.subr.mxu0 %v2190
    %2250 = vmatpush1.msra.mxu0 %v2189
    %2251 = vmatprep.subr.mxu0 %v2194
    %2252 = vmatpush1.msra.mxu0 %v2193
    %2253 = vmatprep.subr.mxu0 %v2198
    %2254 = vmatpush1.msra.mxu0 %v2197
    %2255 = vmatprep.subr.mxu0 %v2202
    %2256 = vmatpush1.msra.mxu0 %v2201
    %2257 = vmatprep.subr.mxu0 %v2206
    %2258 = vmatpush1.msra.mxu0 %v2205
    %2259 = vmatprep.subr.mxu0 %v2210
    %2260 = vmatpush1.msra.mxu0 %v2209
    %2261 = vmatprep.subr.mxu0 %v2214
    %2262 = vmatpush1.msra.mxu0 %v2213
    %2263 = vmatprep.subr.mxu0 %v2218
    %2264 = vmatpush1.msra.mxu0 %v2217
    %2265 = vmatprep.subr.mxu0 %v2222
    %2266 = vmatpush1.msra.mxu0 %v2221
    %2267 = vmatprep.subr.mxu0 %v2226
    %2268 = vmatpush1.msra.mxu0 %v2225
    %2269 = vmatprep.subr.mxu0 %v2230
    %2270 = vmatpush1.msra.mxu0 %v2229
    %2271 = vmatprep.subr.mxu0 %v2234
    %2272 = vmatpush1.msra.mxu0 %v2233
    %2273 = vmatprep.subr.mxu0 %v2238
    %2274 = vmatpush1.msra.mxu0 %v2237
    %2275 = vmatprep.subr.mxu0 %v2242
    %2276 = vmatpush1.msra.mxu0 %v2241
    %2277 = vmatprep.subr.mxu0 0.0
    %2278 = vmatpush1.msra.mxu0 0.0
    %2279 = vmatprep.subr.mxu0 0.0
    %2280 = vmatpush1.msra.mxu0 0.0
    %2281 = vmatprep.subr.mxu0 0.0
    %2282 = vmatpush1.msra.mxu0 0.0
    %2283 = vmatprep.subr.mxu0 0.0
    %2284 = vmatpush1.msra.mxu0 0.0
    %2285 = vmatprep.subr.mxu0 0.0
    %2286 = vmatpush1.msra.mxu0 0.0
    %2287 = vmatprep.subr.mxu0 0.0
    %2288 = vmatpush1.msra.mxu0 0.0
    %2289 = vmatprep.subr.mxu0 0.0
    %2290 = vmatpush1.msra.mxu0 0.0
    %2291 = vmatprep.subr.mxu0 0.0
    %2292 = vmatpush1.msra.mxu0 0.0
    %2293 = vmatprep.subr.mxu0 0.0
    %2294 = vmatpush1.msra.mxu0 0.0
    %2295 = vmatprep.subr.mxu0 0.0
    %2296 = vmatpush1.msra.mxu0 0.0
    %2297 = vmatprep.subr.mxu0 0.0
    %2298 = vmatpush1.msra.mxu0 0.0
    %2299 = vmatprep.subr.mxu0 0.0
    %2300 = vmatpush1.msra.mxu0 0.0
    %2301 = vmatprep.subr.mxu0 0.0
    %2302 = vmatpush1.msra.mxu0 0.0
    %2303 = vmatprep.subr.mxu0 0.0
    %2304 = vmatpush1.msra.mxu0 0.0
    %2305 = vmatprep.subr.mxu0 0.0
    %2306 = vmatpush1.msra.mxu0 0.0
    %2307 = vmatprep.subr.mxu0 0.0
    %2308 = vmatpush1.msra.mxu0 0.0
    %2309 = vmatprep.mubr.f32.mxu0 0.0
    %2310 = vmatmul.mubr.f32.gmra.mrb[0].mxu0 %v2175
    %v2311 = vpop.f32.mrb[0].mxu0
    %v2312 = vadd.f32 0.0, %v2311
    %v2313 = vpop.f32.mrb[0].mxu0
    %v2314 = vadd.f32 0.0, %v2313
    %2315 = vdwg.mxu0
    %2316 = vmatprep.subr.mxu0 %v2184
    %2317 = vmatpush1.msra.mxu0 %v2183
    %2318 = vmatprep.subr.mxu0 %v2188
    %2319 = vmatpush1.msra.mxu0 %v2187
    %2320 = vmatprep.subr.mxu0 %v2192
    %2321 = vmatpush1.msra.mxu0 %v2191
    %2322 = vmatprep.subr.mxu0 %v2196
    %2323 = vmatpush1.msra.mxu0 %v2195
    %2324 = vmatprep.subr.mxu0 %v2200
    %2325 = vmatpush1.msra.mxu0 %v2199
    %2326 = vmatprep.subr.mxu0 %v2204
    %2327 = vmatpush1.msra.mxu0 %v2203
    %2328 = vmatprep.subr.mxu0 %v2208
    %2329 = vmatpush1.msra.mxu0 %v2207
    %2330 = vmatprep.subr.mxu0 %v2212
    %2331 = vmatpush1.msra.mxu0 %v2211
    %2332 = vmatprep.subr.mxu0 %v2216
    %2333 = vmatpush1.msra.mxu0 %v2215
    %2334 = vmatprep.subr.mxu0 %v2220
    %2335 = vmatpush1.msra.mxu0 %v2219
    %2336 = vmatprep.subr.mxu0 %v2224
    %2337 = vmatpush1.msra.mxu0 %v2223
    %2338 = vmatprep.subr.mxu0 %v2228
    %2339 = vmatpush1.msra.mxu0 %v2227
    %2340 = vmatprep.subr.mxu0 %v2232
    %2341 = vmatpush1.msra.mxu0 %v2231
    %2342 = vmatprep.subr.mxu0 %v2236
    %2343 = vmatpush1.msra.mxu0 %v2235
    %2344 = vmatprep.subr.mxu0 %v2240
    %2345 = vmatpush1.msra.mxu0 %v2239
    %2346 = vmatprep.subr.mxu0 %v2244
    %2347 = vmatpush1.msra.mxu0 %v2243
    %2348 = vmatprep.subr.mxu0 0.0
    %2349 = vmatpush1.msra.mxu0 0.0
    %2350 = vmatprep.subr.mxu0 0.0
    %2351 = vmatpush1.msra.mxu0 0.0
    %2352 = vmatprep.subr.mxu0 0.0
    %2353 = vmatpush1.msra.mxu0 0.0
    %2354 = vmatprep.subr.mxu0 0.0
    %2355 = vmatpush1.msra.mxu0 0.0
    %2356 = vmatprep.subr.mxu0 0.0
    %2357 = vmatpush1.msra.mxu0 0.0
    %2358 = vmatprep.subr.mxu0 0.0
    %2359 = vmatpush1.msra.mxu0 0.0
    %2360 = vmatprep.subr.mxu0 0.0
    %2361 = vmatpush1.msra.mxu0 0.0
    %2362 = vmatprep.subr.mxu0 0.0
    %2363 = vmatpush1.msra.mxu0 0.0
    %2364 = vmatprep.subr.mxu0 0.0
    %2365 = vmatpush1.msra.mxu0 0.0
    %2366 = vmatprep.subr.mxu0 0.0
    %2367 = vmatpush1.msra.mxu0 0.0
    %2368 = vmatprep.subr.mxu0 0.0
    %2369 = vmatpush1.msra.mxu0 0.0
    %2370 = vmatprep.subr.mxu0 0.0
    %2371 = vmatpush1.msra.mxu0 0.0
    %2372 = vmatprep.subr.mxu0 0.0
    %2373 = vmatpush1.msra.mxu0 0.0
    %2374 = vmatprep.subr.mxu0 0.0
    %2375 = vmatpush1.msra.mxu0 0.0
    %2376 = vmatprep.subr.mxu0 0.0
    %2377 = vmatpush1.msra.mxu0 0.0
    %2378 = vmatprep.subr.mxu0 0.0
    %2379 = vmatpush1.msra.mxu0 0.0
    %2380 = vmatprep.mubr.f32.mxu0 0.0
    %2381 = vmatmul.mubr.f32.gmra.mrb[0].mxu0 %v2175
    %v2382 = vpop.f32.mrb[0].mxu0
    %v2383 = vadd.f32 0.0, %v2382
    %v2384 = vpop.f32.mrb[0].mxu0
    %v2385 = vadd.f32 0.0, %v2384
    %2386 = vdwg.mxu0
    %v2387 = vadd.f32 %v2177, %v2312
    %v2388 = vadd.f32 %v2178, %v2314
    %v2389 = vadd.f32 %v2179, %v2383
    %v2390 = vadd.f32 %v2180, %v2385
    %v2391 = vxor.u32 %v2387, 2147483648
    %v2392 = vxor.u32 %v2388, 2147483648
    %v2393 = vxor.u32 %v2389, 2147483648
    %v2394 = vmul.f32 %v2391, 1.442695
    %v2395 = vpow.pop %v2394
    %v2396 = vmul.f32 %v2392, 1.442695
    %v2397 = vpow.pop %v2396
    %v2398 = vmul.f32 %v2393, 1.442695
    %v2399 = vpow.pop %v2398
    %v2400 = vadd.f32 %v2395, 1.0
    %v2401 = vadd.f32 %v2397, 1.0
    %v2402 = vadd.f32 %v2399, 1.0
    %v2403 = vrcp.pop %v2400
    %v2404 = vmul.f32 1.0, %v2403
    %v2405 = vrcp.pop %v2401
    %v2406 = vmul.f32 1.0, %v2405
    %v2407 = vrcp.pop %v2402
    %v2408 = vmul.f32 1.0, %v2407
    %v2409 = vtanh.pop %v2390
    %v2410 = vmul.f32 %v2406, %v2173
    %v2411 = vmul.f32 %v2404, %v2409
    %v2412 = vadd.f32 %v2410, %v2411
    %v2413 = vtanh.pop %v2412
    %v2414 = vmul.f32 %v2408, %v2413
    %2415 = vst [vmem:[#allocation3 + $0x38] sm:$0xff] %v2414
    %v2416 = vld [vmem:[#allocation3] sm:$0xff]
    %v2417 = vld [vmem:[#allocation3 + $0x8] sm:$0xff]
    %v2418 = vld [vmem:[#allocation3 + $0x10] sm:$0xff]
    %v2419 = vld [vmem:[#allocation3 + $0x18] sm:$0xff]
    %v2420 = vld [vmem:[#allocation3 + $0x20] sm:$0xff]
    %v2421 = vld [vmem:[#allocation3 + $0x28] sm:$0xff]
    %v2422 = vld [vmem:[#allocation3 + $0x30] sm:$0xff]
    %v2423 = vld [vmem:[#allocation3 + $0x38] sm:$0xff]
    %v2424 = vpack.c.bf16 %v2417, %v2416
    %v2425 = vpack.c.bf16 %v2419, %v2418
    %v2426 = vpack.c.bf16 %v2421, %v2420
    %v2427 = vpack.c.bf16 %v2423, %v2422
    %v2428 = vld [vmem:[#allocation10] sm:$0xf]
    %v2429 = vld [vmem:[#allocation10 + $0x4] sm:$0xf]
    %v2430 = vld [vmem:[#allocation10 + $0x8] sm:$0xf]
    %v2431 = vld [vmem:[#allocation10 + $0xc] sm:$0xf]
    %v2432 = vld [vmem:[#allocation10 + $0x10] sm:$0xf]
    %v2433 = vld [vmem:[#allocation10 + $0x14] sm:$0xf]
    %v2434 = vld [vmem:[#allocation10 + $0x18] sm:$0xf]
    %v2435 = vld [vmem:[#allocation10 + $0x1c] sm:$0xf]
    %v2436 = vld [vmem:[#allocation10 + $0x20] sm:$0xf]
    %v2437 = vld [vmem:[#allocation10 + $0x24] sm:$0xf]
    %v2438 = vld [vmem:[#allocation10 + $0x28] sm:$0xf]
    %v2439 = vld [vmem:[#allocation10 + $0x2c] sm:$0xf]
    %v2440 = vld [vmem:[#allocation10 + $0x30] sm:$0xf]
    %v2441 = vld [vmem:[#allocation10 + $0x34] sm:$0xf]
    %v2442 = vld [vmem:[#allocation10 + $0x38] sm:$0xf]
    %v2443 = vld [vmem:[#allocation10 + $0x3c] sm:$0xf]
    %v2444 = vld [vmem:[%s5] sm:$0x1]
    %v2446 = vlaneseq
    %v2447 = vshrl.u32 %v2446, 7
    %v2448 = vsub.s32 0, %v2447
    %v2449 = vrot.slane %v2444, %v2448
    %v2467 = vunpack.c.l.b16 %v2428
    %v2468 = vunpack.c.l.b16 %v2429
    %v2469 = vunpack.c.l.b16 %v2430
    %v2470 = vunpack.c.l.b16 %v2431
    %v2471 = vunpack.c.l.b16 %v2432
    %v2472 = vunpack.c.l.b16 %v2433
    %v2473 = vunpack.c.l.b16 %v2434
    %v2474 = vunpack.c.l.b16 %v2435
    %v2475 = vunpack.c.l.b16 %v2436
    %v2476 = vunpack.c.l.b16 %v2437
    %v2477 = vunpack.c.l.b16 %v2438
    %v2478 = vunpack.c.l.b16 %v2439
    %v2479 = vunpack.c.l.b16 %v2440
    %v2480 = vunpack.c.l.b16 %v2441
    %v2481 = vunpack.c.l.b16 %v2442
    %v2482 = vunpack.c.l.b16 %v2443
    %v2483 = vpack.c.b16 %v2468, %v2467
    %v2484 = vpack.c.b16 %v2470, %v2469
    %v2485 = vpack.c.b16 %v2472, %v2471
    %v2486 = vpack.c.b16 %v2474, %v2473
    %v2487 = vpack.c.b16 %v2476, %v2475
    %v2488 = vpack.c.b16 %v2478, %v2477
    %v2489 = vpack.c.b16 %v2480, %v2479
    %v2490 = vpack.c.b16 %v2482, %v2481
    %2499 = vmatprep.subr.bf16.mxu0 0
    %2500 = vmatpush1.bf16.msra.mxu0 %v2483
    %2501 = vmatprep.subr.bf16.mxu0 0
    %2502 = vmatpush1.bf16.msra.mxu0 %v2484
    %2503 = vmatprep.subr.bf16.mxu0 0
    %2504 = vmatpush1.bf16.msra.mxu0 %v2485
    %2505 = vmatprep.subr.bf16.mxu0 0
    %2506 = vmatpush1.bf16.msra.mxu0 %v2486
    %2507 = vmatprep.subr.bf16.mxu0 0
    %2508 = vmatpush1.bf16.msra.mxu0 %v2487
    %2509 = vmatprep.subr.bf16.mxu0 0
    %2510 = vmatpush1.bf16.msra.mxu0 %v2488
    %2511 = vmatprep.subr.bf16.mxu0 0
    %2512 = vmatpush1.bf16.msra.mxu0 %v2489
    %2513 = vmatprep.subr.bf16.mxu0 0
    %2514 = vmatpush1.bf16.msra.mxu0 %v2490
    %2515 = vmatprep.subr.bf16.mxu0 0
    %2516 = vmatpush1.bf16.msra.mxu0 0
    %2517 = vmatprep.subr.bf16.mxu0 0
    %2518 = vmatpush1.bf16.msra.mxu0 0
    %2519 = vmatprep.subr.bf16.mxu0 0
    %2520 = vmatpush1.bf16.msra.mxu0 0
    %2521 = vmatprep.subr.bf16.mxu0 0
    %2522 = vmatpush1.bf16.msra.mxu0 0
    %2523 = vmatprep.subr.bf16.mxu0 0
    %2524 = vmatpush1.bf16.msra.mxu0 0
    %2525 = vmatprep.subr.bf16.mxu0 0
    %2526 = vmatpush1.bf16.msra.mxu0 0
    %2527 = vmatprep.subr.bf16.mxu0 0
    %2528 = vmatpush1.bf16.msra.mxu0 0
    %2529 = vmatprep.subr.bf16.mxu0 0
    %2530 = vmatpush1.bf16.msra.mxu0 0
    %2531 = vmatprep.mubr.bf16.mxu0 0
    %2532 = vmatmul.mubr.bf16.gmra.mrb[0].mxu0 %v2424
    %v2533 = vpop.f32.mrb[0].mxu0
    %v2534 = vadd.f32 %v2449, %v2533
    %v2535 = vpop.f32.mrb[0].mxu0
    %v2536 = vpop.f32.mrb[0].mxu0
    %v2537 = vadd.f32 %v2449, %v2536
    %v2538 = vpop.f32.mrb[0].mxu0
    %2539 = vmatprep.mubr.bf16.mxu0 0
    %2540 = vmatmul.mubr.bf16.gmra.mrb[0].mxu0 %v2425
    %v2541 = vpop.f32.mrb[0].mxu0
    %v2542 = vadd.f32 %v2449, %v2541
    %v2543 = vpop.f32.mrb[0].mxu0
    %v2544 = vpop.f32.mrb[0].mxu0
    %v2545 = vadd.f32 %v2449, %v2544
    %v2546 = vpop.f32.mrb[0].mxu0
    %2547 = vmatprep.mubr.bf16.mxu0 0
    %2548 = vmatmul.mubr.bf16.gmra.mrb[0].mxu0 %v2426
    %v2549 = vpop.f32.mrb[0].mxu0
    %v2550 = vadd.f32 %v2449, %v2549
    %v2551 = vpop.f32.mrb[0].mxu0
    %v2552 = vpop.f32.mrb[0].mxu0
    %v2553 = vadd.f32 %v2449, %v2552
    %v2554 = vpop.f32.mrb[0].mxu0
    %2555 = vmatprep.mubr.bf16.mxu0 0
    %2556 = vmatmul.mubr.bf16.gmra.mrb[0].mxu0 %v2427
    %v2557 = vpop.f32.mrb[0].mxu0
    %v2558 = vadd.f32 %v2449, %v2557
    %v2559 = vpop.f32.mrb[0].mxu0
    %v2560 = vpop.f32.mrb[0].mxu0
    %v2561 = vadd.f32 %v2449, %v2560
    %v2562 = vpop.f32.mrb[0].mxu0
    %2563 = vdwg.mxu0
    %2564 = vst [vmem:[#allocation12] sm:$0xff] %v2534
    %2565 = vst [vmem:[#allocation12 + $0x8] sm:$0xff] %v2537
    %2566 = vst [vmem:[#allocation12 + $0x10] sm:$0xff] %v2542
    %2567 = vst [vmem:[#allocation12 + $0x18] sm:$0xff] %v2545
    %2568 = vst [vmem:[#allocation12 + $0x20] sm:$0xff] %v2550
    %2569 = vst [vmem:[#allocation12 + $0x28] sm:$0xff] %v2553
    %2570 = vst [vmem:[#allocation12 + $0x30] sm:$0xff] %v2558
    %2571 = vst [vmem:[#allocation12 + $0x38] sm:$0xff] %v2561
    // Predicated region
    $region42: #{tpu_custom_call.1} parent=1 // pred_check
      _
    $region43: #{tpu_custom_call.1} parent=1 // pred_check_branch
      %2573 = sbr.rel (0) target = $region45
    $region44: #{tpu_custom_call.1} parent=1 // pred_region
      %s2575 = ssub.s32 1024, 1024
      %2576 = vsyncadd [#allocation6], %s2575
      %s2577 = sshll.u32 [#allocation12], 4
      %s2578 = int_to_ptr.vmem [resolvable:$true] %s2577
      %2583 = dma.vmem_to_hbm [thread:$0]  %s2578, 1024, %s6, [#allocation6], 128, 128, 8
    $region45: #{tpu_custom_call.1} parent=1 // pred_fallthru
      _
    // Predicated region
    $region46: #{tpu_custom_call.1} parent=1 // pred_check
      _
    $region47: #{tpu_custom_call.1} parent=1 // pred_check_branch
      %2585 = sbr.rel (0) target = $region49
    $region48: #{tpu_custom_call.1} parent=1 // pred_region
      %2586 = dma.done [#allocation6], 1024
    $region49: #{tpu_custom_call.1} parent=1 // pred_fallthru
      _
    %2587 = vsyncpa [#allocation5], 1
    %2588 = vsyncpa [#allocation8], 1
    %2589 = vsyncpa [#allocation11], 1
    %2590 = vsyncpa [#allocation6], 1

</llo_original>
